<compile_context>
chip_gen: v6e
topology: v6e:2x2x1
jax: 0.10.0
libtpu: 0.0.40
codegen_flags: <defaults>
</compile_context>

<pallas_src>
import functools

import jax
import jax.numpy as jnp
from jax.experimental import pallas as pl
from jax.experimental.pallas import tpu as pltpu


_PALLAS_MIN_BYTES = 512 * 1024      # below this an XLA slice (fusable) wins.
_MAX_TILE_BYTES = 4 << 20           # input bytes per grid step (per buffer).
_SUBLANE_MULT = {4: 8, 2: 16, 1: 32}  # packed-dtype sublane tiling.

# dtypes for which the lane-dense relayout failed to lower (fallback cache).
_DENSE_UNSUPPORTED = set()


def _round_up(x, m):
    return (x + m - 1) // m * m


def _select_kernel_dense(x_ref, o_ref, *, lane_off):
    # x_ref: (tR, L) VMEM tile; the selected element of every row sits at lane
    #        `lane_off` of this tile.
    # o_ref: (tR // 128, 128) lane-dense output slab (unmasked vst stores).
    col = x_ref[:, lane_off:lane_off + 1]          # (tR, 1) static lane slice
    # Column -> lane-dense slab: tR elements of XLU relayout, hidden under the DMA.
    o_ref[...] = col.reshape(o_ref.shape)


def _select_kernel_narrow(x_ref, o_ref, *, lane_off):
    # Previously validated fallback: (tR, 1) output block (masked stores).
    o_ref[...] = x_ref[:, lane_off:lane_off + 1]


def select_layer(x, idx):
    """Pallas implementation of Select_Layer.forward: x[:, :, idx:idx+1]."""
    assert x.ndim >= 3, "The Part Relation Works only for 3D inputs"

    # idx is fixed at module construction time -> must be a static Python int.
    # TODO(synk): if many distinct idx values occur at runtime, switch to scalar
    # prefetch (PrefetchScalarGridSpec) to avoid one compile per idx.
    idx = int(idx)

    if x.ndim != 3:
        # TODO(synk): for >3-D inputs axis 2 is not the minor axis, so the slice is
        # contiguous and XLA handles it at the HBM roofline; no Pallas path needed.
        return x[:, :, idx:idx + 1]

    B, T, C = x.shape
    assert 0 <= idx < C
    itemsize = jnp.dtype(x.dtype).itemsize

    # Tiny copies: Pallas launch/per-step overhead dominates; let XLA fuse it.
    if x.size * itemsize < _PALLAS_MIN_BYTES:
        return x[:, :, idx:idx + 1]

    # (B, T, C) -> (R, C) is a free metadata reshape.
    R = B * T
    x2d = x.reshape(R, C)

    # Only DMA the 128-lane block that contains idx (input read floor: the (8,128)
    # HBM tile must be read regardless).  If C < 128 the full lane dim is the block.
    lane_block = 128 if C >= 128 else C
    lane_blk_idx = idx // lane_block
    lane_off = idx % lane_block

    # Row tile: dtype-aligned (so tR//128 is a multiple of the packed sublane tile),
    # capped at ~4 MiB of input per step, cdiv grid for any R.
    sub = _SUBLANE_MULT.get(itemsize, 8)
    row_align = 128 * sub
    cap = max(row_align,
              (_MAX_TILE_BYTES // (lane_block * itemsize)) // row_align * row_align)
    tR = min(cap, _round_up(R, row_align))
    n_steps = pl.cdiv(R, tR)
    R_pad = n_steps * tR               # output rounded up to whole blocks
    out_blk_rows = tR // 128

    n_in_buf = 3 if n_steps >= 3 else 2
    in_tile_bytes = tR * lane_block * itemsize
    out_tile_bytes = out_blk_rows * 128 * itemsize
    vmem_limit = int(min(56 << 20,
                         max(16 << 20, 2 * (n_in_buf * in_tile_bytes + 2 * out_tile_bytes))))

    cost = pl.CostEstimate(
        flops=0,
        transcendentals=0,
        bytes_accessed=R * lane_block * itemsize + R_pad * itemsize,
    )
    # TODO(synk): on v7x benchmark CORE_PARALLEL / core_map on the row axis (the
    # kernel is DMA-bound and embarrassingly parallel over rows).
    cparams = pltpu.CompilerParams(
        dimension_semantics=("parallel",),
        vmem_limit_bytes=vmem_limit,
    )
    grid = (n_steps,)

    def run_dense():
        in_spec = pl.BlockSpec((tR, lane_block),
                               lambda i: (i, lane_blk_idx),
                               pipeline_mode=pl.Buffered(n_in_buf))
        out_spec = pl.BlockSpec((out_blk_rows, 128), lambda i: (i, 0))
        out2d = pl.pallas_call(
            functools.partial(_select_kernel_dense, lane_off=lane_off),
            out_shape=jax.ShapeDtypeStruct((R_pad // 128, 128), x.dtype),
            grid_spec=pl.GridSpec(grid=grid, in_specs=[in_spec], out_specs=out_spec),
            compiler_params=cparams,
            cost_estimate=cost,
        )(x2d)
        # Flatten -> drop padded rows -> (B, T, 1).  Contiguous / degenerate-dim
        # reshapes only; the consumer sees the same shape as before.
        return out2d.reshape(-1)[:R].reshape(B, T, 1)

    def run_narrow():
        in_spec = pl.BlockSpec((tR, lane_block), lambda i: (i, lane_blk_idx))
        out_spec = pl.BlockSpec((tR, 1), lambda i: (i, 0))
        out2d = pl.pallas_call(
            functools.partial(_select_kernel_narrow, lane_off=lane_off),
            out_shape=jax.ShapeDtypeStruct((R_pad, 1), x.dtype),
            grid_spec=pl.GridSpec(grid=grid, in_specs=[in_spec], out_specs=out_spec),
            compiler_params=cparams,
            cost_estimate=cost,
        )(x2d)
        return out2d[:R].reshape(B, T, 1)

    dtype_key = str(jnp.dtype(x.dtype))
    if dtype_key not in _DENSE_UNSUPPORTED:
        try:
            return run_dense()
        except Exception:
            # Mosaic rejected the column->slab relayout (or Buffered) for this dtype
            # on this backend; remember and use the validated narrow-output kernel.
            # (Note: only catchable when called eagerly, which is how it runs here.)
            _DENSE_UNSUPPORTED.add(dtype_key)
    return run_narrow()


if __name__ == "__main__":
    # 1) Main Pallas path, f32: R = 8*4096 = 32768 rows -> 4 grid steps of 8192
    #    (exercises Buffered(3) pipelining and the 2-step writeback of dense slabs).
    B1, T1, C1, idx1 = 8, 4096, 256, 200
    x1 = jax.random.normal(jax.random.PRNGKey(0), (B1, T1, C1), dtype=jnp.float32)
    o1 = jax.block_until_ready(select_layer(x1, idx1))
    assert o1.shape == (B1, T1, 1), o1.shape
    assert jnp.array_equal(o1, x1[:, :, idx1:idx1 + 1]), "main Pallas path mismatch"

    # 2) Ragged case: R = 5000 (not a multiple of 128 or the tile), C = 192 (idx in
    #    the partial last lane block) -> exercises cdiv grid + padded-output slicing.
    B2, T2, C2, idx2 = 5, 1000, 192, 130
    x2 = jax.random.normal(jax.random.PRNGKey(0), (B2, T2, C2), dtype=jnp.float32)
    o2 = jax.block_until_ready(select_layer(x2, idx2))
    assert o2.shape == (B2, T2, 1), o2.shape
    assert jnp.array_equal(o2, x2[:, :, idx2:idx2 + 1]), "ragged Pallas path mismatch"

    # 3) bf16: exercises the dtype-aware sublane alignment (16-row packing).
    B3, T3, C3, idx3 = 4, 2048, 256, 7
    x3 = jax.random.normal(jax.random.PRNGKey(0), (B3, T3, C3), dtype=jnp.bfloat16)
    o3 = jax.block_until_ready(select_layer(x3, idx3))
    assert o3.shape == (B3, T3, 1), o3.shape
    assert jnp.array_equal(o3, x3[:, :, idx3:idx3 + 1]), "bf16 path mismatch"

    # 4) Small input consistent with typical module usage: takes the XLA fallback
    #    (a ~1 KiB copy should not pay Pallas launch overhead).
    B4, T4, C4, idx4 = 2, 8, 16, 3
    x4 = jax.random.normal(jax.random.PRNGKey(0), (B4, T4, C4), dtype=jnp.float32)
    o4 = jax.block_until_ready(select_layer(x4, idx4))
    assert o4.shape == (B4, T4, 1), o4.shape
    assert jnp.array_equal(o4, x4[:, :, idx4:idx4 + 1]), "small-input fallback mismatch"

    print("KERNEL_OK")
</pallas_src>

<mosaic_0001>
module attributes {stable_mosaic.version = 11 : i64} {
  func.func @_select_kernel_narrow(%arg0: i32, %arg1: memref<8192x128xf32, #tpu.memory_space<vmem>>, %arg2: memref<8192x1xf32, #tpu.memory_space<vmem>>) attributes {dimension_semantics = [#tpu.dimension_semantics<parallel>], iteration_bounds = array<i64: 4>, scalar_prefetch = 0 : i64, scratch_operands = 0 : i64, tpu.core_type = #tpu.core_type<tc>, window_params = [{transform_indices = @transform_0, window_bounds = array<i64: 8192, 128>}, {transform_indices = @transform_1, window_bounds = array<i64: 8192, 1>}]} {
    %c0 = arith.constant 0 : index
    %c72 = arith.constant 72 : index
    %0 = vector.load %arg1[%c0, %c72] : memref<8192x128xf32, #tpu.memory_space<vmem>>, vector<8192x1xf32>
    %c0_0 = arith.constant 0 : index
    %c0_1 = arith.constant 0 : index
    %1 = vector.load %arg2[%c0_0, %c0_1] : memref<8192x1xf32, #tpu.memory_space<vmem>>, vector<8192x1xf32>
    tpu.vector_store %arg2[%c0_0, %c0_1], %0 {strides = array<i32>} : memref<8192x1xf32, #tpu.memory_space<vmem>>, vector<8192x1xf32>,
    return
  }
  func.func @transform_0(%arg0: i32) -> (i32, i32) {
    %c1_i32 = arith.constant 1 : i32
    %c0_i32 = arith.constant 0 : i32
    return %arg0, %c1_i32 : i32, i32
  }
  func.func @transform_1(%arg0: i32) -> (i32, i32) {
    %c0_i32 = arith.constant 0 : i32
    %c0_i32_0 = arith.constant 0 : i32
    return %arg0, %c0_i32 : i32, i32
  }
}

</mosaic_0001>

<llo_original>
// kernel: tpu_custom_call.1
$region0: #{tpu_custom_call.1}
  #allocation0 [shape = 'u32[]', space=smem, size = 0x4, offset = 0x4, fixed_abs, tag = 'smem constant byte address 0x4 - core index']
  #allocation1 [shape = 'u32[144,128]{1,0:T(1,128)}', space=vmem, size = 0x12000, scoped, tag = 'internal scratch']
  %s0 = inlined_call_operand.hbm [shape: f32[32768,256], index: 0, kind: input, shape index: {}]
  %s1 = inlined_call_operand.vmem [shape: f32[32768,1], index: 1, kind: output, shape index: {}]
  %s2 = sld [smem:[#allocation0]]
  $region41: #{tpu_custom_call.1} parent=0
    _
  %s4 = ssub.s32 1, %s2
  %s5 = scalar_select 0, %s4, %s2
  $region1: #{tpu_custom_call.1} parent=0
    #allocation2 [shape = 'u8[8388608]{0}', space=vmem, size = 0x800000, scoped, tag = 'input window, operand 0']
    #allocation3 [shape = 's32[2]{0}', space=sflag, size = 0x8, scoped, tag = 'scoped memory for tpu_custom_call.1']
    %6 = vsyncpa [#allocation3], 0
    %s7 = scalar_lea.sflag [#allocation3], 1
    %8 = vsyncpa %s7, 0
    loop: start=0, step=1, limit=6
    $region2: #{tpu_custom_call.1} parent=1 // loop_pre_header
      _
    $region3: #{tpu_custom_call.1} parent=1 // loop_header
      %s10 = sphi 0, %s14
      %p11 = scmp.ge.s32.totalorder %s10, 6
      %s20 = sphi 0, %s22
      %s23 = sphi 0, %s20
      %s24 = sphi 0, %s23
      %s40 = sphi 0, %s24
      %s46 = sphi 0, %s48
      %s49 = sphi 0, %s46
      %s50 = sphi 0, %s49
      %s66 = sphi 0, %s50
    $region4: #{tpu_custom_call.1} parent=1 // loop_header_branch
      %13 = sbr.rel (%p11) target = $region8
    $region5: #{tpu_custom_call.1} parent=1 // loop_body
      %s15 = ssub.s32 %s10, 1
      %s16 = ssub.s32 %s10, 2
      %s17 = sadd.s32 %s10, 1
      %s18 = ssub.s32 %s10, %s17
      %p19 = scmp.eq.s32.totalorder %s18, 0
      %s21 = sadd.s32 %s20, 1
      %s22 = scalar_select %p19, %s20, %s21
      %p25 = pneg %p19
      %p26 = scmp.eq.s32.totalorder %s10, 3
      %p27 = por %p25, %p26
      %p28 = scmp.ne.s32.totalorder %s20, %s23
      %p29 = scmp.eq.s32.totalorder %s10, 0
      %p30 = por %p28, %p29
      %p31 = scmp.ne.s32.totalorder %s20, %s23
      %p32 = scmp.eq.s32.totalorder %s15, 3
      %p33 = por %p31, %p32
      %p34 = scmp.ne.s32.totalorder %s23, %s24
      %p35 = scmp.eq.s32.totalorder %s15, 0
      %p36 = por %p34, %p35
      %p37 = scmp.ne.s32.totalorder %s23, %s24
      %p38 = scmp.eq.s32.totalorder %s16, 3
      %p39 = por %p37, %p38
      %p41 = scmp.ne.s32.totalorder %s24, %s40
      %p42 = scmp.eq.s32.totalorder %s16, 0
      %p43 = por %p41, %p42
      %s44 = ssub.s32 %s10, %s17
      %p45 = scmp.eq.s32.totalorder %s44, 0
      %s47 = sadd.s32 %s46, 1
      %s48 = scalar_select %p45, %s46, %s47
      %p51 = pneg %p45
      %p52 = scmp.eq.s32.totalorder %s10, 3
      %p53 = por %p51, %p52
      %p54 = scmp.ne.s32.totalorder %s46, %s49
      %p55 = scmp.eq.s32.totalorder %s10, 0
      %p56 = por %p54, %p55
      %p57 = scmp.ne.s32.totalorder %s46, %s49
      %p58 = scmp.eq.s32.totalorder %s15, 3
      %p59 = por %p57, %p58
      %p60 = scmp.ne.s32.totalorder %s49, %s50
      %p61 = scmp.eq.s32.totalorder %s15, 0
      %p62 = por %p60, %p61
      %p63 = scmp.ne.s32.totalorder %s49, %s50
      %p64 = scmp.eq.s32.totalorder %s16, 3
      %p65 = por %p63, %p64
      %p67 = scmp.ne.s32.totalorder %s50, %s66
      %p68 = scmp.eq.s32.totalorder %s16, 0
      %p69 = por %p67, %p68
      %p70 = scmp.le.s32.totalorder 1, %s10
      %p71 = scmp.lt.s32.totalorder %s10, 5
      %p72 = pnand %p70, %p71
      %p73 = pneg %p72
      // Predicated region
      $region9: #{tpu_custom_call.1} parent=5 // pred_check
        _
      $region10: #{tpu_custom_call.1} parent=5 // pred_check_branch
        %75 = sbr.rel (%p72) target = $region12
      $region11: #{tpu_custom_call.1} parent=5 // pred_region
        %s76 = ssub.s32 %s10, 1
      $region12: #{tpu_custom_call.1} parent=5 // pred_fallthru
        _
      %p77 = scmp.lt.s32.totalorder %s10, 4
      // Predicated region
      $region13: #{tpu_custom_call.1} parent=5 // pred_check
        %p78 = pneg %p77
      $region14: #{tpu_custom_call.1} parent=5 // pred_check_branch
        %80 = sbr.rel (%p78) target = $region16
      $region15: #{tpu_custom_call.1} parent=5 // pred_region
        // Predicated region
        $region17: #{tpu_custom_call.1} parent=15 // pred_check
          %p81 = pneg %p30
        $region18: #{tpu_custom_call.1} parent=15 // pred_check_branch
          %83 = sbr.rel (%p81) target = $region20
        $region19: #{tpu_custom_call.1} parent=15 // pred_region
          %s84 = sand.u32 %s20, 1
          %s85 = scalar_lea.sflag [#allocation3], %s84
          %s86 = sand.u32 %s20, 1
          %s87 = smul.addr %s86, 8192
          %s88 = scalar_lea.vmem [#allocation2], %s87
          %s89 = smul.u32 1024, %s10
          %s91 = ssub.s32 131072, 131072
          %92 = vsyncadd %s85, %s91
          %s93 = smul.addr %s89, 2
          %s94 = sadd.s32 1, %s93
          %s95 = smul.addr %s94, 128
          %s96 = scalar_lea.hbm %s0, %s95
          %s97 = sshll.u32 %s88, 4
          %s98 = int_to_ptr.vmem [resolvable:$true] %s97
          %103 = dma.hbm_to_vmem [thread:$0]  %s96, 131072, %s98, %s85, 256, 128, 8
        $region20: #{tpu_custom_call.1} parent=15 // pred_fallthru
          _
      $region16: #{tpu_custom_call.1} parent=5 // pred_fallthru
        _
      %p104 = scmp.le.s32.totalorder 1, %s10
      %p105 = scmp.lt.s32.totalorder %s10, 5
      %p106 = pnand %p104, %p105
      %p107 = pneg %p106
      // Predicated region
      $region21: #{tpu_custom_call.1} parent=5 // pred_check
        _
      $region22: #{tpu_custom_call.1} parent=5 // pred_check_branch
        %109 = sbr.rel (%p106) target = $region24
      $region23: #{tpu_custom_call.1} parent=5 // pred_region
        %s110 = ssub.s32 %s10, 1
        %s111 = sand.u32 %s23, 1
        %s112 = scalar_lea.sflag [#allocation3], %s111
        %s113 = sand.u32 %s23, 1
        %s114 = smul.addr %s113, 8192
        %s115 = scalar_lea.vmem [#allocation2], %s114
        // Predicated region
        $region25: #{tpu_custom_call.1} parent=23 // pred_check
          %p116 = pneg %p36
        $region26: #{tpu_custom_call.1} parent=23 // pred_check_branch
          %118 = sbr.rel (%p116) target = $region28
        $region27: #{tpu_custom_call.1} parent=23 // pred_region
          %119 = dma.done %s112, 131072
        $region28: #{tpu_custom_call.1} parent=23 // pred_fallthru
          _
        %s120 = sand.u32 %s23, 1
        %s121 = scalar_lea.sflag [#allocation3], %s120
        %s122 = sand.u32 %s23, 1
        %s123 = smul.addr %s122, 8192
        %s124 = scalar_lea.vmem [#allocation2], %s123
        %p125 = pneg %p36
        %p126 = pneg %p33
        %p127 = pneg %p62
        %p128 = pneg %p59
        %s129 = smul.u32 1024, %s15
        %p130 = scmp.lt.s32.totalorder %s129, 4095
        %s131 = scalar_select %p130, %s129, 4095
        %s132 = smul.addr %s131, 8
        %s133 = scalar_lea.vmem %s1, %s132
        %s134 = smul.u32 1024, %s15
        %s135 = smul.u32 1024, %s15
        %p136 = scmp.lt.s32.totalorder %s135, 4095
        %s137 = scalar_select %p136, %s135, 4095
        %s138 = smul.addr %s137, 8
        %s139 = scalar_lea.vmem %s1, %s138
        %s140 = smul.u32 1024, %s15
        %v141 = vld [vmem:[%s115] sm:$0xff]
        %v142 = vld [vmem:[%s115 + $0x8] sm:$0xff]
        %v143 = vld [vmem:[%s115 + $0x10] sm:$0xff]
        %v144 = vld [vmem:[%s115 + $0x18] sm:$0xff]
        %v145 = vld [vmem:[%s115 + $0x20] sm:$0xff]
        %v146 = vld [vmem:[%s115 + $0x28] sm:$0xff]
        %v147 = vld [vmem:[%s115 + $0x30] sm:$0xff]
        %v148 = vld [vmem:[%s115 + $0x38] sm:$0xff]
        %v149 = vld [vmem:[%s115 + $0x40] sm:$0xff]
        %v150 = vld [vmem:[%s115 + $0x48] sm:$0xff]
        %v151 = vld [vmem:[%s115 + $0x50] sm:$0xff]
        %v152 = vld [vmem:[%s115 + $0x58] sm:$0xff]
        %v153 = vld [vmem:[%s115 + $0x60] sm:$0xff]
        %v154 = vld [vmem:[%s115 + $0x68] sm:$0xff]
        %v155 = vld [vmem:[%s115 + $0x70] sm:$0xff]
        %v156 = vld [vmem:[%s115 + $0x78] sm:$0xff]
        %v157 = vld [vmem:[%s115 + $0x80] sm:$0xff]
        %v158 = vld [vmem:[%s115 + $0x88] sm:$0xff]
        %v159 = vld [vmem:[%s115 + $0x90] sm:$0xff]
        %v160 = vld [vmem:[%s115 + $0x98] sm:$0xff]
        %v161 = vld [vmem:[%s115 + $0xa0] sm:$0xff]
        %v162 = vld [vmem:[%s115 + $0xa8] sm:$0xff]
        %v163 = vld [vmem:[%s115 + $0xb0] sm:$0xff]
        %v164 = vld [vmem:[%s115 + $0xb8] sm:$0xff]
        %v165 = vld [vmem:[%s115 + $0xc0] sm:$0xff]
        %v166 = vld [vmem:[%s115 + $0xc8] sm:$0xff]
        %v167 = vld [vmem:[%s115 + $0xd0] sm:$0xff]
        %v168 = vld [vmem:[%s115 + $0xd8] sm:$0xff]
        %v169 = vld [vmem:[%s115 + $0xe0] sm:$0xff]
        %v170 = vld [vmem:[%s115 + $0xe8] sm:$0xff]
        %v171 = vld [vmem:[%s115 + $0xf0] sm:$0xff]
        %v172 = vld [vmem:[%s115 + $0xf8] sm:$0xff]
        %v173 = vld [vmem:[%s115 + $0x100] sm:$0xff]
        %v174 = vld [vmem:[%s115 + $0x108] sm:$0xff]
        %v175 = vld [vmem:[%s115 + $0x110] sm:$0xff]
        %v176 = vld [vmem:[%s115 + $0x118] sm:$0xff]
        %v177 = vld [vmem:[%s115 + $0x120] sm:$0xff]
        %v178 = vld [vmem:[%s115 + $0x128] sm:$0xff]
        %v179 = vld [vmem:[%s115 + $0x130] sm:$0xff]
        %v180 = vld [vmem:[%s115 + $0x138] sm:$0xff]
        %v181 = vld [vmem:[%s115 + $0x140] sm:$0xff]
        %v182 = vld [vmem:[%s115 + $0x148] sm:$0xff]
        %v183 = vld [vmem:[%s115 + $0x150] sm:$0xff]
        %v184 = vld [vmem:[%s115 + $0x158] sm:$0xff]
        %v185 = vld [vmem:[%s115 + $0x160] sm:$0xff]
        %v186 = vld [vmem:[%s115 + $0x168] sm:$0xff]
        %v187 = vld [vmem:[%s115 + $0x170] sm:$0xff]
        %v188 = vld [vmem:[%s115 + $0x178] sm:$0xff]
        %v189 = vld [vmem:[%s115 + $0x180] sm:$0xff]
        %v190 = vld [vmem:[%s115 + $0x188] sm:$0xff]
        %v191 = vld [vmem:[%s115 + $0x190] sm:$0xff]
        %v192 = vld [vmem:[%s115 + $0x198] sm:$0xff]
        %v193 = vld [vmem:[%s115 + $0x1a0] sm:$0xff]
        %v194 = vld [vmem:[%s115 + $0x1a8] sm:$0xff]
        %v195 = vld [vmem:[%s115 + $0x1b0] sm:$0xff]
        %v196 = vld [vmem:[%s115 + $0x1b8] sm:$0xff]
        %v197 = vld [vmem:[%s115 + $0x1c0] sm:$0xff]
        %v198 = vld [vmem:[%s115 + $0x1c8] sm:$0xff]
        %v199 = vld [vmem:[%s115 + $0x1d0] sm:$0xff]
        %v200 = vld [vmem:[%s115 + $0x1d8] sm:$0xff]
        %v201 = vld [vmem:[%s115 + $0x1e0] sm:$0xff]
        %v202 = vld [vmem:[%s115 + $0x1e8] sm:$0xff]
        %v203 = vld [vmem:[%s115 + $0x1f0] sm:$0xff]
        %v204 = vld [vmem:[%s115 + $0x1f8] sm:$0xff]
        %v205 = vld [vmem:[%s115 + $0x200] sm:$0xff]
        %v206 = vld [vmem:[%s115 + $0x208] sm:$0xff]
        %v207 = vld [vmem:[%s115 + $0x210] sm:$0xff]
        %v208 = vld [vmem:[%s115 + $0x218] sm:$0xff]
        %v209 = vld [vmem:[%s115 + $0x220] sm:$0xff]
        %v210 = vld [vmem:[%s115 + $0x228] sm:$0xff]
        %v211 = vld [vmem:[%s115 + $0x230] sm:$0xff]
        %v212 = vld [vmem:[%s115 + $0x238] sm:$0xff]
        %v213 = vld [vmem:[%s115 + $0x240] sm:$0xff]
        %v214 = vld [vmem:[%s115 + $0x248] sm:$0xff]
        %v215 = vld [vmem:[%s115 + $0x250] sm:$0xff]
        %v216 = vld [vmem:[%s115 + $0x258] sm:$0xff]
        %v217 = vld [vmem:[%s115 + $0x260] sm:$0xff]
        %v218 = vld [vmem:[%s115 + $0x268] sm:$0xff]
        %v219 = vld [vmem:[%s115 + $0x270] sm:$0xff]
        %v220 = vld [vmem:[%s115 + $0x278] sm:$0xff]
        %v221 = vld [vmem:[%s115 + $0x280] sm:$0xff]
        %v222 = vld [vmem:[%s115 + $0x288] sm:$0xff]
        %v223 = vld [vmem:[%s115 + $0x290] sm:$0xff]
        %v224 = vld [vmem:[%s115 + $0x298] sm:$0xff]
        %v225 = vld [vmem:[%s115 + $0x2a0] sm:$0xff]
        %v226 = vld [vmem:[%s115 + $0x2a8] sm:$0xff]
        %v227 = vld [vmem:[%s115 + $0x2b0] sm:$0xff]
        %v228 = vld [vmem:[%s115 + $0x2b8] sm:$0xff]
        %v229 = vld [vmem:[%s115 + $0x2c0] sm:$0xff]
        %v230 = vld [vmem:[%s115 + $0x2c8] sm:$0xff]
        %v231 = vld [vmem:[%s115 + $0x2d0] sm:$0xff]
        %v232 = vld [vmem:[%s115 + $0x2d8] sm:$0xff]
        %v233 = vld [vmem:[%s115 + $0x2e0] sm:$0xff]
        %v234 = vld [vmem:[%s115 + $0x2e8] sm:$0xff]
        %v235 = vld [vmem:[%s115 + $0x2f0] sm:$0xff]
        %v236 = vld [vmem:[%s115 + $0x2f8] sm:$0xff]
        %v237 = vld [vmem:[%s115 + $0x300] sm:$0xff]
        %v238 = vld [vmem:[%s115 + $0x308] sm:$0xff]
        %v239 = vld [vmem:[%s115 + $0x310] sm:$0xff]
        %v240 = vld [vmem:[%s115 + $0x318] sm:$0xff]
        %v241 = vld [vmem:[%s115 + $0x320] sm:$0xff]
        %v242 = vld [vmem:[%s115 + $0x328] sm:$0xff]
        %v243 = vld [vmem:[%s115 + $0x330] sm:$0xff]
        %v244 = vld [vmem:[%s115 + $0x338] sm:$0xff]
        %v245 = vld [vmem:[%s115 + $0x340] sm:$0xff]
        %v246 = vld [vmem:[%s115 + $0x348] sm:$0xff]
        %v247 = vld [vmem:[%s115 + $0x350] sm:$0xff]
        %v248 = vld [vmem:[%s115 + $0x358] sm:$0xff]
        %v249 = vld [vmem:[%s115 + $0x360] sm:$0xff]
        %v250 = vld [vmem:[%s115 + $0x368] sm:$0xff]
        %v251 = vld [vmem:[%s115 + $0x370] sm:$0xff]
        %v252 = vld [vmem:[%s115 + $0x378] sm:$0xff]
        %v253 = vld [vmem:[%s115 + $0x380] sm:$0xff]
        %v254 = vld [vmem:[%s115 + $0x388] sm:$0xff]
        %v255 = vld [vmem:[%s115 + $0x390] sm:$0xff]
        %v256 = vld [vmem:[%s115 + $0x398] sm:$0xff]
        %v257 = vld [vmem:[%s115 + $0x3a0] sm:$0xff]
        %v258 = vld [vmem:[%s115 + $0x3a8] sm:$0xff]
        %v259 = vld [vmem:[%s115 + $0x3b0] sm:$0xff]
        %v260 = vld [vmem:[%s115 + $0x3b8] sm:$0xff]
        %v261 = vld [vmem:[%s115 + $0x3c0] sm:$0xff]
        %v262 = vld [vmem:[%s115 + $0x3c8] sm:$0xff]
        %v263 = vld [vmem:[%s115 + $0x3d0] sm:$0xff]
        %v264 = vld [vmem:[%s115 + $0x3d8] sm:$0xff]
        %v265 = vld [vmem:[%s115 + $0x3e0] sm:$0xff]
        %v266 = vld [vmem:[%s115 + $0x3e8] sm:$0xff]
        %v267 = vld [vmem:[%s115 + $0x3f0] sm:$0xff]
        %v268 = vld [vmem:[%s115 + $0x3f8] sm:$0xff]
        %v269 = vld [vmem:[%s115 + $0x400] sm:$0xff]
        %v270 = vld [vmem:[%s115 + $0x408] sm:$0xff]
        %v271 = vld [vmem:[%s115 + $0x410] sm:$0xff]
        %v272 = vld [vmem:[%s115 + $0x418] sm:$0xff]
        %v273 = vld [vmem:[%s115 + $0x420] sm:$0xff]
        %v274 = vld [vmem:[%s115 + $0x428] sm:$0xff]
        %v275 = vld [vmem:[%s115 + $0x430] sm:$0xff]
        %v276 = vld [vmem:[%s115 + $0x438] sm:$0xff]
        %v277 = vld [vmem:[%s115 + $0x440] sm:$0xff]
        %v278 = vld [vmem:[%s115 + $0x448] sm:$0xff]
        %v279 = vld [vmem:[%s115 + $0x450] sm:$0xff]
        %v280 = vld [vmem:[%s115 + $0x458] sm:$0xff]
        %v281 = vld [vmem:[%s115 + $0x460] sm:$0xff]
        %v282 = vld [vmem:[%s115 + $0x468] sm:$0xff]
        %v283 = vld [vmem:[%s115 + $0x470] sm:$0xff]
        %v284 = vld [vmem:[%s115 + $0x478] sm:$0xff]
        %v285 = vld [vmem:[%s115 + $0x480] sm:$0xff]
        %v286 = vld [vmem:[%s115 + $0x488] sm:$0xff]
        %v287 = vld [vmem:[%s115 + $0x490] sm:$0xff]
        %v288 = vld [vmem:[%s115 + $0x498] sm:$0xff]
        %v289 = vld [vmem:[%s115 + $0x4a0] sm:$0xff]
        %v290 = vld [vmem:[%s115 + $0x4a8] sm:$0xff]
        %v291 = vld [vmem:[%s115 + $0x4b0] sm:$0xff]
        %v292 = vld [vmem:[%s115 + $0x4b8] sm:$0xff]
        %v293 = vld [vmem:[%s115 + $0x4c0] sm:$0xff]
        %v294 = vld [vmem:[%s115 + $0x4c8] sm:$0xff]
        %v295 = vld [vmem:[%s115 + $0x4d0] sm:$0xff]
        %v296 = vld [vmem:[%s115 + $0x4d8] sm:$0xff]
        %v297 = vld [vmem:[%s115 + $0x4e0] sm:$0xff]
        %v298 = vld [vmem:[%s115 + $0x4e8] sm:$0xff]
        %v299 = vld [vmem:[%s115 + $0x4f0] sm:$0xff]
        %v300 = vld [vmem:[%s115 + $0x4f8] sm:$0xff]
        %v301 = vld [vmem:[%s115 + $0x500] sm:$0xff]
        %v302 = vld [vmem:[%s115 + $0x508] sm:$0xff]
        %v303 = vld [vmem:[%s115 + $0x510] sm:$0xff]
        %v304 = vld [vmem:[%s115 + $0x518] sm:$0xff]
        %v305 = vld [vmem:[%s115 + $0x520] sm:$0xff]
        %v306 = vld [vmem:[%s115 + $0x528] sm:$0xff]
        %v307 = vld [vmem:[%s115 + $0x530] sm:$0xff]
        %v308 = vld [vmem:[%s115 + $0x538] sm:$0xff]
        %v309 = vld [vmem:[%s115 + $0x540] sm:$0xff]
        %v310 = vld [vmem:[%s115 + $0x548] sm:$0xff]
        %v311 = vld [vmem:[%s115 + $0x550] sm:$0xff]
        %v312 = vld [vmem:[%s115 + $0x558] sm:$0xff]
        %v313 = vld [vmem:[%s115 + $0x560] sm:$0xff]
        %v314 = vld [vmem:[%s115 + $0x568] sm:$0xff]
        %v315 = vld [vmem:[%s115 + $0x570] sm:$0xff]
        %v316 = vld [vmem:[%s115 + $0x578] sm:$0xff]
        %v317 = vld [vmem:[%s115 + $0x580] sm:$0xff]
        %v318 = vld [vmem:[%s115 + $0x588] sm:$0xff]
        %v319 = vld [vmem:[%s115 + $0x590] sm:$0xff]
        %v320 = vld [vmem:[%s115 + $0x598] sm:$0xff]
        %v321 = vld [vmem:[%s115 + $0x5a0] sm:$0xff]
        %v322 = vld [vmem:[%s115 + $0x5a8] sm:$0xff]
        %v323 = vld [vmem:[%s115 + $0x5b0] sm:$0xff]
        %v324 = vld [vmem:[%s115 + $0x5b8] sm:$0xff]
        %v325 = vld [vmem:[%s115 + $0x5c0] sm:$0xff]
        %v326 = vld [vmem:[%s115 + $0x5c8] sm:$0xff]
        %v327 = vld [vmem:[%s115 + $0x5d0] sm:$0xff]
        %v328 = vld [vmem:[%s115 + $0x5d8] sm:$0xff]
        %v329 = vld [vmem:[%s115 + $0x5e0] sm:$0xff]
        %v330 = vld [vmem:[%s115 + $0x5e8] sm:$0xff]
        %v331 = vld [vmem:[%s115 + $0x5f0] sm:$0xff]
        %v332 = vld [vmem:[%s115 + $0x5f8] sm:$0xff]
        %v333 = vld [vmem:[%s115 + $0x600] sm:$0xff]
        %v334 = vld [vmem:[%s115 + $0x608] sm:$0xff]
        %v335 = vld [vmem:[%s115 + $0x610] sm:$0xff]
        %v336 = vld [vmem:[%s115 + $0x618] sm:$0xff]
        %v337 = vld [vmem:[%s115 + $0x620] sm:$0xff]
        %v338 = vld [vmem:[%s115 + $0x628] sm:$0xff]
        %v339 = vld [vmem:[%s115 + $0x630] sm:$0xff]
        %v340 = vld [vmem:[%s115 + $0x638] sm:$0xff]
        %v341 = vld [vmem:[%s115 + $0x640] sm:$0xff]
        %v342 = vld [vmem:[%s115 + $0x648] sm:$0xff]
        %v343 = vld [vmem:[%s115 + $0x650] sm:$0xff]
        %v344 = vld [vmem:[%s115 + $0x658] sm:$0xff]
        %v345 = vld [vmem:[%s115 + $0x660] sm:$0xff]
        %v346 = vld [vmem:[%s115 + $0x668] sm:$0xff]
        %v347 = vld [vmem:[%s115 + $0x670] sm:$0xff]
        %v348 = vld [vmem:[%s115 + $0x678] sm:$0xff]
        %v349 = vld [vmem:[%s115 + $0x680] sm:$0xff]
        %v350 = vld [vmem:[%s115 + $0x688] sm:$0xff]
        %v351 = vld [vmem:[%s115 + $0x690] sm:$0xff]
        %v352 = vld [vmem:[%s115 + $0x698] sm:$0xff]
        %v353 = vld [vmem:[%s115 + $0x6a0] sm:$0xff]
        %v354 = vld [vmem:[%s115 + $0x6a8] sm:$0xff]
        %v355 = vld [vmem:[%s115 + $0x6b0] sm:$0xff]
        %v356 = vld [vmem:[%s115 + $0x6b8] sm:$0xff]
        %v357 = vld [vmem:[%s115 + $0x6c0] sm:$0xff]
        %v358 = vld [vmem:[%s115 + $0x6c8] sm:$0xff]
        %v359 = vld [vmem:[%s115 + $0x6d0] sm:$0xff]
        %v360 = vld [vmem:[%s115 + $0x6d8] sm:$0xff]
        %v361 = vld [vmem:[%s115 + $0x6e0] sm:$0xff]
        %v362 = vld [vmem:[%s115 + $0x6e8] sm:$0xff]
        %v363 = vld [vmem:[%s115 + $0x6f0] sm:$0xff]
        %v364 = vld [vmem:[%s115 + $0x6f8] sm:$0xff]
        %v365 = vld [vmem:[%s115 + $0x700] sm:$0xff]
        %v366 = vld [vmem:[%s115 + $0x708] sm:$0xff]
        %v367 = vld [vmem:[%s115 + $0x710] sm:$0xff]
        %v368 = vld [vmem:[%s115 + $0x718] sm:$0xff]
        %v369 = vld [vmem:[%s115 + $0x720] sm:$0xff]
        %v370 = vld [vmem:[%s115 + $0x728] sm:$0xff]
        %v371 = vld [vmem:[%s115 + $0x730] sm:$0xff]
        %v372 = vld [vmem:[%s115 + $0x738] sm:$0xff]
        %v373 = vld [vmem:[%s115 + $0x740] sm:$0xff]
        %v374 = vld [vmem:[%s115 + $0x748] sm:$0xff]
        %v375 = vld [vmem:[%s115 + $0x750] sm:$0xff]
        %v376 = vld [vmem:[%s115 + $0x758] sm:$0xff]
        %v377 = vld [vmem:[%s115 + $0x760] sm:$0xff]
        %v378 = vld [vmem:[%s115 + $0x768] sm:$0xff]
        %v379 = vld [vmem:[%s115 + $0x770] sm:$0xff]
        %v380 = vld [vmem:[%s115 + $0x778] sm:$0xff]
        %v381 = vld [vmem:[%s115 + $0x780] sm:$0xff]
        %v382 = vld [vmem:[%s115 + $0x788] sm:$0xff]
        %v383 = vld [vmem:[%s115 + $0x790] sm:$0xff]
        %v384 = vld [vmem:[%s115 + $0x798] sm:$0xff]
        %v385 = vld [vmem:[%s115 + $0x7a0] sm:$0xff]
        %v386 = vld [vmem:[%s115 + $0x7a8] sm:$0xff]
        %v387 = vld [vmem:[%s115 + $0x7b0] sm:$0xff]
        %v388 = vld [vmem:[%s115 + $0x7b8] sm:$0xff]
        %v389 = vld [vmem:[%s115 + $0x7c0] sm:$0xff]
        %v390 = vld [vmem:[%s115 + $0x7c8] sm:$0xff]
        %v391 = vld [vmem:[%s115 + $0x7d0] sm:$0xff]
        %v392 = vld [vmem:[%s115 + $0x7d8] sm:$0xff]
        %v393 = vld [vmem:[%s115 + $0x7e0] sm:$0xff]
        %v394 = vld [vmem:[%s115 + $0x7e8] sm:$0xff]
        %v395 = vld [vmem:[%s115 + $0x7f0] sm:$0xff]
        %v396 = vld [vmem:[%s115 + $0x7f8] sm:$0xff]
        %v397 = vld [vmem:[%s115 + $0x800] sm:$0xff]
        %v398 = vld [vmem:[%s115 + $0x808] sm:$0xff]
        %v399 = vld [vmem:[%s115 + $0x810] sm:$0xff]
        %v400 = vld [vmem:[%s115 + $0x818] sm:$0xff]
        %v401 = vld [vmem:[%s115 + $0x820] sm:$0xff]
        %v402 = vld [vmem:[%s115 + $0x828] sm:$0xff]
        %v403 = vld [vmem:[%s115 + $0x830] sm:$0xff]
        %v404 = vld [vmem:[%s115 + $0x838] sm:$0xff]
        %v405 = vld [vmem:[%s115 + $0x840] sm:$0xff]
        %v406 = vld [vmem:[%s115 + $0x848] sm:$0xff]
        %v407 = vld [vmem:[%s115 + $0x850] sm:$0xff]
        %v408 = vld [vmem:[%s115 + $0x858] sm:$0xff]
        %v409 = vld [vmem:[%s115 + $0x860] sm:$0xff]
        %v410 = vld [vmem:[%s115 + $0x868] sm:$0xff]
        %v411 = vld [vmem:[%s115 + $0x870] sm:$0xff]
        %v412 = vld [vmem:[%s115 + $0x878] sm:$0xff]
        %v413 = vld [vmem:[%s115 + $0x880] sm:$0xff]
        %v414 = vld [vmem:[%s115 + $0x888] sm:$0xff]
        %v415 = vld [vmem:[%s115 + $0x890] sm:$0xff]
        %v416 = vld [vmem:[%s115 + $0x898] sm:$0xff]
        %v417 = vld [vmem:[%s115 + $0x8a0] sm:$0xff]
        %v418 = vld [vmem:[%s115 + $0x8a8] sm:$0xff]
        %v419 = vld [vmem:[%s115 + $0x8b0] sm:$0xff]
        %v420 = vld [vmem:[%s115 + $0x8b8] sm:$0xff]
        %v421 = vld [vmem:[%s115 + $0x8c0] sm:$0xff]
        %v422 = vld [vmem:[%s115 + $0x8c8] sm:$0xff]
        %v423 = vld [vmem:[%s115 + $0x8d0] sm:$0xff]
        %v424 = vld [vmem:[%s115 + $0x8d8] sm:$0xff]
        %v425 = vld [vmem:[%s115 + $0x8e0] sm:$0xff]
        %v426 = vld [vmem:[%s115 + $0x8e8] sm:$0xff]
        %v427 = vld [vmem:[%s115 + $0x8f0] sm:$0xff]
        %v428 = vld [vmem:[%s115 + $0x8f8] sm:$0xff]
        %v429 = vld [vmem:[%s115 + $0x900] sm:$0xff]
        %v430 = vld [vmem:[%s115 + $0x908] sm:$0xff]
        %v431 = vld [vmem:[%s115 + $0x910] sm:$0xff]
        %v432 = vld [vmem:[%s115 + $0x918] sm:$0xff]
        %v433 = vld [vmem:[%s115 + $0x920] sm:$0xff]
        %v434 = vld [vmem:[%s115 + $0x928] sm:$0xff]
        %v435 = vld [vmem:[%s115 + $0x930] sm:$0xff]
        %v436 = vld [vmem:[%s115 + $0x938] sm:$0xff]
        %v437 = vld [vmem:[%s115 + $0x940] sm:$0xff]
        %v438 = vld [vmem:[%s115 + $0x948] sm:$0xff]
        %v439 = vld [vmem:[%s115 + $0x950] sm:$0xff]
        %v440 = vld [vmem:[%s115 + $0x958] sm:$0xff]
        %v441 = vld [vmem:[%s115 + $0x960] sm:$0xff]
        %v442 = vld [vmem:[%s115 + $0x968] sm:$0xff]
        %v443 = vld [vmem:[%s115 + $0x970] sm:$0xff]
        %v444 = vld [vmem:[%s115 + $0x978] sm:$0xff]
        %v445 = vld [vmem:[%s115 + $0x980] sm:$0xff]
        %v446 = vld [vmem:[%s115 + $0x988] sm:$0xff]
        %v447 = vld [vmem:[%s115 + $0x990] sm:$0xff]
        %v448 = vld [vmem:[%s115 + $0x998] sm:$0xff]
        %v449 = vld [vmem:[%s115 + $0x9a0] sm:$0xff]
        %v450 = vld [vmem:[%s115 + $0x9a8] sm:$0xff]
        %v451 = vld [vmem:[%s115 + $0x9b0] sm:$0xff]
        %v452 = vld [vmem:[%s115 + $0x9b8] sm:$0xff]
        %v453 = vld [vmem:[%s115 + $0x9c0] sm:$0xff]
        %v454 = vld [vmem:[%s115 + $0x9c8] sm:$0xff]
        %v455 = vld [vmem:[%s115 + $0x9d0] sm:$0xff]
        %v456 = vld [vmem:[%s115 + $0x9d8] sm:$0xff]
        %v457 = vld [vmem:[%s115 + $0x9e0] sm:$0xff]
        %v458 = vld [vmem:[%s115 + $0x9e8] sm:$0xff]
        %v459 = vld [vmem:[%s115 + $0x9f0] sm:$0xff]
        %v460 = vld [vmem:[%s115 + $0x9f8] sm:$0xff]
        %v461 = vld [vmem:[%s115 + $0xa00] sm:$0xff]
        %v462 = vld [vmem:[%s115 + $0xa08] sm:$0xff]
        %v463 = vld [vmem:[%s115 + $0xa10] sm:$0xff]
        %v464 = vld [vmem:[%s115 + $0xa18] sm:$0xff]
        %v465 = vld [vmem:[%s115 + $0xa20] sm:$0xff]
        %v466 = vld [vmem:[%s115 + $0xa28] sm:$0xff]
        %v467 = vld [vmem:[%s115 + $0xa30] sm:$0xff]
        %v468 = vld [vmem:[%s115 + $0xa38] sm:$0xff]
        %v469 = vld [vmem:[%s115 + $0xa40] sm:$0xff]
        %v470 = vld [vmem:[%s115 + $0xa48] sm:$0xff]
        %v471 = vld [vmem:[%s115 + $0xa50] sm:$0xff]
        %v472 = vld [vmem:[%s115 + $0xa58] sm:$0xff]
        %v473 = vld [vmem:[%s115 + $0xa60] sm:$0xff]
        %v474 = vld [vmem:[%s115 + $0xa68] sm:$0xff]
        %v475 = vld [vmem:[%s115 + $0xa70] sm:$0xff]
        %v476 = vld [vmem:[%s115 + $0xa78] sm:$0xff]
        %v477 = vld [vmem:[%s115 + $0xa80] sm:$0xff]
        %v478 = vld [vmem:[%s115 + $0xa88] sm:$0xff]
        %v479 = vld [vmem:[%s115 + $0xa90] sm:$0xff]
        %v480 = vld [vmem:[%s115 + $0xa98] sm:$0xff]
        %v481 = vld [vmem:[%s115 + $0xaa0] sm:$0xff]
        %v482 = vld [vmem:[%s115 + $0xaa8] sm:$0xff]
        %v483 = vld [vmem:[%s115 + $0xab0] sm:$0xff]
        %v484 = vld [vmem:[%s115 + $0xab8] sm:$0xff]
        %v485 = vld [vmem:[%s115 + $0xac0] sm:$0xff]
        %v486 = vld [vmem:[%s115 + $0xac8] sm:$0xff]
        %v487 = vld [vmem:[%s115 + $0xad0] sm:$0xff]
        %v488 = vld [vmem:[%s115 + $0xad8] sm:$0xff]
        %v489 = vld [vmem:[%s115 + $0xae0] sm:$0xff]
        %v490 = vld [vmem:[%s115 + $0xae8] sm:$0xff]
        %v491 = vld [vmem:[%s115 + $0xaf0] sm:$0xff]
        %v492 = vld [vmem:[%s115 + $0xaf8] sm:$0xff]
        %v493 = vld [vmem:[%s115 + $0xb00] sm:$0xff]
        %v494 = vld [vmem:[%s115 + $0xb08] sm:$0xff]
        %v495 = vld [vmem:[%s115 + $0xb10] sm:$0xff]
        %v496 = vld [vmem:[%s115 + $0xb18] sm:$0xff]
        %v497 = vld [vmem:[%s115 + $0xb20] sm:$0xff]
        %v498 = vld [vmem:[%s115 + $0xb28] sm:$0xff]
        %v499 = vld [vmem:[%s115 + $0xb30] sm:$0xff]
        %v500 = vld [vmem:[%s115 + $0xb38] sm:$0xff]
        %v501 = vld [vmem:[%s115 + $0xb40] sm:$0xff]
        %v502 = vld [vmem:[%s115 + $0xb48] sm:$0xff]
        %v503 = vld [vmem:[%s115 + $0xb50] sm:$0xff]
        %v504 = vld [vmem:[%s115 + $0xb58] sm:$0xff]
        %v505 = vld [vmem:[%s115 + $0xb60] sm:$0xff]
        %v506 = vld [vmem:[%s115 + $0xb68] sm:$0xff]
        %v507 = vld [vmem:[%s115 + $0xb70] sm:$0xff]
        %v508 = vld [vmem:[%s115 + $0xb78] sm:$0xff]
        %v509 = vld [vmem:[%s115 + $0xb80] sm:$0xff]
        %v510 = vld [vmem:[%s115 + $0xb88] sm:$0xff]
        %v511 = vld [vmem:[%s115 + $0xb90] sm:$0xff]
        %v512 = vld [vmem:[%s115 + $0xb98] sm:$0xff]
        %v513 = vld [vmem:[%s115 + $0xba0] sm:$0xff]
        %v514 = vld [vmem:[%s115 + $0xba8] sm:$0xff]
        %v515 = vld [vmem:[%s115 + $0xbb0] sm:$0xff]
        %v516 = vld [vmem:[%s115 + $0xbb8] sm:$0xff]
        %v517 = vld [vmem:[%s115 + $0xbc0] sm:$0xff]
        %v518 = vld [vmem:[%s115 + $0xbc8] sm:$0xff]
        %v519 = vld [vmem:[%s115 + $0xbd0] sm:$0xff]
        %v520 = vld [vmem:[%s115 + $0xbd8] sm:$0xff]
        %v521 = vld [vmem:[%s115 + $0xbe0] sm:$0xff]
        %v522 = vld [vmem:[%s115 + $0xbe8] sm:$0xff]
        %v523 = vld [vmem:[%s115 + $0xbf0] sm:$0xff]
        %v524 = vld [vmem:[%s115 + $0xbf8] sm:$0xff]
        %v525 = vld [vmem:[%s115 + $0xc00] sm:$0xff]
        %v526 = vld [vmem:[%s115 + $0xc08] sm:$0xff]
        %v527 = vld [vmem:[%s115 + $0xc10] sm:$0xff]
        %v528 = vld [vmem:[%s115 + $0xc18] sm:$0xff]
        %v529 = vld [vmem:[%s115 + $0xc20] sm:$0xff]
        %v530 = vld [vmem:[%s115 + $0xc28] sm:$0xff]
        %v531 = vld [vmem:[%s115 + $0xc30] sm:$0xff]
        %v532 = vld [vmem:[%s115 + $0xc38] sm:$0xff]
        %v533 = vld [vmem:[%s115 + $0xc40] sm:$0xff]
        %v534 = vld [vmem:[%s115 + $0xc48] sm:$0xff]
        %v535 = vld [vmem:[%s115 + $0xc50] sm:$0xff]
        %v536 = vld [vmem:[%s115 + $0xc58] sm:$0xff]
        %v537 = vld [vmem:[%s115 + $0xc60] sm:$0xff]
        %v538 = vld [vmem:[%s115 + $0xc68] sm:$0xff]
        %v539 = vld [vmem:[%s115 + $0xc70] sm:$0xff]
        %v540 = vld [vmem:[%s115 + $0xc78] sm:$0xff]
        %v541 = vld [vmem:[%s115 + $0xc80] sm:$0xff]
        %v542 = vld [vmem:[%s115 + $0xc88] sm:$0xff]
        %v543 = vld [vmem:[%s115 + $0xc90] sm:$0xff]
        %v544 = vld [vmem:[%s115 + $0xc98] sm:$0xff]
        %v545 = vld [vmem:[%s115 + $0xca0] sm:$0xff]
        %v546 = vld [vmem:[%s115 + $0xca8] sm:$0xff]
        %v547 = vld [vmem:[%s115 + $0xcb0] sm:$0xff]
        %v548 = vld [vmem:[%s115 + $0xcb8] sm:$0xff]
        %v549 = vld [vmem:[%s115 + $0xcc0] sm:$0xff]
        %v550 = vld [vmem:[%s115 + $0xcc8] sm:$0xff]
        %v551 = vld [vmem:[%s115 + $0xcd0] sm:$0xff]
        %v552 = vld [vmem:[%s115 + $0xcd8] sm:$0xff]
        %v553 = vld [vmem:[%s115 + $0xce0] sm:$0xff]
        %v554 = vld [vmem:[%s115 + $0xce8] sm:$0xff]
        %v555 = vld [vmem:[%s115 + $0xcf0] sm:$0xff]
        %v556 = vld [vmem:[%s115 + $0xcf8] sm:$0xff]
        %v557 = vld [vmem:[%s115 + $0xd00] sm:$0xff]
        %v558 = vld [vmem:[%s115 + $0xd08] sm:$0xff]
        %v559 = vld [vmem:[%s115 + $0xd10] sm:$0xff]
        %v560 = vld [vmem:[%s115 + $0xd18] sm:$0xff]
        %v561 = vld [vmem:[%s115 + $0xd20] sm:$0xff]
        %v562 = vld [vmem:[%s115 + $0xd28] sm:$0xff]
        %v563 = vld [vmem:[%s115 + $0xd30] sm:$0xff]
        %v564 = vld [vmem:[%s115 + $0xd38] sm:$0xff]
        %v565 = vld [vmem:[%s115 + $0xd40] sm:$0xff]
        %v566 = vld [vmem:[%s115 + $0xd48] sm:$0xff]
        %v567 = vld [vmem:[%s115 + $0xd50] sm:$0xff]
        %v568 = vld [vmem:[%s115 + $0xd58] sm:$0xff]
        %v569 = vld [vmem:[%s115 + $0xd60] sm:$0xff]
        %v570 = vld [vmem:[%s115 + $0xd68] sm:$0xff]
        %v571 = vld [vmem:[%s115 + $0xd70] sm:$0xff]
        %v572 = vld [vmem:[%s115 + $0xd78] sm:$0xff]
        %v573 = vld [vmem:[%s115 + $0xd80] sm:$0xff]
        %v574 = vld [vmem:[%s115 + $0xd88] sm:$0xff]
        %v575 = vld [vmem:[%s115 + $0xd90] sm:$0xff]
        %v576 = vld [vmem:[%s115 + $0xd98] sm:$0xff]
        %v577 = vld [vmem:[%s115 + $0xda0] sm:$0xff]
        %v578 = vld [vmem:[%s115 + $0xda8] sm:$0xff]
        %v579 = vld [vmem:[%s115 + $0xdb0] sm:$0xff]
        %v580 = vld [vmem:[%s115 + $0xdb8] sm:$0xff]
        %v581 = vld [vmem:[%s115 + $0xdc0] sm:$0xff]
        %v582 = vld [vmem:[%s115 + $0xdc8] sm:$0xff]
        %v583 = vld [vmem:[%s115 + $0xdd0] sm:$0xff]
        %v584 = vld [vmem:[%s115 + $0xdd8] sm:$0xff]
        %v585 = vld [vmem:[%s115 + $0xde0] sm:$0xff]
        %v586 = vld [vmem:[%s115 + $0xde8] sm:$0xff]
        %v587 = vld [vmem:[%s115 + $0xdf0] sm:$0xff]
        %v588 = vld [vmem:[%s115 + $0xdf8] sm:$0xff]
        %v589 = vld [vmem:[%s115 + $0xe00] sm:$0xff]
        %v590 = vld [vmem:[%s115 + $0xe08] sm:$0xff]
        %v591 = vld [vmem:[%s115 + $0xe10] sm:$0xff]
        %v592 = vld [vmem:[%s115 + $0xe18] sm:$0xff]
        %v593 = vld [vmem:[%s115 + $0xe20] sm:$0xff]
        %v594 = vld [vmem:[%s115 + $0xe28] sm:$0xff]
        %v595 = vld [vmem:[%s115 + $0xe30] sm:$0xff]
        %v596 = vld [vmem:[%s115 + $0xe38] sm:$0xff]
        %v597 = vld [vmem:[%s115 + $0xe40] sm:$0xff]
        %v598 = vld [vmem:[%s115 + $0xe48] sm:$0xff]
        %v599 = vld [vmem:[%s115 + $0xe50] sm:$0xff]
        %v600 = vld [vmem:[%s115 + $0xe58] sm:$0xff]
        %v601 = vld [vmem:[%s115 + $0xe60] sm:$0xff]
        %v602 = vld [vmem:[%s115 + $0xe68] sm:$0xff]
        %v603 = vld [vmem:[%s115 + $0xe70] sm:$0xff]
        %v604 = vld [vmem:[%s115 + $0xe78] sm:$0xff]
        %v605 = vld [vmem:[%s115 + $0xe80] sm:$0xff]
        %v606 = vld [vmem:[%s115 + $0xe88] sm:$0xff]
        %v607 = vld [vmem:[%s115 + $0xe90] sm:$0xff]
        %v608 = vld [vmem:[%s115 + $0xe98] sm:$0xff]
        %v609 = vld [vmem:[%s115 + $0xea0] sm:$0xff]
        %v610 = vld [vmem:[%s115 + $0xea8] sm:$0xff]
        %v611 = vld [vmem:[%s115 + $0xeb0] sm:$0xff]
        %v612 = vld [vmem:[%s115 + $0xeb8] sm:$0xff]
        %v613 = vld [vmem:[%s115 + $0xec0] sm:$0xff]
        %v614 = vld [vmem:[%s115 + $0xec8] sm:$0xff]
        %v615 = vld [vmem:[%s115 + $0xed0] sm:$0xff]
        %v616 = vld [vmem:[%s115 + $0xed8] sm:$0xff]
        %v617 = vld [vmem:[%s115 + $0xee0] sm:$0xff]
        %v618 = vld [vmem:[%s115 + $0xee8] sm:$0xff]
        %v619 = vld [vmem:[%s115 + $0xef0] sm:$0xff]
        %v620 = vld [vmem:[%s115 + $0xef8] sm:$0xff]
        %v621 = vld [vmem:[%s115 + $0xf00] sm:$0xff]
        %v622 = vld [vmem:[%s115 + $0xf08] sm:$0xff]
        %v623 = vld [vmem:[%s115 + $0xf10] sm:$0xff]
        %v624 = vld [vmem:[%s115 + $0xf18] sm:$0xff]
        %v625 = vld [vmem:[%s115 + $0xf20] sm:$0xff]
        %v626 = vld [vmem:[%s115 + $0xf28] sm:$0xff]
        %v627 = vld [vmem:[%s115 + $0xf30] sm:$0xff]
        %v628 = vld [vmem:[%s115 + $0xf38] sm:$0xff]
        %v629 = vld [vmem:[%s115 + $0xf40] sm:$0xff]
        %v630 = vld [vmem:[%s115 + $0xf48] sm:$0xff]
        %v631 = vld [vmem:[%s115 + $0xf50] sm:$0xff]
        %v632 = vld [vmem:[%s115 + $0xf58] sm:$0xff]
        %v633 = vld [vmem:[%s115 + $0xf60] sm:$0xff]
        %v634 = vld [vmem:[%s115 + $0xf68] sm:$0xff]
        %v635 = vld [vmem:[%s115 + $0xf70] sm:$0xff]
        %v636 = vld [vmem:[%s115 + $0xf78] sm:$0xff]
        %v637 = vld [vmem:[%s115 + $0xf80] sm:$0xff]
        %v638 = vld [vmem:[%s115 + $0xf88] sm:$0xff]
        %v639 = vld [vmem:[%s115 + $0xf90] sm:$0xff]
        %v640 = vld [vmem:[%s115 + $0xf98] sm:$0xff]
        %v641 = vld [vmem:[%s115 + $0xfa0] sm:$0xff]
        %v642 = vld [vmem:[%s115 + $0xfa8] sm:$0xff]
        %v643 = vld [vmem:[%s115 + $0xfb0] sm:$0xff]
        %v644 = vld [vmem:[%s115 + $0xfb8] sm:$0xff]
        %v645 = vld [vmem:[%s115 + $0xfc0] sm:$0xff]
        %v646 = vld [vmem:[%s115 + $0xfc8] sm:$0xff]
        %v647 = vld [vmem:[%s115 + $0xfd0] sm:$0xff]
        %v648 = vld [vmem:[%s115 + $0xfd8] sm:$0xff]
        %v649 = vld [vmem:[%s115 + $0xfe0] sm:$0xff]
        %v650 = vld [vmem:[%s115 + $0xfe8] sm:$0xff]
        %v651 = vld [vmem:[%s115 + $0xff0] sm:$0xff]
        %v652 = vld [vmem:[%s115 + $0xff8] sm:$0xff]
        %v653 = vld [vmem:[%s115 + $0x1000] sm:$0xff]
        %v654 = vld [vmem:[%s115 + $0x1008] sm:$0xff]
        %v655 = vld [vmem:[%s115 + $0x1010] sm:$0xff]
        %v656 = vld [vmem:[%s115 + $0x1018] sm:$0xff]
        %v657 = vld [vmem:[%s115 + $0x1020] sm:$0xff]
        %v658 = vld [vmem:[%s115 + $0x1028] sm:$0xff]
        %v659 = vld [vmem:[%s115 + $0x1030] sm:$0xff]
        %v660 = vld [vmem:[%s115 + $0x1038] sm:$0xff]
        %v661 = vld [vmem:[%s115 + $0x1040] sm:$0xff]
        %v662 = vld [vmem:[%s115 + $0x1048] sm:$0xff]
        %v663 = vld [vmem:[%s115 + $0x1050] sm:$0xff]
        %v664 = vld [vmem:[%s115 + $0x1058] sm:$0xff]
        %v665 = vld [vmem:[%s115 + $0x1060] sm:$0xff]
        %v666 = vld [vmem:[%s115 + $0x1068] sm:$0xff]
        %v667 = vld [vmem:[%s115 + $0x1070] sm:$0xff]
        %v668 = vld [vmem:[%s115 + $0x1078] sm:$0xff]
        %v669 = vld [vmem:[%s115 + $0x1080] sm:$0xff]
        %v670 = vld [vmem:[%s115 + $0x1088] sm:$0xff]
        %v671 = vld [vmem:[%s115 + $0x1090] sm:$0xff]
        %v672 = vld [vmem:[%s115 + $0x1098] sm:$0xff]
        %v673 = vld [vmem:[%s115 + $0x10a0] sm:$0xff]
        %v674 = vld [vmem:[%s115 + $0x10a8] sm:$0xff]
        %v675 = vld [vmem:[%s115 + $0x10b0] sm:$0xff]
        %v676 = vld [vmem:[%s115 + $0x10b8] sm:$0xff]
        %v677 = vld [vmem:[%s115 + $0x10c0] sm:$0xff]
        %v678 = vld [vmem:[%s115 + $0x10c8] sm:$0xff]
        %v679 = vld [vmem:[%s115 + $0x10d0] sm:$0xff]
        %v680 = vld [vmem:[%s115 + $0x10d8] sm:$0xff]
        %v681 = vld [vmem:[%s115 + $0x10e0] sm:$0xff]
        %v682 = vld [vmem:[%s115 + $0x10e8] sm:$0xff]
        %v683 = vld [vmem:[%s115 + $0x10f0] sm:$0xff]
        %v684 = vld [vmem:[%s115 + $0x10f8] sm:$0xff]
        %v685 = vld [vmem:[%s115 + $0x1100] sm:$0xff]
        %v686 = vld [vmem:[%s115 + $0x1108] sm:$0xff]
        %v687 = vld [vmem:[%s115 + $0x1110] sm:$0xff]
        %v688 = vld [vmem:[%s115 + $0x1118] sm:$0xff]
        %v689 = vld [vmem:[%s115 + $0x1120] sm:$0xff]
        %v690 = vld [vmem:[%s115 + $0x1128] sm:$0xff]
        %v691 = vld [vmem:[%s115 + $0x1130] sm:$0xff]
        %v692 = vld [vmem:[%s115 + $0x1138] sm:$0xff]
        %v693 = vld [vmem:[%s115 + $0x1140] sm:$0xff]
        %v694 = vld [vmem:[%s115 + $0x1148] sm:$0xff]
        %v695 = vld [vmem:[%s115 + $0x1150] sm:$0xff]
        %v696 = vld [vmem:[%s115 + $0x1158] sm:$0xff]
        %v697 = vld [vmem:[%s115 + $0x1160] sm:$0xff]
        %v698 = vld [vmem:[%s115 + $0x1168] sm:$0xff]
        %v699 = vld [vmem:[%s115 + $0x1170] sm:$0xff]
        %v700 = vld [vmem:[%s115 + $0x1178] sm:$0xff]
        %v701 = vld [vmem:[%s115 + $0x1180] sm:$0xff]
        %v702 = vld [vmem:[%s115 + $0x1188] sm:$0xff]
        %v703 = vld [vmem:[%s115 + $0x1190] sm:$0xff]
        %v704 = vld [vmem:[%s115 + $0x1198] sm:$0xff]
        %v705 = vld [vmem:[%s115 + $0x11a0] sm:$0xff]
        %v706 = vld [vmem:[%s115 + $0x11a8] sm:$0xff]
        %v707 = vld [vmem:[%s115 + $0x11b0] sm:$0xff]
        %v708 = vld [vmem:[%s115 + $0x11b8] sm:$0xff]
        %v709 = vld [vmem:[%s115 + $0x11c0] sm:$0xff]
        %v710 = vld [vmem:[%s115 + $0x11c8] sm:$0xff]
        %v711 = vld [vmem:[%s115 + $0x11d0] sm:$0xff]
        %v712 = vld [vmem:[%s115 + $0x11d8] sm:$0xff]
        %v713 = vld [vmem:[%s115 + $0x11e0] sm:$0xff]
        %v714 = vld [vmem:[%s115 + $0x11e8] sm:$0xff]
        %v715 = vld [vmem:[%s115 + $0x11f0] sm:$0xff]
        %v716 = vld [vmem:[%s115 + $0x11f8] sm:$0xff]
        %v717 = vld [vmem:[%s115 + $0x1200] sm:$0xff]
        %v718 = vld [vmem:[%s115 + $0x1208] sm:$0xff]
        %v719 = vld [vmem:[%s115 + $0x1210] sm:$0xff]
        %v720 = vld [vmem:[%s115 + $0x1218] sm:$0xff]
        %v721 = vld [vmem:[%s115 + $0x1220] sm:$0xff]
        %v722 = vld [vmem:[%s115 + $0x1228] sm:$0xff]
        %v723 = vld [vmem:[%s115 + $0x1230] sm:$0xff]
        %v724 = vld [vmem:[%s115 + $0x1238] sm:$0xff]
        %v725 = vld [vmem:[%s115 + $0x1240] sm:$0xff]
        %v726 = vld [vmem:[%s115 + $0x1248] sm:$0xff]
        %v727 = vld [vmem:[%s115 + $0x1250] sm:$0xff]
        %v728 = vld [vmem:[%s115 + $0x1258] sm:$0xff]
        %v729 = vld [vmem:[%s115 + $0x1260] sm:$0xff]
        %v730 = vld [vmem:[%s115 + $0x1268] sm:$0xff]
        %v731 = vld [vmem:[%s115 + $0x1270] sm:$0xff]
        %v732 = vld [vmem:[%s115 + $0x1278] sm:$0xff]
        %v733 = vld [vmem:[%s115 + $0x1280] sm:$0xff]
        %v734 = vld [vmem:[%s115 + $0x1288] sm:$0xff]
        %v735 = vld [vmem:[%s115 + $0x1290] sm:$0xff]
        %v736 = vld [vmem:[%s115 + $0x1298] sm:$0xff]
        %v737 = vld [vmem:[%s115 + $0x12a0] sm:$0xff]
        %v738 = vld [vmem:[%s115 + $0x12a8] sm:$0xff]
        %v739 = vld [vmem:[%s115 + $0x12b0] sm:$0xff]
        %v740 = vld [vmem:[%s115 + $0x12b8] sm:$0xff]
        %v741 = vld [vmem:[%s115 + $0x12c0] sm:$0xff]
        %v742 = vld [vmem:[%s115 + $0x12c8] sm:$0xff]
        %v743 = vld [vmem:[%s115 + $0x12d0] sm:$0xff]
        %v744 = vld [vmem:[%s115 + $0x12d8] sm:$0xff]
        %v745 = vld [vmem:[%s115 + $0x12e0] sm:$0xff]
        %v746 = vld [vmem:[%s115 + $0x12e8] sm:$0xff]
        %v747 = vld [vmem:[%s115 + $0x12f0] sm:$0xff]
        %v748 = vld [vmem:[%s115 + $0x12f8] sm:$0xff]
        %v749 = vld [vmem:[%s115 + $0x1300] sm:$0xff]
        %v750 = vld [vmem:[%s115 + $0x1308] sm:$0xff]
        %v751 = vld [vmem:[%s115 + $0x1310] sm:$0xff]
        %v752 = vld [vmem:[%s115 + $0x1318] sm:$0xff]
        %v753 = vld [vmem:[%s115 + $0x1320] sm:$0xff]
        %v754 = vld [vmem:[%s115 + $0x1328] sm:$0xff]
        %v755 = vld [vmem:[%s115 + $0x1330] sm:$0xff]
        %v756 = vld [vmem:[%s115 + $0x1338] sm:$0xff]
        %v757 = vld [vmem:[%s115 + $0x1340] sm:$0xff]
        %v758 = vld [vmem:[%s115 + $0x1348] sm:$0xff]
        %v759 = vld [vmem:[%s115 + $0x1350] sm:$0xff]
        %v760 = vld [vmem:[%s115 + $0x1358] sm:$0xff]
        %v761 = vld [vmem:[%s115 + $0x1360] sm:$0xff]
        %v762 = vld [vmem:[%s115 + $0x1368] sm:$0xff]
        %v763 = vld [vmem:[%s115 + $0x1370] sm:$0xff]
        %v764 = vld [vmem:[%s115 + $0x1378] sm:$0xff]
        %v765 = vld [vmem:[%s115 + $0x1380] sm:$0xff]
        %v766 = vld [vmem:[%s115 + $0x1388] sm:$0xff]
        %v767 = vld [vmem:[%s115 + $0x1390] sm:$0xff]
        %v768 = vld [vmem:[%s115 + $0x1398] sm:$0xff]
        %v769 = vld [vmem:[%s115 + $0x13a0] sm:$0xff]
        %v770 = vld [vmem:[%s115 + $0x13a8] sm:$0xff]
        %v771 = vld [vmem:[%s115 + $0x13b0] sm:$0xff]
        %v772 = vld [vmem:[%s115 + $0x13b8] sm:$0xff]
        %v773 = vld [vmem:[%s115 + $0x13c0] sm:$0xff]
        %v774 = vld [vmem:[%s115 + $0x13c8] sm:$0xff]
        %v775 = vld [vmem:[%s115 + $0x13d0] sm:$0xff]
        %v776 = vld [vmem:[%s115 + $0x13d8] sm:$0xff]
        %v777 = vld [vmem:[%s115 + $0x13e0] sm:$0xff]
        %v778 = vld [vmem:[%s115 + $0x13e8] sm:$0xff]
        %v779 = vld [vmem:[%s115 + $0x13f0] sm:$0xff]
        %v780 = vld [vmem:[%s115 + $0x13f8] sm:$0xff]
        %v781 = vld [vmem:[%s115 + $0x1400] sm:$0xff]
        %v782 = vld [vmem:[%s115 + $0x1408] sm:$0xff]
        %v783 = vld [vmem:[%s115 + $0x1410] sm:$0xff]
        %v784 = vld [vmem:[%s115 + $0x1418] sm:$0xff]
        %v785 = vld [vmem:[%s115 + $0x1420] sm:$0xff]
        %v786 = vld [vmem:[%s115 + $0x1428] sm:$0xff]
        %v787 = vld [vmem:[%s115 + $0x1430] sm:$0xff]
        %v788 = vld [vmem:[%s115 + $0x1438] sm:$0xff]
        %v789 = vld [vmem:[%s115 + $0x1440] sm:$0xff]
        %v790 = vld [vmem:[%s115 + $0x1448] sm:$0xff]
        %v791 = vld [vmem:[%s115 + $0x1450] sm:$0xff]
        %v792 = vld [vmem:[%s115 + $0x1458] sm:$0xff]
        %v793 = vld [vmem:[%s115 + $0x1460] sm:$0xff]
        %v794 = vld [vmem:[%s115 + $0x1468] sm:$0xff]
        %v795 = vld [vmem:[%s115 + $0x1470] sm:$0xff]
        %v796 = vld [vmem:[%s115 + $0x1478] sm:$0xff]
        %v797 = vld [vmem:[%s115 + $0x1480] sm:$0xff]
        %v798 = vld [vmem:[%s115 + $0x1488] sm:$0xff]
        %v799 = vld [vmem:[%s115 + $0x1490] sm:$0xff]
        %v800 = vld [vmem:[%s115 + $0x1498] sm:$0xff]
        %v801 = vld [vmem:[%s115 + $0x14a0] sm:$0xff]
        %v802 = vld [vmem:[%s115 + $0x14a8] sm:$0xff]
        %v803 = vld [vmem:[%s115 + $0x14b0] sm:$0xff]
        %v804 = vld [vmem:[%s115 + $0x14b8] sm:$0xff]
        %v805 = vld [vmem:[%s115 + $0x14c0] sm:$0xff]
        %v806 = vld [vmem:[%s115 + $0x14c8] sm:$0xff]
        %v807 = vld [vmem:[%s115 + $0x14d0] sm:$0xff]
        %v808 = vld [vmem:[%s115 + $0x14d8] sm:$0xff]
        %v809 = vld [vmem:[%s115 + $0x14e0] sm:$0xff]
        %v810 = vld [vmem:[%s115 + $0x14e8] sm:$0xff]
        %v811 = vld [vmem:[%s115 + $0x14f0] sm:$0xff]
        %v812 = vld [vmem:[%s115 + $0x14f8] sm:$0xff]
        %v813 = vld [vmem:[%s115 + $0x1500] sm:$0xff]
        %v814 = vld [vmem:[%s115 + $0x1508] sm:$0xff]
        %v815 = vld [vmem:[%s115 + $0x1510] sm:$0xff]
        %v816 = vld [vmem:[%s115 + $0x1518] sm:$0xff]
        %v817 = vld [vmem:[%s115 + $0x1520] sm:$0xff]
        %v818 = vld [vmem:[%s115 + $0x1528] sm:$0xff]
        %v819 = vld [vmem:[%s115 + $0x1530] sm:$0xff]
        %v820 = vld [vmem:[%s115 + $0x1538] sm:$0xff]
        %v821 = vld [vmem:[%s115 + $0x1540] sm:$0xff]
        %v822 = vld [vmem:[%s115 + $0x1548] sm:$0xff]
        %v823 = vld [vmem:[%s115 + $0x1550] sm:$0xff]
        %v824 = vld [vmem:[%s115 + $0x1558] sm:$0xff]
        %v825 = vld [vmem:[%s115 + $0x1560] sm:$0xff]
        %v826 = vld [vmem:[%s115 + $0x1568] sm:$0xff]
        %v827 = vld [vmem:[%s115 + $0x1570] sm:$0xff]
        %v828 = vld [vmem:[%s115 + $0x1578] sm:$0xff]
        %v829 = vld [vmem:[%s115 + $0x1580] sm:$0xff]
        %v830 = vld [vmem:[%s115 + $0x1588] sm:$0xff]
        %v831 = vld [vmem:[%s115 + $0x1590] sm:$0xff]
        %v832 = vld [vmem:[%s115 + $0x1598] sm:$0xff]
        %v833 = vld [vmem:[%s115 + $0x15a0] sm:$0xff]
        %v834 = vld [vmem:[%s115 + $0x15a8] sm:$0xff]
        %v835 = vld [vmem:[%s115 + $0x15b0] sm:$0xff]
        %v836 = vld [vmem:[%s115 + $0x15b8] sm:$0xff]
        %v837 = vld [vmem:[%s115 + $0x15c0] sm:$0xff]
        %v838 = vld [vmem:[%s115 + $0x15c8] sm:$0xff]
        %v839 = vld [vmem:[%s115 + $0x15d0] sm:$0xff]
        %v840 = vld [vmem:[%s115 + $0x15d8] sm:$0xff]
        %v841 = vld [vmem:[%s115 + $0x15e0] sm:$0xff]
        %v842 = vld [vmem:[%s115 + $0x15e8] sm:$0xff]
        %v843 = vld [vmem:[%s115 + $0x15f0] sm:$0xff]
        %v844 = vld [vmem:[%s115 + $0x15f8] sm:$0xff]
        %v845 = vld [vmem:[%s115 + $0x1600] sm:$0xff]
        %v846 = vld [vmem:[%s115 + $0x1608] sm:$0xff]
        %v847 = vld [vmem:[%s115 + $0x1610] sm:$0xff]
        %v848 = vld [vmem:[%s115 + $0x1618] sm:$0xff]
        %v849 = vld [vmem:[%s115 + $0x1620] sm:$0xff]
        %v850 = vld [vmem:[%s115 + $0x1628] sm:$0xff]
        %v851 = vld [vmem:[%s115 + $0x1630] sm:$0xff]
        %v852 = vld [vmem:[%s115 + $0x1638] sm:$0xff]
        %v853 = vld [vmem:[%s115 + $0x1640] sm:$0xff]
        %v854 = vld [vmem:[%s115 + $0x1648] sm:$0xff]
        %v855 = vld [vmem:[%s115 + $0x1650] sm:$0xff]
        %v856 = vld [vmem:[%s115 + $0x1658] sm:$0xff]
        %v857 = vld [vmem:[%s115 + $0x1660] sm:$0xff]
        %v858 = vld [vmem:[%s115 + $0x1668] sm:$0xff]
        %v859 = vld [vmem:[%s115 + $0x1670] sm:$0xff]
        %v860 = vld [vmem:[%s115 + $0x1678] sm:$0xff]
        %v861 = vld [vmem:[%s115 + $0x1680] sm:$0xff]
        %v862 = vld [vmem:[%s115 + $0x1688] sm:$0xff]
        %v863 = vld [vmem:[%s115 + $0x1690] sm:$0xff]
        %v864 = vld [vmem:[%s115 + $0x1698] sm:$0xff]
        %v865 = vld [vmem:[%s115 + $0x16a0] sm:$0xff]
        %v866 = vld [vmem:[%s115 + $0x16a8] sm:$0xff]
        %v867 = vld [vmem:[%s115 + $0x16b0] sm:$0xff]
        %v868 = vld [vmem:[%s115 + $0x16b8] sm:$0xff]
        %v869 = vld [vmem:[%s115 + $0x16c0] sm:$0xff]
        %v870 = vld [vmem:[%s115 + $0x16c8] sm:$0xff]
        %v871 = vld [vmem:[%s115 + $0x16d0] sm:$0xff]
        %v872 = vld [vmem:[%s115 + $0x16d8] sm:$0xff]
        %v873 = vld [vmem:[%s115 + $0x16e0] sm:$0xff]
        %v874 = vld [vmem:[%s115 + $0x16e8] sm:$0xff]
        %v875 = vld [vmem:[%s115 + $0x16f0] sm:$0xff]
        %v876 = vld [vmem:[%s115 + $0x16f8] sm:$0xff]
        %v877 = vld [vmem:[%s115 + $0x1700] sm:$0xff]
        %v878 = vld [vmem:[%s115 + $0x1708] sm:$0xff]
        %v879 = vld [vmem:[%s115 + $0x1710] sm:$0xff]
        %v880 = vld [vmem:[%s115 + $0x1718] sm:$0xff]
        %v881 = vld [vmem:[%s115 + $0x1720] sm:$0xff]
        %v882 = vld [vmem:[%s115 + $0x1728] sm:$0xff]
        %v883 = vld [vmem:[%s115 + $0x1730] sm:$0xff]
        %v884 = vld [vmem:[%s115 + $0x1738] sm:$0xff]
        %v885 = vld [vmem:[%s115 + $0x1740] sm:$0xff]
        %v886 = vld [vmem:[%s115 + $0x1748] sm:$0xff]
        %v887 = vld [vmem:[%s115 + $0x1750] sm:$0xff]
        %v888 = vld [vmem:[%s115 + $0x1758] sm:$0xff]
        %v889 = vld [vmem:[%s115 + $0x1760] sm:$0xff]
        %v890 = vld [vmem:[%s115 + $0x1768] sm:$0xff]
        %v891 = vld [vmem:[%s115 + $0x1770] sm:$0xff]
        %v892 = vld [vmem:[%s115 + $0x1778] sm:$0xff]
        %v893 = vld [vmem:[%s115 + $0x1780] sm:$0xff]
        %v894 = vld [vmem:[%s115 + $0x1788] sm:$0xff]
        %v895 = vld [vmem:[%s115 + $0x1790] sm:$0xff]
        %v896 = vld [vmem:[%s115 + $0x1798] sm:$0xff]
        %v897 = vld [vmem:[%s115 + $0x17a0] sm:$0xff]
        %v898 = vld [vmem:[%s115 + $0x17a8] sm:$0xff]
        %v899 = vld [vmem:[%s115 + $0x17b0] sm:$0xff]
        %v900 = vld [vmem:[%s115 + $0x17b8] sm:$0xff]
        %v901 = vld [vmem:[%s115 + $0x17c0] sm:$0xff]
        %v902 = vld [vmem:[%s115 + $0x17c8] sm:$0xff]
        %v903 = vld [vmem:[%s115 + $0x17d0] sm:$0xff]
        %v904 = vld [vmem:[%s115 + $0x17d8] sm:$0xff]
        %v905 = vld [vmem:[%s115 + $0x17e0] sm:$0xff]
        %v906 = vld [vmem:[%s115 + $0x17e8] sm:$0xff]
        %v907 = vld [vmem:[%s115 + $0x17f0] sm:$0xff]
        %v908 = vld [vmem:[%s115 + $0x17f8] sm:$0xff]
        %v909 = vld [vmem:[%s115 + $0x1800] sm:$0xff]
        %v910 = vld [vmem:[%s115 + $0x1808] sm:$0xff]
        %v911 = vld [vmem:[%s115 + $0x1810] sm:$0xff]
        %v912 = vld [vmem:[%s115 + $0x1818] sm:$0xff]
        %v913 = vld [vmem:[%s115 + $0x1820] sm:$0xff]
        %v914 = vld [vmem:[%s115 + $0x1828] sm:$0xff]
        %v915 = vld [vmem:[%s115 + $0x1830] sm:$0xff]
        %v916 = vld [vmem:[%s115 + $0x1838] sm:$0xff]
        %v917 = vld [vmem:[%s115 + $0x1840] sm:$0xff]
        %v918 = vld [vmem:[%s115 + $0x1848] sm:$0xff]
        %v919 = vld [vmem:[%s115 + $0x1850] sm:$0xff]
        %v920 = vld [vmem:[%s115 + $0x1858] sm:$0xff]
        %v921 = vld [vmem:[%s115 + $0x1860] sm:$0xff]
        %v922 = vld [vmem:[%s115 + $0x1868] sm:$0xff]
        %v923 = vld [vmem:[%s115 + $0x1870] sm:$0xff]
        %v924 = vld [vmem:[%s115 + $0x1878] sm:$0xff]
        %v925 = vld [vmem:[%s115 + $0x1880] sm:$0xff]
        %v926 = vld [vmem:[%s115 + $0x1888] sm:$0xff]
        %v927 = vld [vmem:[%s115 + $0x1890] sm:$0xff]
        %v928 = vld [vmem:[%s115 + $0x1898] sm:$0xff]
        %v929 = vld [vmem:[%s115 + $0x18a0] sm:$0xff]
        %v930 = vld [vmem:[%s115 + $0x18a8] sm:$0xff]
        %v931 = vld [vmem:[%s115 + $0x18b0] sm:$0xff]
        %v932 = vld [vmem:[%s115 + $0x18b8] sm:$0xff]
        %v933 = vld [vmem:[%s115 + $0x18c0] sm:$0xff]
        %v934 = vld [vmem:[%s115 + $0x18c8] sm:$0xff]
        %v935 = vld [vmem:[%s115 + $0x18d0] sm:$0xff]
        %v936 = vld [vmem:[%s115 + $0x18d8] sm:$0xff]
        %v937 = vld [vmem:[%s115 + $0x18e0] sm:$0xff]
        %v938 = vld [vmem:[%s115 + $0x18e8] sm:$0xff]
        %v939 = vld [vmem:[%s115 + $0x18f0] sm:$0xff]
        %v940 = vld [vmem:[%s115 + $0x18f8] sm:$0xff]
        %v941 = vld [vmem:[%s115 + $0x1900] sm:$0xff]
        %v942 = vld [vmem:[%s115 + $0x1908] sm:$0xff]
        %v943 = vld [vmem:[%s115 + $0x1910] sm:$0xff]
        %v944 = vld [vmem:[%s115 + $0x1918] sm:$0xff]
        %v945 = vld [vmem:[%s115 + $0x1920] sm:$0xff]
        %v946 = vld [vmem:[%s115 + $0x1928] sm:$0xff]
        %v947 = vld [vmem:[%s115 + $0x1930] sm:$0xff]
        %v948 = vld [vmem:[%s115 + $0x1938] sm:$0xff]
        %v949 = vld [vmem:[%s115 + $0x1940] sm:$0xff]
        %v950 = vld [vmem:[%s115 + $0x1948] sm:$0xff]
        %v951 = vld [vmem:[%s115 + $0x1950] sm:$0xff]
        %v952 = vld [vmem:[%s115 + $0x1958] sm:$0xff]
        %v953 = vld [vmem:[%s115 + $0x1960] sm:$0xff]
        %v954 = vld [vmem:[%s115 + $0x1968] sm:$0xff]
        %v955 = vld [vmem:[%s115 + $0x1970] sm:$0xff]
        %v956 = vld [vmem:[%s115 + $0x1978] sm:$0xff]
        %v957 = vld [vmem:[%s115 + $0x1980] sm:$0xff]
        %v958 = vld [vmem:[%s115 + $0x1988] sm:$0xff]
        %v959 = vld [vmem:[%s115 + $0x1990] sm:$0xff]
        %v960 = vld [vmem:[%s115 + $0x1998] sm:$0xff]
        %v961 = vld [vmem:[%s115 + $0x19a0] sm:$0xff]
        %v962 = vld [vmem:[%s115 + $0x19a8] sm:$0xff]
        %v963 = vld [vmem:[%s115 + $0x19b0] sm:$0xff]
        %v964 = vld [vmem:[%s115 + $0x19b8] sm:$0xff]
        %v965 = vld [vmem:[%s115 + $0x19c0] sm:$0xff]
        %v966 = vld [vmem:[%s115 + $0x19c8] sm:$0xff]
        %v967 = vld [vmem:[%s115 + $0x19d0] sm:$0xff]
        %v968 = vld [vmem:[%s115 + $0x19d8] sm:$0xff]
        %v969 = vld [vmem:[%s115 + $0x19e0] sm:$0xff]
        %v970 = vld [vmem:[%s115 + $0x19e8] sm:$0xff]
        %v971 = vld [vmem:[%s115 + $0x19f0] sm:$0xff]
        %v972 = vld [vmem:[%s115 + $0x19f8] sm:$0xff]
        %v973 = vld [vmem:[%s115 + $0x1a00] sm:$0xff]
        %v974 = vld [vmem:[%s115 + $0x1a08] sm:$0xff]
        %v975 = vld [vmem:[%s115 + $0x1a10] sm:$0xff]
        %v976 = vld [vmem:[%s115 + $0x1a18] sm:$0xff]
        %v977 = vld [vmem:[%s115 + $0x1a20] sm:$0xff]
        %v978 = vld [vmem:[%s115 + $0x1a28] sm:$0xff]
        %v979 = vld [vmem:[%s115 + $0x1a30] sm:$0xff]
        %v980 = vld [vmem:[%s115 + $0x1a38] sm:$0xff]
        %v981 = vld [vmem:[%s115 + $0x1a40] sm:$0xff]
        %v982 = vld [vmem:[%s115 + $0x1a48] sm:$0xff]
        %v983 = vld [vmem:[%s115 + $0x1a50] sm:$0xff]
        %v984 = vld [vmem:[%s115 + $0x1a58] sm:$0xff]
        %v985 = vld [vmem:[%s115 + $0x1a60] sm:$0xff]
        %v986 = vld [vmem:[%s115 + $0x1a68] sm:$0xff]
        %v987 = vld [vmem:[%s115 + $0x1a70] sm:$0xff]
        %v988 = vld [vmem:[%s115 + $0x1a78] sm:$0xff]
        %v989 = vld [vmem:[%s115 + $0x1a80] sm:$0xff]
        %v990 = vld [vmem:[%s115 + $0x1a88] sm:$0xff]
        %v991 = vld [vmem:[%s115 + $0x1a90] sm:$0xff]
        %v992 = vld [vmem:[%s115 + $0x1a98] sm:$0xff]
        %v993 = vld [vmem:[%s115 + $0x1aa0] sm:$0xff]
        %v994 = vld [vmem:[%s115 + $0x1aa8] sm:$0xff]
        %v995 = vld [vmem:[%s115 + $0x1ab0] sm:$0xff]
        %v996 = vld [vmem:[%s115 + $0x1ab8] sm:$0xff]
        %v997 = vld [vmem:[%s115 + $0x1ac0] sm:$0xff]
        %v998 = vld [vmem:[%s115 + $0x1ac8] sm:$0xff]
        %v999 = vld [vmem:[%s115 + $0x1ad0] sm:$0xff]
        %v1000 = vld [vmem:[%s115 + $0x1ad8] sm:$0xff]
        %v1001 = vld [vmem:[%s115 + $0x1ae0] sm:$0xff]
        %v1002 = vld [vmem:[%s115 + $0x1ae8] sm:$0xff]
        %v1003 = vld [vmem:[%s115 + $0x1af0] sm:$0xff]
        %v1004 = vld [vmem:[%s115 + $0x1af8] sm:$0xff]
        %v1005 = vld [vmem:[%s115 + $0x1b00] sm:$0xff]
        %v1006 = vld [vmem:[%s115 + $0x1b08] sm:$0xff]
        %v1007 = vld [vmem:[%s115 + $0x1b10] sm:$0xff]
        %v1008 = vld [vmem:[%s115 + $0x1b18] sm:$0xff]
        %v1009 = vld [vmem:[%s115 + $0x1b20] sm:$0xff]
        %v1010 = vld [vmem:[%s115 + $0x1b28] sm:$0xff]
        %v1011 = vld [vmem:[%s115 + $0x1b30] sm:$0xff]
        %v1012 = vld [vmem:[%s115 + $0x1b38] sm:$0xff]
        %v1013 = vld [vmem:[%s115 + $0x1b40] sm:$0xff]
        %v1014 = vld [vmem:[%s115 + $0x1b48] sm:$0xff]
        %v1015 = vld [vmem:[%s115 + $0x1b50] sm:$0xff]
        %v1016 = vld [vmem:[%s115 + $0x1b58] sm:$0xff]
        %v1017 = vld [vmem:[%s115 + $0x1b60] sm:$0xff]
        %v1018 = vld [vmem:[%s115 + $0x1b68] sm:$0xff]
        %v1019 = vld [vmem:[%s115 + $0x1b70] sm:$0xff]
        %v1020 = vld [vmem:[%s115 + $0x1b78] sm:$0xff]
        %v1021 = vld [vmem:[%s115 + $0x1b80] sm:$0xff]
        %v1022 = vld [vmem:[%s115 + $0x1b88] sm:$0xff]
        %v1023 = vld [vmem:[%s115 + $0x1b90] sm:$0xff]
        %v1024 = vld [vmem:[%s115 + $0x1b98] sm:$0xff]
        %v1025 = vld [vmem:[%s115 + $0x1ba0] sm:$0xff]
        %v1026 = vld [vmem:[%s115 + $0x1ba8] sm:$0xff]
        %v1027 = vld [vmem:[%s115 + $0x1bb0] sm:$0xff]
        %v1028 = vld [vmem:[%s115 + $0x1bb8] sm:$0xff]
        %v1029 = vld [vmem:[%s115 + $0x1bc0] sm:$0xff]
        %v1030 = vld [vmem:[%s115 + $0x1bc8] sm:$0xff]
        %v1031 = vld [vmem:[%s115 + $0x1bd0] sm:$0xff]
        %v1032 = vld [vmem:[%s115 + $0x1bd8] sm:$0xff]
        %v1033 = vld [vmem:[%s115 + $0x1be0] sm:$0xff]
        %v1034 = vld [vmem:[%s115 + $0x1be8] sm:$0xff]
        %v1035 = vld [vmem:[%s115 + $0x1bf0] sm:$0xff]
        %v1036 = vld [vmem:[%s115 + $0x1bf8] sm:$0xff]
        %v1037 = vld [vmem:[%s115 + $0x1c00] sm:$0xff]
        %v1038 = vld [vmem:[%s115 + $0x1c08] sm:$0xff]
        %v1039 = vld [vmem:[%s115 + $0x1c10] sm:$0xff]
        %v1040 = vld [vmem:[%s115 + $0x1c18] sm:$0xff]
        %v1041 = vld [vmem:[%s115 + $0x1c20] sm:$0xff]
        %v1042 = vld [vmem:[%s115 + $0x1c28] sm:$0xff]
        %v1043 = vld [vmem:[%s115 + $0x1c30] sm:$0xff]
        %v1044 = vld [vmem:[%s115 + $0x1c38] sm:$0xff]
        %v1045 = vld [vmem:[%s115 + $0x1c40] sm:$0xff]
        %v1046 = vld [vmem:[%s115 + $0x1c48] sm:$0xff]
        %v1047 = vld [vmem:[%s115 + $0x1c50] sm:$0xff]
        %v1048 = vld [vmem:[%s115 + $0x1c58] sm:$0xff]
        %v1049 = vld [vmem:[%s115 + $0x1c60] sm:$0xff]
        %v1050 = vld [vmem:[%s115 + $0x1c68] sm:$0xff]
        %v1051 = vld [vmem:[%s115 + $0x1c70] sm:$0xff]
        %v1052 = vld [vmem:[%s115 + $0x1c78] sm:$0xff]
        %v1053 = vld [vmem:[%s115 + $0x1c80] sm:$0xff]
        %v1054 = vld [vmem:[%s115 + $0x1c88] sm:$0xff]
        %v1055 = vld [vmem:[%s115 + $0x1c90] sm:$0xff]
        %v1056 = vld [vmem:[%s115 + $0x1c98] sm:$0xff]
        %v1057 = vld [vmem:[%s115 + $0x1ca0] sm:$0xff]
        %v1058 = vld [vmem:[%s115 + $0x1ca8] sm:$0xff]
        %v1059 = vld [vmem:[%s115 + $0x1cb0] sm:$0xff]
        %v1060 = vld [vmem:[%s115 + $0x1cb8] sm:$0xff]
        %v1061 = vld [vmem:[%s115 + $0x1cc0] sm:$0xff]
        %v1062 = vld [vmem:[%s115 + $0x1cc8] sm:$0xff]
        %v1063 = vld [vmem:[%s115 + $0x1cd0] sm:$0xff]
        %v1064 = vld [vmem:[%s115 + $0x1cd8] sm:$0xff]
        %v1065 = vld [vmem:[%s115 + $0x1ce0] sm:$0xff]
        %v1066 = vld [vmem:[%s115 + $0x1ce8] sm:$0xff]
        %v1067 = vld [vmem:[%s115 + $0x1cf0] sm:$0xff]
        %v1068 = vld [vmem:[%s115 + $0x1cf8] sm:$0xff]
        %v1069 = vld [vmem:[%s115 + $0x1d00] sm:$0xff]
        %v1070 = vld [vmem:[%s115 + $0x1d08] sm:$0xff]
        %v1071 = vld [vmem:[%s115 + $0x1d10] sm:$0xff]
        %v1072 = vld [vmem:[%s115 + $0x1d18] sm:$0xff]
        %v1073 = vld [vmem:[%s115 + $0x1d20] sm:$0xff]
        %v1074 = vld [vmem:[%s115 + $0x1d28] sm:$0xff]
        %v1075 = vld [vmem:[%s115 + $0x1d30] sm:$0xff]
        %v1076 = vld [vmem:[%s115 + $0x1d38] sm:$0xff]
        %v1077 = vld [vmem:[%s115 + $0x1d40] sm:$0xff]
        %v1078 = vld [vmem:[%s115 + $0x1d48] sm:$0xff]
        %v1079 = vld [vmem:[%s115 + $0x1d50] sm:$0xff]
        %v1080 = vld [vmem:[%s115 + $0x1d58] sm:$0xff]
        %v1081 = vld [vmem:[%s115 + $0x1d60] sm:$0xff]
        %v1082 = vld [vmem:[%s115 + $0x1d68] sm:$0xff]
        %v1083 = vld [vmem:[%s115 + $0x1d70] sm:$0xff]
        %v1084 = vld [vmem:[%s115 + $0x1d78] sm:$0xff]
        %v1085 = vld [vmem:[%s115 + $0x1d80] sm:$0xff]
        %v1086 = vld [vmem:[%s115 + $0x1d88] sm:$0xff]
        %v1087 = vld [vmem:[%s115 + $0x1d90] sm:$0xff]
        %v1088 = vld [vmem:[%s115 + $0x1d98] sm:$0xff]
        %v1089 = vld [vmem:[%s115 + $0x1da0] sm:$0xff]
        %v1090 = vld [vmem:[%s115 + $0x1da8] sm:$0xff]
        %v1091 = vld [vmem:[%s115 + $0x1db0] sm:$0xff]
        %v1092 = vld [vmem:[%s115 + $0x1db8] sm:$0xff]
        %v1093 = vld [vmem:[%s115 + $0x1dc0] sm:$0xff]
        %v1094 = vld [vmem:[%s115 + $0x1dc8] sm:$0xff]
        %v1095 = vld [vmem:[%s115 + $0x1dd0] sm:$0xff]
        %v1096 = vld [vmem:[%s115 + $0x1dd8] sm:$0xff]
        %v1097 = vld [vmem:[%s115 + $0x1de0] sm:$0xff]
        %v1098 = vld [vmem:[%s115 + $0x1de8] sm:$0xff]
        %v1099 = vld [vmem:[%s115 + $0x1df0] sm:$0xff]
        %v1100 = vld [vmem:[%s115 + $0x1df8] sm:$0xff]
        %v1101 = vld [vmem:[%s115 + $0x1e00] sm:$0xff]
        %v1102 = vld [vmem:[%s115 + $0x1e08] sm:$0xff]
        %v1103 = vld [vmem:[%s115 + $0x1e10] sm:$0xff]
        %v1104 = vld [vmem:[%s115 + $0x1e18] sm:$0xff]
        %v1105 = vld [vmem:[%s115 + $0x1e20] sm:$0xff]
        %v1106 = vld [vmem:[%s115 + $0x1e28] sm:$0xff]
        %v1107 = vld [vmem:[%s115 + $0x1e30] sm:$0xff]
        %v1108 = vld [vmem:[%s115 + $0x1e38] sm:$0xff]
        %v1109 = vld [vmem:[%s115 + $0x1e40] sm:$0xff]
        %v1110 = vld [vmem:[%s115 + $0x1e48] sm:$0xff]
        %v1111 = vld [vmem:[%s115 + $0x1e50] sm:$0xff]
        %v1112 = vld [vmem:[%s115 + $0x1e58] sm:$0xff]
        %v1113 = vld [vmem:[%s115 + $0x1e60] sm:$0xff]
        %v1114 = vld [vmem:[%s115 + $0x1e68] sm:$0xff]
        %v1115 = vld [vmem:[%s115 + $0x1e70] sm:$0xff]
        %v1116 = vld [vmem:[%s115 + $0x1e78] sm:$0xff]
        %v1117 = vld [vmem:[%s115 + $0x1e80] sm:$0xff]
        %v1118 = vld [vmem:[%s115 + $0x1e88] sm:$0xff]
        %v1119 = vld [vmem:[%s115 + $0x1e90] sm:$0xff]
        %v1120 = vld [vmem:[%s115 + $0x1e98] sm:$0xff]
        %v1121 = vld [vmem:[%s115 + $0x1ea0] sm:$0xff]
        %v1122 = vld [vmem:[%s115 + $0x1ea8] sm:$0xff]
        %v1123 = vld [vmem:[%s115 + $0x1eb0] sm:$0xff]
        %v1124 = vld [vmem:[%s115 + $0x1eb8] sm:$0xff]
        %v1125 = vld [vmem:[%s115 + $0x1ec0] sm:$0xff]
        %v1126 = vld [vmem:[%s115 + $0x1ec8] sm:$0xff]
        %v1127 = vld [vmem:[%s115 + $0x1ed0] sm:$0xff]
        %v1128 = vld [vmem:[%s115 + $0x1ed8] sm:$0xff]
        %v1129 = vld [vmem:[%s115 + $0x1ee0] sm:$0xff]
        %v1130 = vld [vmem:[%s115 + $0x1ee8] sm:$0xff]
        %v1131 = vld [vmem:[%s115 + $0x1ef0] sm:$0xff]
        %v1132 = vld [vmem:[%s115 + $0x1ef8] sm:$0xff]
        %v1133 = vld [vmem:[%s115 + $0x1f00] sm:$0xff]
        %v1134 = vld [vmem:[%s115 + $0x1f08] sm:$0xff]
        %v1135 = vld [vmem:[%s115 + $0x1f10] sm:$0xff]
        %v1136 = vld [vmem:[%s115 + $0x1f18] sm:$0xff]
        %v1137 = vld [vmem:[%s115 + $0x1f20] sm:$0xff]
        %v1138 = vld [vmem:[%s115 + $0x1f28] sm:$0xff]
        %v1139 = vld [vmem:[%s115 + $0x1f30] sm:$0xff]
        %v1140 = vld [vmem:[%s115 + $0x1f38] sm:$0xff]
        %v1141 = vld [vmem:[%s115 + $0x1f40] sm:$0xff]
        %v1142 = vld [vmem:[%s115 + $0x1f48] sm:$0xff]
        %v1143 = vld [vmem:[%s115 + $0x1f50] sm:$0xff]
        %v1144 = vld [vmem:[%s115 + $0x1f58] sm:$0xff]
        %v1145 = vld [vmem:[%s115 + $0x1f60] sm:$0xff]
        %v1146 = vld [vmem:[%s115 + $0x1f68] sm:$0xff]
        %v1147 = vld [vmem:[%s115 + $0x1f70] sm:$0xff]
        %v1148 = vld [vmem:[%s115 + $0x1f78] sm:$0xff]
        %v1149 = vld [vmem:[%s115 + $0x1f80] sm:$0xff]
        %v1150 = vld [vmem:[%s115 + $0x1f88] sm:$0xff]
        %v1151 = vld [vmem:[%s115 + $0x1f90] sm:$0xff]
        %v1152 = vld [vmem:[%s115 + $0x1f98] sm:$0xff]
        %v1153 = vld [vmem:[%s115 + $0x1fa0] sm:$0xff]
        %v1154 = vld [vmem:[%s115 + $0x1fa8] sm:$0xff]
        %v1155 = vld [vmem:[%s115 + $0x1fb0] sm:$0xff]
        %v1156 = vld [vmem:[%s115 + $0x1fb8] sm:$0xff]
        %v1157 = vld [vmem:[%s115 + $0x1fc0] sm:$0xff]
        %v1158 = vld [vmem:[%s115 + $0x1fc8] sm:$0xff]
        %v1159 = vld [vmem:[%s115 + $0x1fd0] sm:$0xff]
        %v1160 = vld [vmem:[%s115 + $0x1fd8] sm:$0xff]
        %v1161 = vld [vmem:[%s115 + $0x1fe0] sm:$0xff]
        %v1162 = vld [vmem:[%s115 + $0x1fe8] sm:$0xff]
        %v1163 = vld [vmem:[%s115 + $0x1ff0] sm:$0xff]
        %v1164 = vld [vmem:[%s115 + $0x1ff8] sm:$0xff]
        %2189 = vrot.lane.b32.xlu0 %v141, 56
        %v2190 = vpop.permute.xlu0 %2189
        %2191 = vrot.lane.b32.xlu0 %v142, 56
        %v2192 = vpop.permute.xlu0 %2191
        %2193 = vrot.lane.b32.xlu0 %v143, 56
        %v2194 = vpop.permute.xlu0 %2193
        %2195 = vrot.lane.b32.xlu0 %v144, 56
        %v2196 = vpop.permute.xlu0 %2195
        %2197 = vrot.lane.b32.xlu0 %v145, 56
        %v2198 = vpop.permute.xlu0 %2197
        %2199 = vrot.lane.b32.xlu0 %v146, 56
        %v2200 = vpop.permute.xlu0 %2199
        %2201 = vrot.lane.b32.xlu0 %v147, 56
        %v2202 = vpop.permute.xlu0 %2201
        %2203 = vrot.lane.b32.xlu0 %v148, 56
        %v2204 = vpop.permute.xlu0 %2203
        %2205 = vrot.lane.b32.xlu0 %v149, 56
        %v2206 = vpop.permute.xlu0 %2205
        %2207 = vrot.lane.b32.xlu0 %v150, 56
        %v2208 = vpop.permute.xlu0 %2207
        %2209 = vrot.lane.b32.xlu0 %v151, 56
        %v2210 = vpop.permute.xlu0 %2209
        %2211 = vrot.lane.b32.xlu0 %v152, 56
        %v2212 = vpop.permute.xlu0 %2211
        %2213 = vrot.lane.b32.xlu0 %v153, 56
        %v2214 = vpop.permute.xlu0 %2213
        %2215 = vrot.lane.b32.xlu0 %v154, 56
        %v2216 = vpop.permute.xlu0 %2215
        %2217 = vrot.lane.b32.xlu0 %v155, 56
        %v2218 = vpop.permute.xlu0 %2217
        %2219 = vrot.lane.b32.xlu0 %v156, 56
        %v2220 = vpop.permute.xlu0 %2219
        %2221 = vrot.lane.b32.xlu0 %v157, 56
        %v2222 = vpop.permute.xlu0 %2221
        %2223 = vrot.lane.b32.xlu0 %v158, 56
        %v2224 = vpop.permute.xlu0 %2223
        %2225 = vrot.lane.b32.xlu0 %v159, 56
        %v2226 = vpop.permute.xlu0 %2225
        %2227 = vrot.lane.b32.xlu0 %v160, 56
        %v2228 = vpop.permute.xlu0 %2227
        %2229 = vrot.lane.b32.xlu0 %v161, 56
        %v2230 = vpop.permute.xlu0 %2229
        %2231 = vrot.lane.b32.xlu0 %v162, 56
        %v2232 = vpop.permute.xlu0 %2231
        %2233 = vrot.lane.b32.xlu0 %v163, 56
        %v2234 = vpop.permute.xlu0 %2233
        %2235 = vrot.lane.b32.xlu0 %v164, 56
        %v2236 = vpop.permute.xlu0 %2235
        %2237 = vrot.lane.b32.xlu0 %v165, 56
        %v2238 = vpop.permute.xlu0 %2237
        %2239 = vrot.lane.b32.xlu0 %v166, 56
        %v2240 = vpop.permute.xlu0 %2239
        %2241 = vrot.lane.b32.xlu0 %v167, 56
        %v2242 = vpop.permute.xlu0 %2241
        %2243 = vrot.lane.b32.xlu0 %v168, 56
        %v2244 = vpop.permute.xlu0 %2243
        %2245 = vrot.lane.b32.xlu0 %v169, 56
        %v2246 = vpop.permute.xlu0 %2245
        %2247 = vrot.lane.b32.xlu0 %v170, 56
        %v2248 = vpop.permute.xlu0 %2247
        %2249 = vrot.lane.b32.xlu0 %v171, 56
        %v2250 = vpop.permute.xlu0 %2249
        %2251 = vrot.lane.b32.xlu0 %v172, 56
        %v2252 = vpop.permute.xlu0 %2251
        %2253 = vrot.lane.b32.xlu0 %v173, 56
        %v2254 = vpop.permute.xlu0 %2253
        %2255 = vrot.lane.b32.xlu0 %v174, 56
        %v2256 = vpop.permute.xlu0 %2255
        %2257 = vrot.lane.b32.xlu0 %v175, 56
        %v2258 = vpop.permute.xlu0 %2257
        %2259 = vrot.lane.b32.xlu0 %v176, 56
        %v2260 = vpop.permute.xlu0 %2259
        %2261 = vrot.lane.b32.xlu0 %v177, 56
        %v2262 = vpop.permute.xlu0 %2261
        %2263 = vrot.lane.b32.xlu0 %v178, 56
        %v2264 = vpop.permute.xlu0 %2263
        %2265 = vrot.lane.b32.xlu0 %v179, 56
        %v2266 = vpop.permute.xlu0 %2265
        %2267 = vrot.lane.b32.xlu0 %v180, 56
        %v2268 = vpop.permute.xlu0 %2267
        %2269 = vrot.lane.b32.xlu0 %v181, 56
        %v2270 = vpop.permute.xlu0 %2269
        %2271 = vrot.lane.b32.xlu0 %v182, 56
        %v2272 = vpop.permute.xlu0 %2271
        %2273 = vrot.lane.b32.xlu0 %v183, 56
        %v2274 = vpop.permute.xlu0 %2273
        %2275 = vrot.lane.b32.xlu0 %v184, 56
        %v2276 = vpop.permute.xlu0 %2275
        %2277 = vrot.lane.b32.xlu0 %v185, 56
        %v2278 = vpop.permute.xlu0 %2277
        %2279 = vrot.lane.b32.xlu0 %v186, 56
        %v2280 = vpop.permute.xlu0 %2279
        %2281 = vrot.lane.b32.xlu0 %v187, 56
        %v2282 = vpop.permute.xlu0 %2281
        %2283 = vrot.lane.b32.xlu0 %v188, 56
        %v2284 = vpop.permute.xlu0 %2283
        %2285 = vrot.lane.b32.xlu0 %v189, 56
        %v2286 = vpop.permute.xlu0 %2285
        %2287 = vrot.lane.b32.xlu0 %v190, 56
        %v2288 = vpop.permute.xlu0 %2287
        %2289 = vrot.lane.b32.xlu0 %v191, 56
        %v2290 = vpop.permute.xlu0 %2289
        %2291 = vrot.lane.b32.xlu0 %v192, 56
        %v2292 = vpop.permute.xlu0 %2291
        %2293 = vrot.lane.b32.xlu0 %v193, 56
        %v2294 = vpop.permute.xlu0 %2293
        %2295 = vrot.lane.b32.xlu0 %v194, 56
        %v2296 = vpop.permute.xlu0 %2295
        %2297 = vrot.lane.b32.xlu0 %v195, 56
        %v2298 = vpop.permute.xlu0 %2297
        %2299 = vrot.lane.b32.xlu0 %v196, 56
        %v2300 = vpop.permute.xlu0 %2299
        %2301 = vrot.lane.b32.xlu0 %v197, 56
        %v2302 = vpop.permute.xlu0 %2301
        %2303 = vrot.lane.b32.xlu0 %v198, 56
        %v2304 = vpop.permute.xlu0 %2303
        %2305 = vrot.lane.b32.xlu0 %v199, 56
        %v2306 = vpop.permute.xlu0 %2305
        %2307 = vrot.lane.b32.xlu0 %v200, 56
        %v2308 = vpop.permute.xlu0 %2307
        %2309 = vrot.lane.b32.xlu0 %v201, 56
        %v2310 = vpop.permute.xlu0 %2309
        %2311 = vrot.lane.b32.xlu0 %v202, 56
        %v2312 = vpop.permute.xlu0 %2311
        %2313 = vrot.lane.b32.xlu0 %v203, 56
        %v2314 = vpop.permute.xlu0 %2313
        %2315 = vrot.lane.b32.xlu0 %v204, 56
        %v2316 = vpop.permute.xlu0 %2315
        %2317 = vrot.lane.b32.xlu0 %v205, 56
        %v2318 = vpop.permute.xlu0 %2317
        %2319 = vrot.lane.b32.xlu0 %v206, 56
        %v2320 = vpop.permute.xlu0 %2319
        %2321 = vrot.lane.b32.xlu0 %v207, 56
        %v2322 = vpop.permute.xlu0 %2321
        %2323 = vrot.lane.b32.xlu0 %v208, 56
        %v2324 = vpop.permute.xlu0 %2323
        %2325 = vrot.lane.b32.xlu0 %v209, 56
        %v2326 = vpop.permute.xlu0 %2325
        %2327 = vrot.lane.b32.xlu0 %v210, 56
        %v2328 = vpop.permute.xlu0 %2327
        %2329 = vrot.lane.b32.xlu0 %v211, 56
        %v2330 = vpop.permute.xlu0 %2329
        %2331 = vrot.lane.b32.xlu0 %v212, 56
        %v2332 = vpop.permute.xlu0 %2331
        %2333 = vrot.lane.b32.xlu0 %v213, 56
        %v2334 = vpop.permute.xlu0 %2333
        %2335 = vrot.lane.b32.xlu0 %v214, 56
        %v2336 = vpop.permute.xlu0 %2335
        %2337 = vrot.lane.b32.xlu0 %v215, 56
        %v2338 = vpop.permute.xlu0 %2337
        %2339 = vrot.lane.b32.xlu0 %v216, 56
        %v2340 = vpop.permute.xlu0 %2339
        %2341 = vrot.lane.b32.xlu0 %v217, 56
        %v2342 = vpop.permute.xlu0 %2341
        %2343 = vrot.lane.b32.xlu0 %v218, 56
        %v2344 = vpop.permute.xlu0 %2343
        %2345 = vrot.lane.b32.xlu0 %v219, 56
        %v2346 = vpop.permute.xlu0 %2345
        %2347 = vrot.lane.b32.xlu0 %v220, 56
        %v2348 = vpop.permute.xlu0 %2347
        %2349 = vrot.lane.b32.xlu0 %v221, 56
        %v2350 = vpop.permute.xlu0 %2349
        %2351 = vrot.lane.b32.xlu0 %v222, 56
        %v2352 = vpop.permute.xlu0 %2351
        %2353 = vrot.lane.b32.xlu0 %v223, 56
        %v2354 = vpop.permute.xlu0 %2353
        %2355 = vrot.lane.b32.xlu0 %v224, 56
        %v2356 = vpop.permute.xlu0 %2355
        %2357 = vrot.lane.b32.xlu0 %v225, 56
        %v2358 = vpop.permute.xlu0 %2357
        %2359 = vrot.lane.b32.xlu0 %v226, 56
        %v2360 = vpop.permute.xlu0 %2359
        %2361 = vrot.lane.b32.xlu0 %v227, 56
        %v2362 = vpop.permute.xlu0 %2361
        %2363 = vrot.lane.b32.xlu0 %v228, 56
        %v2364 = vpop.permute.xlu0 %2363
        %2365 = vrot.lane.b32.xlu0 %v229, 56
        %v2366 = vpop.permute.xlu0 %2365
        %2367 = vrot.lane.b32.xlu0 %v230, 56
        %v2368 = vpop.permute.xlu0 %2367
        %2369 = vrot.lane.b32.xlu0 %v231, 56
        %v2370 = vpop.permute.xlu0 %2369
        %2371 = vrot.lane.b32.xlu0 %v232, 56
        %v2372 = vpop.permute.xlu0 %2371
        %2373 = vrot.lane.b32.xlu0 %v233, 56
        %v2374 = vpop.permute.xlu0 %2373
        %2375 = vrot.lane.b32.xlu0 %v234, 56
        %v2376 = vpop.permute.xlu0 %2375
        %2377 = vrot.lane.b32.xlu0 %v235, 56
        %v2378 = vpop.permute.xlu0 %2377
        %2379 = vrot.lane.b32.xlu0 %v236, 56
        %v2380 = vpop.permute.xlu0 %2379
        %2381 = vrot.lane.b32.xlu0 %v237, 56
        %v2382 = vpop.permute.xlu0 %2381
        %2383 = vrot.lane.b32.xlu0 %v238, 56
        %v2384 = vpop.permute.xlu0 %2383
        %2385 = vrot.lane.b32.xlu0 %v239, 56
        %v2386 = vpop.permute.xlu0 %2385
        %2387 = vrot.lane.b32.xlu0 %v240, 56
        %v2388 = vpop.permute.xlu0 %2387
        %2389 = vrot.lane.b32.xlu0 %v241, 56
        %v2390 = vpop.permute.xlu0 %2389
        %2391 = vrot.lane.b32.xlu0 %v242, 56
        %v2392 = vpop.permute.xlu0 %2391
        %2393 = vrot.lane.b32.xlu0 %v243, 56
        %v2394 = vpop.permute.xlu0 %2393
        %2395 = vrot.lane.b32.xlu0 %v244, 56
        %v2396 = vpop.permute.xlu0 %2395
        %2397 = vrot.lane.b32.xlu0 %v245, 56
        %v2398 = vpop.permute.xlu0 %2397
        %2399 = vrot.lane.b32.xlu0 %v246, 56
        %v2400 = vpop.permute.xlu0 %2399
        %2401 = vrot.lane.b32.xlu0 %v247, 56
        %v2402 = vpop.permute.xlu0 %2401
        %2403 = vrot.lane.b32.xlu0 %v248, 56
        %v2404 = vpop.permute.xlu0 %2403
        %2405 = vrot.lane.b32.xlu0 %v249, 56
        %v2406 = vpop.permute.xlu0 %2405
        %2407 = vrot.lane.b32.xlu0 %v250, 56
        %v2408 = vpop.permute.xlu0 %2407
        %2409 = vrot.lane.b32.xlu0 %v251, 56
        %v2410 = vpop.permute.xlu0 %2409
        %2411 = vrot.lane.b32.xlu0 %v252, 56
        %v2412 = vpop.permute.xlu0 %2411
        %2413 = vrot.lane.b32.xlu0 %v253, 56
        %v2414 = vpop.permute.xlu0 %2413
        %2415 = vrot.lane.b32.xlu0 %v254, 56
        %v2416 = vpop.permute.xlu0 %2415
        %2417 = vrot.lane.b32.xlu0 %v255, 56
        %v2418 = vpop.permute.xlu0 %2417
        %2419 = vrot.lane.b32.xlu0 %v256, 56
        %v2420 = vpop.permute.xlu0 %2419
        %2421 = vrot.lane.b32.xlu0 %v257, 56
        %v2422 = vpop.permute.xlu0 %2421
        %2423 = vrot.lane.b32.xlu0 %v258, 56
        %v2424 = vpop.permute.xlu0 %2423
        %2425 = vrot.lane.b32.xlu0 %v259, 56
        %v2426 = vpop.permute.xlu0 %2425
        %2427 = vrot.lane.b32.xlu0 %v260, 56
        %v2428 = vpop.permute.xlu0 %2427
        %2429 = vrot.lane.b32.xlu0 %v261, 56
        %v2430 = vpop.permute.xlu0 %2429
        %2431 = vrot.lane.b32.xlu0 %v262, 56
        %v2432 = vpop.permute.xlu0 %2431
        %2433 = vrot.lane.b32.xlu0 %v263, 56
        %v2434 = vpop.permute.xlu0 %2433
        %2435 = vrot.lane.b32.xlu0 %v264, 56
        %v2436 = vpop.permute.xlu0 %2435
        %2437 = vrot.lane.b32.xlu0 %v265, 56
        %v2438 = vpop.permute.xlu0 %2437
        %2439 = vrot.lane.b32.xlu0 %v266, 56
        %v2440 = vpop.permute.xlu0 %2439
        %2441 = vrot.lane.b32.xlu0 %v267, 56
        %v2442 = vpop.permute.xlu0 %2441
        %2443 = vrot.lane.b32.xlu0 %v268, 56
        %v2444 = vpop.permute.xlu0 %2443
        %2445 = vrot.lane.b32.xlu0 %v269, 56
        %v2446 = vpop.permute.xlu0 %2445
        %2447 = vrot.lane.b32.xlu0 %v270, 56
        %v2448 = vpop.permute.xlu0 %2447
        %2449 = vrot.lane.b32.xlu0 %v271, 56
        %v2450 = vpop.permute.xlu0 %2449
        %2451 = vrot.lane.b32.xlu0 %v272, 56
        %v2452 = vpop.permute.xlu0 %2451
        %2453 = vrot.lane.b32.xlu0 %v273, 56
        %v2454 = vpop.permute.xlu0 %2453
        %2455 = vrot.lane.b32.xlu0 %v274, 56
        %v2456 = vpop.permute.xlu0 %2455
        %2457 = vrot.lane.b32.xlu0 %v275, 56
        %v2458 = vpop.permute.xlu0 %2457
        %2459 = vrot.lane.b32.xlu0 %v276, 56
        %v2460 = vpop.permute.xlu0 %2459
        %2461 = vrot.lane.b32.xlu0 %v277, 56
        %v2462 = vpop.permute.xlu0 %2461
        %2463 = vrot.lane.b32.xlu0 %v278, 56
        %v2464 = vpop.permute.xlu0 %2463
        %2465 = vrot.lane.b32.xlu0 %v279, 56
        %v2466 = vpop.permute.xlu0 %2465
        %2467 = vrot.lane.b32.xlu0 %v280, 56
        %v2468 = vpop.permute.xlu0 %2467
        %2469 = vrot.lane.b32.xlu0 %v281, 56
        %v2470 = vpop.permute.xlu0 %2469
        %2471 = vrot.lane.b32.xlu0 %v282, 56
        %v2472 = vpop.permute.xlu0 %2471
        %2473 = vrot.lane.b32.xlu0 %v283, 56
        %v2474 = vpop.permute.xlu0 %2473
        %2475 = vrot.lane.b32.xlu0 %v284, 56
        %v2476 = vpop.permute.xlu0 %2475
        %2477 = vrot.lane.b32.xlu0 %v285, 56
        %v2478 = vpop.permute.xlu0 %2477
        %2479 = vrot.lane.b32.xlu0 %v286, 56
        %v2480 = vpop.permute.xlu0 %2479
        %2481 = vrot.lane.b32.xlu0 %v287, 56
        %v2482 = vpop.permute.xlu0 %2481
        %2483 = vrot.lane.b32.xlu0 %v288, 56
        %v2484 = vpop.permute.xlu0 %2483
        %2485 = vrot.lane.b32.xlu0 %v289, 56
        %v2486 = vpop.permute.xlu0 %2485
        %2487 = vrot.lane.b32.xlu0 %v290, 56
        %v2488 = vpop.permute.xlu0 %2487
        %2489 = vrot.lane.b32.xlu0 %v291, 56
        %v2490 = vpop.permute.xlu0 %2489
        %2491 = vrot.lane.b32.xlu0 %v292, 56
        %v2492 = vpop.permute.xlu0 %2491
        %2493 = vrot.lane.b32.xlu0 %v293, 56
        %v2494 = vpop.permute.xlu0 %2493
        %2495 = vrot.lane.b32.xlu0 %v294, 56
        %v2496 = vpop.permute.xlu0 %2495
        %2497 = vrot.lane.b32.xlu0 %v295, 56
        %v2498 = vpop.permute.xlu0 %2497
        %2499 = vrot.lane.b32.xlu0 %v296, 56
        %v2500 = vpop.permute.xlu0 %2499
        %2501 = vrot.lane.b32.xlu0 %v297, 56
        %v2502 = vpop.permute.xlu0 %2501
        %2503 = vrot.lane.b32.xlu0 %v298, 56
        %v2504 = vpop.permute.xlu0 %2503
        %2505 = vrot.lane.b32.xlu0 %v299, 56
        %v2506 = vpop.permute.xlu0 %2505
        %2507 = vrot.lane.b32.xlu0 %v300, 56
        %v2508 = vpop.permute.xlu0 %2507
        %2509 = vrot.lane.b32.xlu0 %v301, 56
        %v2510 = vpop.permute.xlu0 %2509
        %2511 = vrot.lane.b32.xlu0 %v302, 56
        %v2512 = vpop.permute.xlu0 %2511
        %2513 = vrot.lane.b32.xlu0 %v303, 56
        %v2514 = vpop.permute.xlu0 %2513
        %2515 = vrot.lane.b32.xlu0 %v304, 56
        %v2516 = vpop.permute.xlu0 %2515
        %2517 = vrot.lane.b32.xlu0 %v305, 56
        %v2518 = vpop.permute.xlu0 %2517
        %2519 = vrot.lane.b32.xlu0 %v306, 56
        %v2520 = vpop.permute.xlu0 %2519
        %2521 = vrot.lane.b32.xlu0 %v307, 56
        %v2522 = vpop.permute.xlu0 %2521
        %2523 = vrot.lane.b32.xlu0 %v308, 56
        %v2524 = vpop.permute.xlu0 %2523
        %2525 = vrot.lane.b32.xlu0 %v309, 56
        %v2526 = vpop.permute.xlu0 %2525
        %2527 = vrot.lane.b32.xlu0 %v310, 56
        %v2528 = vpop.permute.xlu0 %2527
        %2529 = vrot.lane.b32.xlu0 %v311, 56
        %v2530 = vpop.permute.xlu0 %2529
        %2531 = vrot.lane.b32.xlu0 %v312, 56
        %v2532 = vpop.permute.xlu0 %2531
        %2533 = vrot.lane.b32.xlu0 %v313, 56
        %v2534 = vpop.permute.xlu0 %2533
        %2535 = vrot.lane.b32.xlu0 %v314, 56
        %v2536 = vpop.permute.xlu0 %2535
        %2537 = vrot.lane.b32.xlu0 %v315, 56
        %v2538 = vpop.permute.xlu0 %2537
        %2539 = vrot.lane.b32.xlu0 %v316, 56
        %v2540 = vpop.permute.xlu0 %2539
        %2541 = vrot.lane.b32.xlu0 %v317, 56
        %v2542 = vpop.permute.xlu0 %2541
        %2543 = vrot.lane.b32.xlu0 %v318, 56
        %v2544 = vpop.permute.xlu0 %2543
        %2545 = vrot.lane.b32.xlu0 %v319, 56
        %v2546 = vpop.permute.xlu0 %2545
        %2547 = vrot.lane.b32.xlu0 %v320, 56
        %v2548 = vpop.permute.xlu0 %2547
        %2549 = vrot.lane.b32.xlu0 %v321, 56
        %v2550 = vpop.permute.xlu0 %2549
        %2551 = vrot.lane.b32.xlu0 %v322, 56
        %v2552 = vpop.permute.xlu0 %2551
        %2553 = vrot.lane.b32.xlu0 %v323, 56
        %v2554 = vpop.permute.xlu0 %2553
        %2555 = vrot.lane.b32.xlu0 %v324, 56
        %v2556 = vpop.permute.xlu0 %2555
        %2557 = vrot.lane.b32.xlu0 %v325, 56
        %v2558 = vpop.permute.xlu0 %2557
        %2559 = vrot.lane.b32.xlu0 %v326, 56
        %v2560 = vpop.permute.xlu0 %2559
        %2561 = vrot.lane.b32.xlu0 %v327, 56
        %v2562 = vpop.permute.xlu0 %2561
        %2563 = vrot.lane.b32.xlu0 %v328, 56
        %v2564 = vpop.permute.xlu0 %2563
        %2565 = vrot.lane.b32.xlu0 %v329, 56
        %v2566 = vpop.permute.xlu0 %2565
        %2567 = vrot.lane.b32.xlu0 %v330, 56
        %v2568 = vpop.permute.xlu0 %2567
        %2569 = vrot.lane.b32.xlu0 %v331, 56
        %v2570 = vpop.permute.xlu0 %2569
        %2571 = vrot.lane.b32.xlu0 %v332, 56
        %v2572 = vpop.permute.xlu0 %2571
        %2573 = vrot.lane.b32.xlu0 %v333, 56
        %v2574 = vpop.permute.xlu0 %2573
        %2575 = vrot.lane.b32.xlu0 %v334, 56
        %v2576 = vpop.permute.xlu0 %2575
        %2577 = vrot.lane.b32.xlu0 %v335, 56
        %v2578 = vpop.permute.xlu0 %2577
        %2579 = vrot.lane.b32.xlu0 %v336, 56
        %v2580 = vpop.permute.xlu0 %2579
        %2581 = vrot.lane.b32.xlu0 %v337, 56
        %v2582 = vpop.permute.xlu0 %2581
        %2583 = vrot.lane.b32.xlu0 %v338, 56
        %v2584 = vpop.permute.xlu0 %2583
        %2585 = vrot.lane.b32.xlu0 %v339, 56
        %v2586 = vpop.permute.xlu0 %2585
        %2587 = vrot.lane.b32.xlu0 %v340, 56
        %v2588 = vpop.permute.xlu0 %2587
        %2589 = vrot.lane.b32.xlu0 %v341, 56
        %v2590 = vpop.permute.xlu0 %2589
        %2591 = vrot.lane.b32.xlu0 %v342, 56
        %v2592 = vpop.permute.xlu0 %2591
        %2593 = vrot.lane.b32.xlu0 %v343, 56
        %v2594 = vpop.permute.xlu0 %2593
        %2595 = vrot.lane.b32.xlu0 %v344, 56
        %v2596 = vpop.permute.xlu0 %2595
        %2597 = vrot.lane.b32.xlu0 %v345, 56
        %v2598 = vpop.permute.xlu0 %2597
        %2599 = vrot.lane.b32.xlu0 %v346, 56
        %v2600 = vpop.permute.xlu0 %2599
        %2601 = vrot.lane.b32.xlu0 %v347, 56
        %v2602 = vpop.permute.xlu0 %2601
        %2603 = vrot.lane.b32.xlu0 %v348, 56
        %v2604 = vpop.permute.xlu0 %2603
        %2605 = vrot.lane.b32.xlu0 %v349, 56
        %v2606 = vpop.permute.xlu0 %2605
        %2607 = vrot.lane.b32.xlu0 %v350, 56
        %v2608 = vpop.permute.xlu0 %2607
        %2609 = vrot.lane.b32.xlu0 %v351, 56
        %v2610 = vpop.permute.xlu0 %2609
        %2611 = vrot.lane.b32.xlu0 %v352, 56
        %v2612 = vpop.permute.xlu0 %2611
        %2613 = vrot.lane.b32.xlu0 %v353, 56
        %v2614 = vpop.permute.xlu0 %2613
        %2615 = vrot.lane.b32.xlu0 %v354, 56
        %v2616 = vpop.permute.xlu0 %2615
        %2617 = vrot.lane.b32.xlu0 %v355, 56
        %v2618 = vpop.permute.xlu0 %2617
        %2619 = vrot.lane.b32.xlu0 %v356, 56
        %v2620 = vpop.permute.xlu0 %2619
        %2621 = vrot.lane.b32.xlu0 %v357, 56
        %v2622 = vpop.permute.xlu0 %2621
        %2623 = vrot.lane.b32.xlu0 %v358, 56
        %v2624 = vpop.permute.xlu0 %2623
        %2625 = vrot.lane.b32.xlu0 %v359, 56
        %v2626 = vpop.permute.xlu0 %2625
        %2627 = vrot.lane.b32.xlu0 %v360, 56
        %v2628 = vpop.permute.xlu0 %2627
        %2629 = vrot.lane.b32.xlu0 %v361, 56
        %v2630 = vpop.permute.xlu0 %2629
        %2631 = vrot.lane.b32.xlu0 %v362, 56
        %v2632 = vpop.permute.xlu0 %2631
        %2633 = vrot.lane.b32.xlu0 %v363, 56
        %v2634 = vpop.permute.xlu0 %2633
        %2635 = vrot.lane.b32.xlu0 %v364, 56
        %v2636 = vpop.permute.xlu0 %2635
        %2637 = vrot.lane.b32.xlu0 %v365, 56
        %v2638 = vpop.permute.xlu0 %2637
        %2639 = vrot.lane.b32.xlu0 %v366, 56
        %v2640 = vpop.permute.xlu0 %2639
        %2641 = vrot.lane.b32.xlu0 %v367, 56
        %v2642 = vpop.permute.xlu0 %2641
        %2643 = vrot.lane.b32.xlu0 %v368, 56
        %v2644 = vpop.permute.xlu0 %2643
        %2645 = vrot.lane.b32.xlu0 %v369, 56
        %v2646 = vpop.permute.xlu0 %2645
        %2647 = vrot.lane.b32.xlu0 %v370, 56
        %v2648 = vpop.permute.xlu0 %2647
        %2649 = vrot.lane.b32.xlu0 %v371, 56
        %v2650 = vpop.permute.xlu0 %2649
        %2651 = vrot.lane.b32.xlu0 %v372, 56
        %v2652 = vpop.permute.xlu0 %2651
        %2653 = vrot.lane.b32.xlu0 %v373, 56
        %v2654 = vpop.permute.xlu0 %2653
        %2655 = vrot.lane.b32.xlu0 %v374, 56
        %v2656 = vpop.permute.xlu0 %2655
        %2657 = vrot.lane.b32.xlu0 %v375, 56
        %v2658 = vpop.permute.xlu0 %2657
        %2659 = vrot.lane.b32.xlu0 %v376, 56
        %v2660 = vpop.permute.xlu0 %2659
        %2661 = vrot.lane.b32.xlu0 %v377, 56
        %v2662 = vpop.permute.xlu0 %2661
        %2663 = vrot.lane.b32.xlu0 %v378, 56
        %v2664 = vpop.permute.xlu0 %2663
        %2665 = vrot.lane.b32.xlu0 %v379, 56
        %v2666 = vpop.permute.xlu0 %2665
        %2667 = vrot.lane.b32.xlu0 %v380, 56
        %v2668 = vpop.permute.xlu0 %2667
        %2669 = vrot.lane.b32.xlu0 %v381, 56
        %v2670 = vpop.permute.xlu0 %2669
        %2671 = vrot.lane.b32.xlu0 %v382, 56
        %v2672 = vpop.permute.xlu0 %2671
        %2673 = vrot.lane.b32.xlu0 %v383, 56
        %v2674 = vpop.permute.xlu0 %2673
        %2675 = vrot.lane.b32.xlu0 %v384, 56
        %v2676 = vpop.permute.xlu0 %2675
        %2677 = vrot.lane.b32.xlu0 %v385, 56
        %v2678 = vpop.permute.xlu0 %2677
        %2679 = vrot.lane.b32.xlu0 %v386, 56
        %v2680 = vpop.permute.xlu0 %2679
        %2681 = vrot.lane.b32.xlu0 %v387, 56
        %v2682 = vpop.permute.xlu0 %2681
        %2683 = vrot.lane.b32.xlu0 %v388, 56
        %v2684 = vpop.permute.xlu0 %2683
        %2685 = vrot.lane.b32.xlu0 %v389, 56
        %v2686 = vpop.permute.xlu0 %2685
        %2687 = vrot.lane.b32.xlu0 %v390, 56
        %v2688 = vpop.permute.xlu0 %2687
        %2689 = vrot.lane.b32.xlu0 %v391, 56
        %v2690 = vpop.permute.xlu0 %2689
        %2691 = vrot.lane.b32.xlu0 %v392, 56
        %v2692 = vpop.permute.xlu0 %2691
        %2693 = vrot.lane.b32.xlu0 %v393, 56
        %v2694 = vpop.permute.xlu0 %2693
        %2695 = vrot.lane.b32.xlu0 %v394, 56
        %v2696 = vpop.permute.xlu0 %2695
        %2697 = vrot.lane.b32.xlu0 %v395, 56
        %v2698 = vpop.permute.xlu0 %2697
        %2699 = vrot.lane.b32.xlu0 %v396, 56
        %v2700 = vpop.permute.xlu0 %2699
        %2701 = vrot.lane.b32.xlu0 %v397, 56
        %v2702 = vpop.permute.xlu0 %2701
        %2703 = vrot.lane.b32.xlu0 %v398, 56
        %v2704 = vpop.permute.xlu0 %2703
        %2705 = vrot.lane.b32.xlu0 %v399, 56
        %v2706 = vpop.permute.xlu0 %2705
        %2707 = vrot.lane.b32.xlu0 %v400, 56
        %v2708 = vpop.permute.xlu0 %2707
        %2709 = vrot.lane.b32.xlu0 %v401, 56
        %v2710 = vpop.permute.xlu0 %2709
        %2711 = vrot.lane.b32.xlu0 %v402, 56
        %v2712 = vpop.permute.xlu0 %2711
        %2713 = vrot.lane.b32.xlu0 %v403, 56
        %v2714 = vpop.permute.xlu0 %2713
        %2715 = vrot.lane.b32.xlu0 %v404, 56
        %v2716 = vpop.permute.xlu0 %2715
        %2717 = vrot.lane.b32.xlu0 %v405, 56
        %v2718 = vpop.permute.xlu0 %2717
        %2719 = vrot.lane.b32.xlu0 %v406, 56
        %v2720 = vpop.permute.xlu0 %2719
        %2721 = vrot.lane.b32.xlu0 %v407, 56
        %v2722 = vpop.permute.xlu0 %2721
        %2723 = vrot.lane.b32.xlu0 %v408, 56
        %v2724 = vpop.permute.xlu0 %2723
        %2725 = vrot.lane.b32.xlu0 %v409, 56
        %v2726 = vpop.permute.xlu0 %2725
        %2727 = vrot.lane.b32.xlu0 %v410, 56
        %v2728 = vpop.permute.xlu0 %2727
        %2729 = vrot.lane.b32.xlu0 %v411, 56
        %v2730 = vpop.permute.xlu0 %2729
        %2731 = vrot.lane.b32.xlu0 %v412, 56
        %v2732 = vpop.permute.xlu0 %2731
        %2733 = vrot.lane.b32.xlu0 %v413, 56
        %v2734 = vpop.permute.xlu0 %2733
        %2735 = vrot.lane.b32.xlu0 %v414, 56
        %v2736 = vpop.permute.xlu0 %2735
        %2737 = vrot.lane.b32.xlu0 %v415, 56
        %v2738 = vpop.permute.xlu0 %2737
        %2739 = vrot.lane.b32.xlu0 %v416, 56
        %v2740 = vpop.permute.xlu0 %2739
        %2741 = vrot.lane.b32.xlu0 %v417, 56
        %v2742 = vpop.permute.xlu0 %2741
        %2743 = vrot.lane.b32.xlu0 %v418, 56
        %v2744 = vpop.permute.xlu0 %2743
        %2745 = vrot.lane.b32.xlu0 %v419, 56
        %v2746 = vpop.permute.xlu0 %2745
        %2747 = vrot.lane.b32.xlu0 %v420, 56
        %v2748 = vpop.permute.xlu0 %2747
        %2749 = vrot.lane.b32.xlu0 %v421, 56
        %v2750 = vpop.permute.xlu0 %2749
        %2751 = vrot.lane.b32.xlu0 %v422, 56
        %v2752 = vpop.permute.xlu0 %2751
        %2753 = vrot.lane.b32.xlu0 %v423, 56
        %v2754 = vpop.permute.xlu0 %2753
        %2755 = vrot.lane.b32.xlu0 %v424, 56
        %v2756 = vpop.permute.xlu0 %2755
        %2757 = vrot.lane.b32.xlu0 %v425, 56
        %v2758 = vpop.permute.xlu0 %2757
        %2759 = vrot.lane.b32.xlu0 %v426, 56
        %v2760 = vpop.permute.xlu0 %2759
        %2761 = vrot.lane.b32.xlu0 %v427, 56
        %v2762 = vpop.permute.xlu0 %2761
        %2763 = vrot.lane.b32.xlu0 %v428, 56
        %v2764 = vpop.permute.xlu0 %2763
        %2765 = vrot.lane.b32.xlu0 %v429, 56
        %v2766 = vpop.permute.xlu0 %2765
        %2767 = vrot.lane.b32.xlu0 %v430, 56
        %v2768 = vpop.permute.xlu0 %2767
        %2769 = vrot.lane.b32.xlu0 %v431, 56
        %v2770 = vpop.permute.xlu0 %2769
        %2771 = vrot.lane.b32.xlu0 %v432, 56
        %v2772 = vpop.permute.xlu0 %2771
        %2773 = vrot.lane.b32.xlu0 %v433, 56
        %v2774 = vpop.permute.xlu0 %2773
        %2775 = vrot.lane.b32.xlu0 %v434, 56
        %v2776 = vpop.permute.xlu0 %2775
        %2777 = vrot.lane.b32.xlu0 %v435, 56
        %v2778 = vpop.permute.xlu0 %2777
        %2779 = vrot.lane.b32.xlu0 %v436, 56
        %v2780 = vpop.permute.xlu0 %2779
        %2781 = vrot.lane.b32.xlu0 %v437, 56
        %v2782 = vpop.permute.xlu0 %2781
        %2783 = vrot.lane.b32.xlu0 %v438, 56
        %v2784 = vpop.permute.xlu0 %2783
        %2785 = vrot.lane.b32.xlu0 %v439, 56
        %v2786 = vpop.permute.xlu0 %2785
        %2787 = vrot.lane.b32.xlu0 %v440, 56
        %v2788 = vpop.permute.xlu0 %2787
        %2789 = vrot.lane.b32.xlu0 %v441, 56
        %v2790 = vpop.permute.xlu0 %2789
        %2791 = vrot.lane.b32.xlu0 %v442, 56
        %v2792 = vpop.permute.xlu0 %2791
        %2793 = vrot.lane.b32.xlu0 %v443, 56
        %v2794 = vpop.permute.xlu0 %2793
        %2795 = vrot.lane.b32.xlu0 %v444, 56
        %v2796 = vpop.permute.xlu0 %2795
        %2797 = vrot.lane.b32.xlu0 %v445, 56
        %v2798 = vpop.permute.xlu0 %2797
        %2799 = vrot.lane.b32.xlu0 %v446, 56
        %v2800 = vpop.permute.xlu0 %2799
        %2801 = vrot.lane.b32.xlu0 %v447, 56
        %v2802 = vpop.permute.xlu0 %2801
        %2803 = vrot.lane.b32.xlu0 %v448, 56
        %v2804 = vpop.permute.xlu0 %2803
        %2805 = vrot.lane.b32.xlu0 %v449, 56
        %v2806 = vpop.permute.xlu0 %2805
        %2807 = vrot.lane.b32.xlu0 %v450, 56
        %v2808 = vpop.permute.xlu0 %2807
        %2809 = vrot.lane.b32.xlu0 %v451, 56
        %v2810 = vpop.permute.xlu0 %2809
        %2811 = vrot.lane.b32.xlu0 %v452, 56
        %v2812 = vpop.permute.xlu0 %2811
        %2813 = vrot.lane.b32.xlu0 %v453, 56
        %v2814 = vpop.permute.xlu0 %2813
        %2815 = vrot.lane.b32.xlu0 %v454, 56
        %v2816 = vpop.permute.xlu0 %2815
        %2817 = vrot.lane.b32.xlu0 %v455, 56
        %v2818 = vpop.permute.xlu0 %2817
        %2819 = vrot.lane.b32.xlu0 %v456, 56
        %v2820 = vpop.permute.xlu0 %2819
        %2821 = vrot.lane.b32.xlu0 %v457, 56
        %v2822 = vpop.permute.xlu0 %2821
        %2823 = vrot.lane.b32.xlu0 %v458, 56
        %v2824 = vpop.permute.xlu0 %2823
        %2825 = vrot.lane.b32.xlu0 %v459, 56
        %v2826 = vpop.permute.xlu0 %2825
        %2827 = vrot.lane.b32.xlu0 %v460, 56
        %v2828 = vpop.permute.xlu0 %2827
        %2829 = vrot.lane.b32.xlu0 %v461, 56
        %v2830 = vpop.permute.xlu0 %2829
        %2831 = vrot.lane.b32.xlu0 %v462, 56
        %v2832 = vpop.permute.xlu0 %2831
        %2833 = vrot.lane.b32.xlu0 %v463, 56
        %v2834 = vpop.permute.xlu0 %2833
        %2835 = vrot.lane.b32.xlu0 %v464, 56
        %v2836 = vpop.permute.xlu0 %2835
        %2837 = vrot.lane.b32.xlu0 %v465, 56
        %v2838 = vpop.permute.xlu0 %2837
        %2839 = vrot.lane.b32.xlu0 %v466, 56
        %v2840 = vpop.permute.xlu0 %2839
        %2841 = vrot.lane.b32.xlu0 %v467, 56
        %v2842 = vpop.permute.xlu0 %2841
        %2843 = vrot.lane.b32.xlu0 %v468, 56
        %v2844 = vpop.permute.xlu0 %2843
        %2845 = vrot.lane.b32.xlu0 %v469, 56
        %v2846 = vpop.permute.xlu0 %2845
        %2847 = vrot.lane.b32.xlu0 %v470, 56
        %v2848 = vpop.permute.xlu0 %2847
        %2849 = vrot.lane.b32.xlu0 %v471, 56
        %v2850 = vpop.permute.xlu0 %2849
        %2851 = vrot.lane.b32.xlu0 %v472, 56
        %v2852 = vpop.permute.xlu0 %2851
        %2853 = vrot.lane.b32.xlu0 %v473, 56
        %v2854 = vpop.permute.xlu0 %2853
        %2855 = vrot.lane.b32.xlu0 %v474, 56
        %v2856 = vpop.permute.xlu0 %2855
        %2857 = vrot.lane.b32.xlu0 %v475, 56
        %v2858 = vpop.permute.xlu0 %2857
        %2859 = vrot.lane.b32.xlu0 %v476, 56
        %v2860 = vpop.permute.xlu0 %2859
        %2861 = vrot.lane.b32.xlu0 %v477, 56
        %v2862 = vpop.permute.xlu0 %2861
        %2863 = vrot.lane.b32.xlu0 %v478, 56
        %v2864 = vpop.permute.xlu0 %2863
        %2865 = vrot.lane.b32.xlu0 %v479, 56
        %v2866 = vpop.permute.xlu0 %2865
        %2867 = vrot.lane.b32.xlu0 %v480, 56
        %v2868 = vpop.permute.xlu0 %2867
        %2869 = vrot.lane.b32.xlu0 %v481, 56
        %v2870 = vpop.permute.xlu0 %2869
        %2871 = vrot.lane.b32.xlu0 %v482, 56
        %v2872 = vpop.permute.xlu0 %2871
        %2873 = vrot.lane.b32.xlu0 %v483, 56
        %v2874 = vpop.permute.xlu0 %2873
        %2875 = vrot.lane.b32.xlu0 %v484, 56
        %v2876 = vpop.permute.xlu0 %2875
        %2877 = vrot.lane.b32.xlu0 %v485, 56
        %v2878 = vpop.permute.xlu0 %2877
        %2879 = vrot.lane.b32.xlu0 %v486, 56
        %v2880 = vpop.permute.xlu0 %2879
        %2881 = vrot.lane.b32.xlu0 %v487, 56
        %v2882 = vpop.permute.xlu0 %2881
        %2883 = vrot.lane.b32.xlu0 %v488, 56
        %v2884 = vpop.permute.xlu0 %2883
        %2885 = vrot.lane.b32.xlu0 %v489, 56
        %v2886 = vpop.permute.xlu0 %2885
        %2887 = vrot.lane.b32.xlu0 %v490, 56
        %v2888 = vpop.permute.xlu0 %2887
        %2889 = vrot.lane.b32.xlu0 %v491, 56
        %v2890 = vpop.permute.xlu0 %2889
        %2891 = vrot.lane.b32.xlu0 %v492, 56
        %v2892 = vpop.permute.xlu0 %2891
        %2893 = vrot.lane.b32.xlu0 %v493, 56
        %v2894 = vpop.permute.xlu0 %2893
        %2895 = vrot.lane.b32.xlu0 %v494, 56
        %v2896 = vpop.permute.xlu0 %2895
        %2897 = vrot.lane.b32.xlu0 %v495, 56
        %v2898 = vpop.permute.xlu0 %2897
        %2899 = vrot.lane.b32.xlu0 %v496, 56
        %v2900 = vpop.permute.xlu0 %2899
        %2901 = vrot.lane.b32.xlu0 %v497, 56
        %v2902 = vpop.permute.xlu0 %2901
        %2903 = vrot.lane.b32.xlu0 %v498, 56
        %v2904 = vpop.permute.xlu0 %2903
        %2905 = vrot.lane.b32.xlu0 %v499, 56
        %v2906 = vpop.permute.xlu0 %2905
        %2907 = vrot.lane.b32.xlu0 %v500, 56
        %v2908 = vpop.permute.xlu0 %2907
        %2909 = vrot.lane.b32.xlu0 %v501, 56
        %v2910 = vpop.permute.xlu0 %2909
        %2911 = vrot.lane.b32.xlu0 %v502, 56
        %v2912 = vpop.permute.xlu0 %2911
        %2913 = vrot.lane.b32.xlu0 %v503, 56
        %v2914 = vpop.permute.xlu0 %2913
        %2915 = vrot.lane.b32.xlu0 %v504, 56
        %v2916 = vpop.permute.xlu0 %2915
        %2917 = vrot.lane.b32.xlu0 %v505, 56
        %v2918 = vpop.permute.xlu0 %2917
        %2919 = vrot.lane.b32.xlu0 %v506, 56
        %v2920 = vpop.permute.xlu0 %2919
        %2921 = vrot.lane.b32.xlu0 %v507, 56
        %v2922 = vpop.permute.xlu0 %2921
        %2923 = vrot.lane.b32.xlu0 %v508, 56
        %v2924 = vpop.permute.xlu0 %2923
        %2925 = vrot.lane.b32.xlu0 %v509, 56
        %v2926 = vpop.permute.xlu0 %2925
        %2927 = vrot.lane.b32.xlu0 %v510, 56
        %v2928 = vpop.permute.xlu0 %2927
        %2929 = vrot.lane.b32.xlu0 %v511, 56
        %v2930 = vpop.permute.xlu0 %2929
        %2931 = vrot.lane.b32.xlu0 %v512, 56
        %v2932 = vpop.permute.xlu0 %2931
        %2933 = vrot.lane.b32.xlu0 %v513, 56
        %v2934 = vpop.permute.xlu0 %2933
        %2935 = vrot.lane.b32.xlu0 %v514, 56
        %v2936 = vpop.permute.xlu0 %2935
        %2937 = vrot.lane.b32.xlu0 %v515, 56
        %v2938 = vpop.permute.xlu0 %2937
        %2939 = vrot.lane.b32.xlu0 %v516, 56
        %v2940 = vpop.permute.xlu0 %2939
        %2941 = vrot.lane.b32.xlu0 %v517, 56
        %v2942 = vpop.permute.xlu0 %2941
        %2943 = vrot.lane.b32.xlu0 %v518, 56
        %v2944 = vpop.permute.xlu0 %2943
        %2945 = vrot.lane.b32.xlu0 %v519, 56
        %v2946 = vpop.permute.xlu0 %2945
        %2947 = vrot.lane.b32.xlu0 %v520, 56
        %v2948 = vpop.permute.xlu0 %2947
        %2949 = vrot.lane.b32.xlu0 %v521, 56
        %v2950 = vpop.permute.xlu0 %2949
        %2951 = vrot.lane.b32.xlu0 %v522, 56
        %v2952 = vpop.permute.xlu0 %2951
        %2953 = vrot.lane.b32.xlu0 %v523, 56
        %v2954 = vpop.permute.xlu0 %2953
        %2955 = vrot.lane.b32.xlu0 %v524, 56
        %v2956 = vpop.permute.xlu0 %2955
        %2957 = vrot.lane.b32.xlu0 %v525, 56
        %v2958 = vpop.permute.xlu0 %2957
        %2959 = vrot.lane.b32.xlu0 %v526, 56
        %v2960 = vpop.permute.xlu0 %2959
        %2961 = vrot.lane.b32.xlu0 %v527, 56
        %v2962 = vpop.permute.xlu0 %2961
        %2963 = vrot.lane.b32.xlu0 %v528, 56
        %v2964 = vpop.permute.xlu0 %2963
        %2965 = vrot.lane.b32.xlu0 %v529, 56
        %v2966 = vpop.permute.xlu0 %2965
        %2967 = vrot.lane.b32.xlu0 %v530, 56
        %v2968 = vpop.permute.xlu0 %2967
        %2969 = vrot.lane.b32.xlu0 %v531, 56
        %v2970 = vpop.permute.xlu0 %2969
        %2971 = vrot.lane.b32.xlu0 %v532, 56
        %v2972 = vpop.permute.xlu0 %2971
        %2973 = vrot.lane.b32.xlu0 %v533, 56
        %v2974 = vpop.permute.xlu0 %2973
        %2975 = vrot.lane.b32.xlu0 %v534, 56
        %v2976 = vpop.permute.xlu0 %2975
        %2977 = vrot.lane.b32.xlu0 %v535, 56
        %v2978 = vpop.permute.xlu0 %2977
        %2979 = vrot.lane.b32.xlu0 %v536, 56
        %v2980 = vpop.permute.xlu0 %2979
        %2981 = vrot.lane.b32.xlu0 %v537, 56
        %v2982 = vpop.permute.xlu0 %2981
        %2983 = vrot.lane.b32.xlu0 %v538, 56
        %v2984 = vpop.permute.xlu0 %2983
        %2985 = vrot.lane.b32.xlu0 %v539, 56
        %v2986 = vpop.permute.xlu0 %2985
        %2987 = vrot.lane.b32.xlu0 %v540, 56
        %v2988 = vpop.permute.xlu0 %2987
        %2989 = vrot.lane.b32.xlu0 %v541, 56
        %v2990 = vpop.permute.xlu0 %2989
        %2991 = vrot.lane.b32.xlu0 %v542, 56
        %v2992 = vpop.permute.xlu0 %2991
        %2993 = vrot.lane.b32.xlu0 %v543, 56
        %v2994 = vpop.permute.xlu0 %2993
        %2995 = vrot.lane.b32.xlu0 %v544, 56
        %v2996 = vpop.permute.xlu0 %2995
        %2997 = vrot.lane.b32.xlu0 %v545, 56
        %v2998 = vpop.permute.xlu0 %2997
        %2999 = vrot.lane.b32.xlu0 %v546, 56
        %v3000 = vpop.permute.xlu0 %2999
        %3001 = vrot.lane.b32.xlu0 %v547, 56
        %v3002 = vpop.permute.xlu0 %3001
        %3003 = vrot.lane.b32.xlu0 %v548, 56
        %v3004 = vpop.permute.xlu0 %3003
        %3005 = vrot.lane.b32.xlu0 %v549, 56
        %v3006 = vpop.permute.xlu0 %3005
        %3007 = vrot.lane.b32.xlu0 %v550, 56
        %v3008 = vpop.permute.xlu0 %3007
        %3009 = vrot.lane.b32.xlu0 %v551, 56
        %v3010 = vpop.permute.xlu0 %3009
        %3011 = vrot.lane.b32.xlu0 %v552, 56
        %v3012 = vpop.permute.xlu0 %3011
        %3013 = vrot.lane.b32.xlu0 %v553, 56
        %v3014 = vpop.permute.xlu0 %3013
        %3015 = vrot.lane.b32.xlu0 %v554, 56
        %v3016 = vpop.permute.xlu0 %3015
        %3017 = vrot.lane.b32.xlu0 %v555, 56
        %v3018 = vpop.permute.xlu0 %3017
        %3019 = vrot.lane.b32.xlu0 %v556, 56
        %v3020 = vpop.permute.xlu0 %3019
        %3021 = vrot.lane.b32.xlu0 %v557, 56
        %v3022 = vpop.permute.xlu0 %3021
        %3023 = vrot.lane.b32.xlu0 %v558, 56
        %v3024 = vpop.permute.xlu0 %3023
        %3025 = vrot.lane.b32.xlu0 %v559, 56
        %v3026 = vpop.permute.xlu0 %3025
        %3027 = vrot.lane.b32.xlu0 %v560, 56
        %v3028 = vpop.permute.xlu0 %3027
        %3029 = vrot.lane.b32.xlu0 %v561, 56
        %v3030 = vpop.permute.xlu0 %3029
        %3031 = vrot.lane.b32.xlu0 %v562, 56
        %v3032 = vpop.permute.xlu0 %3031
        %3033 = vrot.lane.b32.xlu0 %v563, 56
        %v3034 = vpop.permute.xlu0 %3033
        %3035 = vrot.lane.b32.xlu0 %v564, 56
        %v3036 = vpop.permute.xlu0 %3035
        %3037 = vrot.lane.b32.xlu0 %v565, 56
        %v3038 = vpop.permute.xlu0 %3037
        %3039 = vrot.lane.b32.xlu0 %v566, 56
        %v3040 = vpop.permute.xlu0 %3039
        %3041 = vrot.lane.b32.xlu0 %v567, 56
        %v3042 = vpop.permute.xlu0 %3041
        %3043 = vrot.lane.b32.xlu0 %v568, 56
        %v3044 = vpop.permute.xlu0 %3043
        %3045 = vrot.lane.b32.xlu0 %v569, 56
        %v3046 = vpop.permute.xlu0 %3045
        %3047 = vrot.lane.b32.xlu0 %v570, 56
        %v3048 = vpop.permute.xlu0 %3047
        %3049 = vrot.lane.b32.xlu0 %v571, 56
        %v3050 = vpop.permute.xlu0 %3049
        %3051 = vrot.lane.b32.xlu0 %v572, 56
        %v3052 = vpop.permute.xlu0 %3051
        %3053 = vrot.lane.b32.xlu0 %v573, 56
        %v3054 = vpop.permute.xlu0 %3053
        %3055 = vrot.lane.b32.xlu0 %v574, 56
        %v3056 = vpop.permute.xlu0 %3055
        %3057 = vrot.lane.b32.xlu0 %v575, 56
        %v3058 = vpop.permute.xlu0 %3057
        %3059 = vrot.lane.b32.xlu0 %v576, 56
        %v3060 = vpop.permute.xlu0 %3059
        %3061 = vrot.lane.b32.xlu0 %v577, 56
        %v3062 = vpop.permute.xlu0 %3061
        %3063 = vrot.lane.b32.xlu0 %v578, 56
        %v3064 = vpop.permute.xlu0 %3063
        %3065 = vrot.lane.b32.xlu0 %v579, 56
        %v3066 = vpop.permute.xlu0 %3065
        %3067 = vrot.lane.b32.xlu0 %v580, 56
        %v3068 = vpop.permute.xlu0 %3067
        %3069 = vrot.lane.b32.xlu0 %v581, 56
        %v3070 = vpop.permute.xlu0 %3069
        %3071 = vrot.lane.b32.xlu0 %v582, 56
        %v3072 = vpop.permute.xlu0 %3071
        %3073 = vrot.lane.b32.xlu0 %v583, 56
        %v3074 = vpop.permute.xlu0 %3073
        %3075 = vrot.lane.b32.xlu0 %v584, 56
        %v3076 = vpop.permute.xlu0 %3075
        %3077 = vrot.lane.b32.xlu0 %v585, 56
        %v3078 = vpop.permute.xlu0 %3077
        %3079 = vrot.lane.b32.xlu0 %v586, 56
        %v3080 = vpop.permute.xlu0 %3079
        %3081 = vrot.lane.b32.xlu0 %v587, 56
        %v3082 = vpop.permute.xlu0 %3081
        %3083 = vrot.lane.b32.xlu0 %v588, 56
        %v3084 = vpop.permute.xlu0 %3083
        %3085 = vrot.lane.b32.xlu0 %v589, 56
        %v3086 = vpop.permute.xlu0 %3085
        %3087 = vrot.lane.b32.xlu0 %v590, 56
        %v3088 = vpop.permute.xlu0 %3087
        %3089 = vrot.lane.b32.xlu0 %v591, 56
        %v3090 = vpop.permute.xlu0 %3089
        %3091 = vrot.lane.b32.xlu0 %v592, 56
        %v3092 = vpop.permute.xlu0 %3091
        %3093 = vrot.lane.b32.xlu0 %v593, 56
        %v3094 = vpop.permute.xlu0 %3093
        %3095 = vrot.lane.b32.xlu0 %v594, 56
        %v3096 = vpop.permute.xlu0 %3095
        %3097 = vrot.lane.b32.xlu0 %v595, 56
        %v3098 = vpop.permute.xlu0 %3097
        %3099 = vrot.lane.b32.xlu0 %v596, 56
        %v3100 = vpop.permute.xlu0 %3099
        %3101 = vrot.lane.b32.xlu0 %v597, 56
        %v3102 = vpop.permute.xlu0 %3101
        %3103 = vrot.lane.b32.xlu0 %v598, 56
        %v3104 = vpop.permute.xlu0 %3103
        %3105 = vrot.lane.b32.xlu0 %v599, 56
        %v3106 = vpop.permute.xlu0 %3105
        %3107 = vrot.lane.b32.xlu0 %v600, 56
        %v3108 = vpop.permute.xlu0 %3107
        %3109 = vrot.lane.b32.xlu0 %v601, 56
        %v3110 = vpop.permute.xlu0 %3109
        %3111 = vrot.lane.b32.xlu0 %v602, 56
        %v3112 = vpop.permute.xlu0 %3111
        %3113 = vrot.lane.b32.xlu0 %v603, 56
        %v3114 = vpop.permute.xlu0 %3113
        %3115 = vrot.lane.b32.xlu0 %v604, 56
        %v3116 = vpop.permute.xlu0 %3115
        %3117 = vrot.lane.b32.xlu0 %v605, 56
        %v3118 = vpop.permute.xlu0 %3117
        %3119 = vrot.lane.b32.xlu0 %v606, 56
        %v3120 = vpop.permute.xlu0 %3119
        %3121 = vrot.lane.b32.xlu0 %v607, 56
        %v3122 = vpop.permute.xlu0 %3121
        %3123 = vrot.lane.b32.xlu0 %v608, 56
        %v3124 = vpop.permute.xlu0 %3123
        %3125 = vrot.lane.b32.xlu0 %v609, 56
        %v3126 = vpop.permute.xlu0 %3125
        %3127 = vrot.lane.b32.xlu0 %v610, 56
        %v3128 = vpop.permute.xlu0 %3127
        %3129 = vrot.lane.b32.xlu0 %v611, 56
        %v3130 = vpop.permute.xlu0 %3129
        %3131 = vrot.lane.b32.xlu0 %v612, 56
        %v3132 = vpop.permute.xlu0 %3131
        %3133 = vrot.lane.b32.xlu0 %v613, 56
        %v3134 = vpop.permute.xlu0 %3133
        %3135 = vrot.lane.b32.xlu0 %v614, 56
        %v3136 = vpop.permute.xlu0 %3135
        %3137 = vrot.lane.b32.xlu0 %v615, 56
        %v3138 = vpop.permute.xlu0 %3137
        %3139 = vrot.lane.b32.xlu0 %v616, 56
        %v3140 = vpop.permute.xlu0 %3139
        %3141 = vrot.lane.b32.xlu0 %v617, 56
        %v3142 = vpop.permute.xlu0 %3141
        %3143 = vrot.lane.b32.xlu0 %v618, 56
        %v3144 = vpop.permute.xlu0 %3143
        %3145 = vrot.lane.b32.xlu0 %v619, 56
        %v3146 = vpop.permute.xlu0 %3145
        %3147 = vrot.lane.b32.xlu0 %v620, 56
        %v3148 = vpop.permute.xlu0 %3147
        %3149 = vrot.lane.b32.xlu0 %v621, 56
        %v3150 = vpop.permute.xlu0 %3149
        %3151 = vrot.lane.b32.xlu0 %v622, 56
        %v3152 = vpop.permute.xlu0 %3151
        %3153 = vrot.lane.b32.xlu0 %v623, 56
        %v3154 = vpop.permute.xlu0 %3153
        %3155 = vrot.lane.b32.xlu0 %v624, 56
        %v3156 = vpop.permute.xlu0 %3155
        %3157 = vrot.lane.b32.xlu0 %v625, 56
        %v3158 = vpop.permute.xlu0 %3157
        %3159 = vrot.lane.b32.xlu0 %v626, 56
        %v3160 = vpop.permute.xlu0 %3159
        %3161 = vrot.lane.b32.xlu0 %v627, 56
        %v3162 = vpop.permute.xlu0 %3161
        %3163 = vrot.lane.b32.xlu0 %v628, 56
        %v3164 = vpop.permute.xlu0 %3163
        %3165 = vrot.lane.b32.xlu0 %v629, 56
        %v3166 = vpop.permute.xlu0 %3165
        %3167 = vrot.lane.b32.xlu0 %v630, 56
        %v3168 = vpop.permute.xlu0 %3167
        %3169 = vrot.lane.b32.xlu0 %v631, 56
        %v3170 = vpop.permute.xlu0 %3169
        %3171 = vrot.lane.b32.xlu0 %v632, 56
        %v3172 = vpop.permute.xlu0 %3171
        %3173 = vrot.lane.b32.xlu0 %v633, 56
        %v3174 = vpop.permute.xlu0 %3173
        %3175 = vrot.lane.b32.xlu0 %v634, 56
        %v3176 = vpop.permute.xlu0 %3175
        %3177 = vrot.lane.b32.xlu0 %v635, 56
        %v3178 = vpop.permute.xlu0 %3177
        %3179 = vrot.lane.b32.xlu0 %v636, 56
        %v3180 = vpop.permute.xlu0 %3179
        %3181 = vrot.lane.b32.xlu0 %v637, 56
        %v3182 = vpop.permute.xlu0 %3181
        %3183 = vrot.lane.b32.xlu0 %v638, 56
        %v3184 = vpop.permute.xlu0 %3183
        %3185 = vrot.lane.b32.xlu0 %v639, 56
        %v3186 = vpop.permute.xlu0 %3185
        %3187 = vrot.lane.b32.xlu0 %v640, 56
        %v3188 = vpop.permute.xlu0 %3187
        %3189 = vrot.lane.b32.xlu0 %v641, 56
        %v3190 = vpop.permute.xlu0 %3189
        %3191 = vrot.lane.b32.xlu0 %v642, 56
        %v3192 = vpop.permute.xlu0 %3191
        %3193 = vrot.lane.b32.xlu0 %v643, 56
        %v3194 = vpop.permute.xlu0 %3193
        %3195 = vrot.lane.b32.xlu0 %v644, 56
        %v3196 = vpop.permute.xlu0 %3195
        %3197 = vrot.lane.b32.xlu0 %v645, 56
        %v3198 = vpop.permute.xlu0 %3197
        %3199 = vrot.lane.b32.xlu0 %v646, 56
        %v3200 = vpop.permute.xlu0 %3199
        %3201 = vrot.lane.b32.xlu0 %v647, 56
        %v3202 = vpop.permute.xlu0 %3201
        %3203 = vrot.lane.b32.xlu0 %v648, 56
        %v3204 = vpop.permute.xlu0 %3203
        %3205 = vrot.lane.b32.xlu0 %v649, 56
        %v3206 = vpop.permute.xlu0 %3205
        %3207 = vrot.lane.b32.xlu0 %v650, 56
        %v3208 = vpop.permute.xlu0 %3207
        %3209 = vrot.lane.b32.xlu0 %v651, 56
        %v3210 = vpop.permute.xlu0 %3209
        %3211 = vrot.lane.b32.xlu0 %v652, 56
        %v3212 = vpop.permute.xlu0 %3211
        %3213 = vrot.lane.b32.xlu0 %v653, 56
        %v3214 = vpop.permute.xlu0 %3213
        %3215 = vrot.lane.b32.xlu0 %v654, 56
        %v3216 = vpop.permute.xlu0 %3215
        %3217 = vrot.lane.b32.xlu0 %v655, 56
        %v3218 = vpop.permute.xlu0 %3217
        %3219 = vrot.lane.b32.xlu0 %v656, 56
        %v3220 = vpop.permute.xlu0 %3219
        %3221 = vrot.lane.b32.xlu0 %v657, 56
        %v3222 = vpop.permute.xlu0 %3221
        %3223 = vrot.lane.b32.xlu0 %v658, 56
        %v3224 = vpop.permute.xlu0 %3223
        %3225 = vrot.lane.b32.xlu0 %v659, 56
        %v3226 = vpop.permute.xlu0 %3225
        %3227 = vrot.lane.b32.xlu0 %v660, 56
        %v3228 = vpop.permute.xlu0 %3227
        %3229 = vrot.lane.b32.xlu0 %v661, 56
        %v3230 = vpop.permute.xlu0 %3229
        %3231 = vrot.lane.b32.xlu0 %v662, 56
        %v3232 = vpop.permute.xlu0 %3231
        %3233 = vrot.lane.b32.xlu0 %v663, 56
        %v3234 = vpop.permute.xlu0 %3233
        %3235 = vrot.lane.b32.xlu0 %v664, 56
        %v3236 = vpop.permute.xlu0 %3235
        %3237 = vrot.lane.b32.xlu0 %v665, 56
        %v3238 = vpop.permute.xlu0 %3237
        %3239 = vrot.lane.b32.xlu0 %v666, 56
        %v3240 = vpop.permute.xlu0 %3239
        %3241 = vrot.lane.b32.xlu0 %v667, 56
        %v3242 = vpop.permute.xlu0 %3241
        %3243 = vrot.lane.b32.xlu0 %v668, 56
        %v3244 = vpop.permute.xlu0 %3243
        %3245 = vrot.lane.b32.xlu0 %v669, 56
        %v3246 = vpop.permute.xlu0 %3245
        %3247 = vrot.lane.b32.xlu0 %v670, 56
        %v3248 = vpop.permute.xlu0 %3247
        %3249 = vrot.lane.b32.xlu0 %v671, 56
        %v3250 = vpop.permute.xlu0 %3249
        %3251 = vrot.lane.b32.xlu0 %v672, 56
        %v3252 = vpop.permute.xlu0 %3251
        %3253 = vrot.lane.b32.xlu0 %v673, 56
        %v3254 = vpop.permute.xlu0 %3253
        %3255 = vrot.lane.b32.xlu0 %v674, 56
        %v3256 = vpop.permute.xlu0 %3255
        %3257 = vrot.lane.b32.xlu0 %v675, 56
        %v3258 = vpop.permute.xlu0 %3257
        %3259 = vrot.lane.b32.xlu0 %v676, 56
        %v3260 = vpop.permute.xlu0 %3259
        %3261 = vrot.lane.b32.xlu0 %v677, 56
        %v3262 = vpop.permute.xlu0 %3261
        %3263 = vrot.lane.b32.xlu0 %v678, 56
        %v3264 = vpop.permute.xlu0 %3263
        %3265 = vrot.lane.b32.xlu0 %v679, 56
        %v3266 = vpop.permute.xlu0 %3265
        %3267 = vrot.lane.b32.xlu0 %v680, 56
        %v3268 = vpop.permute.xlu0 %3267
        %3269 = vrot.lane.b32.xlu0 %v681, 56
        %v3270 = vpop.permute.xlu0 %3269
        %3271 = vrot.lane.b32.xlu0 %v682, 56
        %v3272 = vpop.permute.xlu0 %3271
        %3273 = vrot.lane.b32.xlu0 %v683, 56
        %v3274 = vpop.permute.xlu0 %3273
        %3275 = vrot.lane.b32.xlu0 %v684, 56
        %v3276 = vpop.permute.xlu0 %3275
        %3277 = vrot.lane.b32.xlu0 %v685, 56
        %v3278 = vpop.permute.xlu0 %3277
        %3279 = vrot.lane.b32.xlu0 %v686, 56
        %v3280 = vpop.permute.xlu0 %3279
        %3281 = vrot.lane.b32.xlu0 %v687, 56
        %v3282 = vpop.permute.xlu0 %3281
        %3283 = vrot.lane.b32.xlu0 %v688, 56
        %v3284 = vpop.permute.xlu0 %3283
        %3285 = vrot.lane.b32.xlu0 %v689, 56
        %v3286 = vpop.permute.xlu0 %3285
        %3287 = vrot.lane.b32.xlu0 %v690, 56
        %v3288 = vpop.permute.xlu0 %3287
        %3289 = vrot.lane.b32.xlu0 %v691, 56
        %v3290 = vpop.permute.xlu0 %3289
        %3291 = vrot.lane.b32.xlu0 %v692, 56
        %v3292 = vpop.permute.xlu0 %3291
        %3293 = vrot.lane.b32.xlu0 %v693, 56
        %v3294 = vpop.permute.xlu0 %3293
        %3295 = vrot.lane.b32.xlu0 %v694, 56
        %v3296 = vpop.permute.xlu0 %3295
        %3297 = vrot.lane.b32.xlu0 %v695, 56
        %v3298 = vpop.permute.xlu0 %3297
        %3299 = vrot.lane.b32.xlu0 %v696, 56
        %v3300 = vpop.permute.xlu0 %3299
        %3301 = vrot.lane.b32.xlu0 %v697, 56
        %v3302 = vpop.permute.xlu0 %3301
        %3303 = vrot.lane.b32.xlu0 %v698, 56
        %v3304 = vpop.permute.xlu0 %3303
        %3305 = vrot.lane.b32.xlu0 %v699, 56
        %v3306 = vpop.permute.xlu0 %3305
        %3307 = vrot.lane.b32.xlu0 %v700, 56
        %v3308 = vpop.permute.xlu0 %3307
        %3309 = vrot.lane.b32.xlu0 %v701, 56
        %v3310 = vpop.permute.xlu0 %3309
        %3311 = vrot.lane.b32.xlu0 %v702, 56
        %v3312 = vpop.permute.xlu0 %3311
        %3313 = vrot.lane.b32.xlu0 %v703, 56
        %v3314 = vpop.permute.xlu0 %3313
        %3315 = vrot.lane.b32.xlu0 %v704, 56
        %v3316 = vpop.permute.xlu0 %3315
        %3317 = vrot.lane.b32.xlu0 %v705, 56
        %v3318 = vpop.permute.xlu0 %3317
        %3319 = vrot.lane.b32.xlu0 %v706, 56
        %v3320 = vpop.permute.xlu0 %3319
        %3321 = vrot.lane.b32.xlu0 %v707, 56
        %v3322 = vpop.permute.xlu0 %3321
        %3323 = vrot.lane.b32.xlu0 %v708, 56
        %v3324 = vpop.permute.xlu0 %3323
        %3325 = vrot.lane.b32.xlu0 %v709, 56
        %v3326 = vpop.permute.xlu0 %3325
        %3327 = vrot.lane.b32.xlu0 %v710, 56
        %v3328 = vpop.permute.xlu0 %3327
        %3329 = vrot.lane.b32.xlu0 %v711, 56
        %v3330 = vpop.permute.xlu0 %3329
        %3331 = vrot.lane.b32.xlu0 %v712, 56
        %v3332 = vpop.permute.xlu0 %3331
        %3333 = vrot.lane.b32.xlu0 %v713, 56
        %v3334 = vpop.permute.xlu0 %3333
        %3335 = vrot.lane.b32.xlu0 %v714, 56
        %v3336 = vpop.permute.xlu0 %3335
        %3337 = vrot.lane.b32.xlu0 %v715, 56
        %v3338 = vpop.permute.xlu0 %3337
        %3339 = vrot.lane.b32.xlu0 %v716, 56
        %v3340 = vpop.permute.xlu0 %3339
        %3341 = vrot.lane.b32.xlu0 %v717, 56
        %v3342 = vpop.permute.xlu0 %3341
        %3343 = vrot.lane.b32.xlu0 %v718, 56
        %v3344 = vpop.permute.xlu0 %3343
        %3345 = vrot.lane.b32.xlu0 %v719, 56
        %v3346 = vpop.permute.xlu0 %3345
        %3347 = vrot.lane.b32.xlu0 %v720, 56
        %v3348 = vpop.permute.xlu0 %3347
        %3349 = vrot.lane.b32.xlu0 %v721, 56
        %v3350 = vpop.permute.xlu0 %3349
        %3351 = vrot.lane.b32.xlu0 %v722, 56
        %v3352 = vpop.permute.xlu0 %3351
        %3353 = vrot.lane.b32.xlu0 %v723, 56
        %v3354 = vpop.permute.xlu0 %3353
        %3355 = vrot.lane.b32.xlu0 %v724, 56
        %v3356 = vpop.permute.xlu0 %3355
        %3357 = vrot.lane.b32.xlu0 %v725, 56
        %v3358 = vpop.permute.xlu0 %3357
        %3359 = vrot.lane.b32.xlu0 %v726, 56
        %v3360 = vpop.permute.xlu0 %3359
        %3361 = vrot.lane.b32.xlu0 %v727, 56
        %v3362 = vpop.permute.xlu0 %3361
        %3363 = vrot.lane.b32.xlu0 %v728, 56
        %v3364 = vpop.permute.xlu0 %3363
        %3365 = vrot.lane.b32.xlu0 %v729, 56
        %v3366 = vpop.permute.xlu0 %3365
        %3367 = vrot.lane.b32.xlu0 %v730, 56
        %v3368 = vpop.permute.xlu0 %3367
        %3369 = vrot.lane.b32.xlu0 %v731, 56
        %v3370 = vpop.permute.xlu0 %3369
        %3371 = vrot.lane.b32.xlu0 %v732, 56
        %v3372 = vpop.permute.xlu0 %3371
        %3373 = vrot.lane.b32.xlu0 %v733, 56
        %v3374 = vpop.permute.xlu0 %3373
        %3375 = vrot.lane.b32.xlu0 %v734, 56
        %v3376 = vpop.permute.xlu0 %3375
        %3377 = vrot.lane.b32.xlu0 %v735, 56
        %v3378 = vpop.permute.xlu0 %3377
        %3379 = vrot.lane.b32.xlu0 %v736, 56
        %v3380 = vpop.permute.xlu0 %3379
        %3381 = vrot.lane.b32.xlu0 %v737, 56
        %v3382 = vpop.permute.xlu0 %3381
        %3383 = vrot.lane.b32.xlu0 %v738, 56
        %v3384 = vpop.permute.xlu0 %3383
        %3385 = vrot.lane.b32.xlu0 %v739, 56
        %v3386 = vpop.permute.xlu0 %3385
        %3387 = vrot.lane.b32.xlu0 %v740, 56
        %v3388 = vpop.permute.xlu0 %3387
        %3389 = vrot.lane.b32.xlu0 %v741, 56
        %v3390 = vpop.permute.xlu0 %3389
        %3391 = vrot.lane.b32.xlu0 %v742, 56
        %v3392 = vpop.permute.xlu0 %3391
        %3393 = vrot.lane.b32.xlu0 %v743, 56
        %v3394 = vpop.permute.xlu0 %3393
        %3395 = vrot.lane.b32.xlu0 %v744, 56
        %v3396 = vpop.permute.xlu0 %3395
        %3397 = vrot.lane.b32.xlu0 %v745, 56
        %v3398 = vpop.permute.xlu0 %3397
        %3399 = vrot.lane.b32.xlu0 %v746, 56
        %v3400 = vpop.permute.xlu0 %3399
        %3401 = vrot.lane.b32.xlu0 %v747, 56
        %v3402 = vpop.permute.xlu0 %3401
        %3403 = vrot.lane.b32.xlu0 %v748, 56
        %v3404 = vpop.permute.xlu0 %3403
        %3405 = vrot.lane.b32.xlu0 %v749, 56
        %v3406 = vpop.permute.xlu0 %3405
        %3407 = vrot.lane.b32.xlu0 %v750, 56
        %v3408 = vpop.permute.xlu0 %3407
        %3409 = vrot.lane.b32.xlu0 %v751, 56
        %v3410 = vpop.permute.xlu0 %3409
        %3411 = vrot.lane.b32.xlu0 %v752, 56
        %v3412 = vpop.permute.xlu0 %3411
        %3413 = vrot.lane.b32.xlu0 %v753, 56
        %v3414 = vpop.permute.xlu0 %3413
        %3415 = vrot.lane.b32.xlu0 %v754, 56
        %v3416 = vpop.permute.xlu0 %3415
        %3417 = vrot.lane.b32.xlu0 %v755, 56
        %v3418 = vpop.permute.xlu0 %3417
        %3419 = vrot.lane.b32.xlu0 %v756, 56
        %v3420 = vpop.permute.xlu0 %3419
        %3421 = vrot.lane.b32.xlu0 %v757, 56
        %v3422 = vpop.permute.xlu0 %3421
        %3423 = vrot.lane.b32.xlu0 %v758, 56
        %v3424 = vpop.permute.xlu0 %3423
        %3425 = vrot.lane.b32.xlu0 %v759, 56
        %v3426 = vpop.permute.xlu0 %3425
        %3427 = vrot.lane.b32.xlu0 %v760, 56
        %v3428 = vpop.permute.xlu0 %3427
        %3429 = vrot.lane.b32.xlu0 %v761, 56
        %v3430 = vpop.permute.xlu0 %3429
        %3431 = vrot.lane.b32.xlu0 %v762, 56
        %v3432 = vpop.permute.xlu0 %3431
        %3433 = vrot.lane.b32.xlu0 %v763, 56
        %v3434 = vpop.permute.xlu0 %3433
        %3435 = vrot.lane.b32.xlu0 %v764, 56
        %v3436 = vpop.permute.xlu0 %3435
        %3437 = vrot.lane.b32.xlu0 %v765, 56
        %v3438 = vpop.permute.xlu0 %3437
        %3439 = vrot.lane.b32.xlu0 %v766, 56
        %v3440 = vpop.permute.xlu0 %3439
        %3441 = vrot.lane.b32.xlu0 %v767, 56
        %v3442 = vpop.permute.xlu0 %3441
        %3443 = vrot.lane.b32.xlu0 %v768, 56
        %v3444 = vpop.permute.xlu0 %3443
        %3445 = vrot.lane.b32.xlu0 %v769, 56
        %v3446 = vpop.permute.xlu0 %3445
        %3447 = vrot.lane.b32.xlu0 %v770, 56
        %v3448 = vpop.permute.xlu0 %3447
        %3449 = vrot.lane.b32.xlu0 %v771, 56
        %v3450 = vpop.permute.xlu0 %3449
        %3451 = vrot.lane.b32.xlu0 %v772, 56
        %v3452 = vpop.permute.xlu0 %3451
        %3453 = vrot.lane.b32.xlu0 %v773, 56
        %v3454 = vpop.permute.xlu0 %3453
        %3455 = vrot.lane.b32.xlu0 %v774, 56
        %v3456 = vpop.permute.xlu0 %3455
        %3457 = vrot.lane.b32.xlu0 %v775, 56
        %v3458 = vpop.permute.xlu0 %3457
        %3459 = vrot.lane.b32.xlu0 %v776, 56
        %v3460 = vpop.permute.xlu0 %3459
        %3461 = vrot.lane.b32.xlu0 %v777, 56
        %v3462 = vpop.permute.xlu0 %3461
        %3463 = vrot.lane.b32.xlu0 %v778, 56
        %v3464 = vpop.permute.xlu0 %3463
        %3465 = vrot.lane.b32.xlu0 %v779, 56
        %v3466 = vpop.permute.xlu0 %3465
        %3467 = vrot.lane.b32.xlu0 %v780, 56
        %v3468 = vpop.permute.xlu0 %3467
        %3469 = vrot.lane.b32.xlu0 %v781, 56
        %v3470 = vpop.permute.xlu0 %3469
        %3471 = vrot.lane.b32.xlu0 %v782, 56
        %v3472 = vpop.permute.xlu0 %3471
        %3473 = vrot.lane.b32.xlu0 %v783, 56
        %v3474 = vpop.permute.xlu0 %3473
        %3475 = vrot.lane.b32.xlu0 %v784, 56
        %v3476 = vpop.permute.xlu0 %3475
        %3477 = vrot.lane.b32.xlu0 %v785, 56
        %v3478 = vpop.permute.xlu0 %3477
        %3479 = vrot.lane.b32.xlu0 %v786, 56
        %v3480 = vpop.permute.xlu0 %3479
        %3481 = vrot.lane.b32.xlu0 %v787, 56
        %v3482 = vpop.permute.xlu0 %3481
        %3483 = vrot.lane.b32.xlu0 %v788, 56
        %v3484 = vpop.permute.xlu0 %3483
        %3485 = vrot.lane.b32.xlu0 %v789, 56
        %v3486 = vpop.permute.xlu0 %3485
        %3487 = vrot.lane.b32.xlu0 %v790, 56
        %v3488 = vpop.permute.xlu0 %3487
        %3489 = vrot.lane.b32.xlu0 %v791, 56
        %v3490 = vpop.permute.xlu0 %3489
        %3491 = vrot.lane.b32.xlu0 %v792, 56
        %v3492 = vpop.permute.xlu0 %3491
        %3493 = vrot.lane.b32.xlu0 %v793, 56
        %v3494 = vpop.permute.xlu0 %3493
        %3495 = vrot.lane.b32.xlu0 %v794, 56
        %v3496 = vpop.permute.xlu0 %3495
        %3497 = vrot.lane.b32.xlu0 %v795, 56
        %v3498 = vpop.permute.xlu0 %3497
        %3499 = vrot.lane.b32.xlu0 %v796, 56
        %v3500 = vpop.permute.xlu0 %3499
        %3501 = vrot.lane.b32.xlu0 %v797, 56
        %v3502 = vpop.permute.xlu0 %3501
        %3503 = vrot.lane.b32.xlu0 %v798, 56
        %v3504 = vpop.permute.xlu0 %3503
        %3505 = vrot.lane.b32.xlu0 %v799, 56
        %v3506 = vpop.permute.xlu0 %3505
        %3507 = vrot.lane.b32.xlu0 %v800, 56
        %v3508 = vpop.permute.xlu0 %3507
        %3509 = vrot.lane.b32.xlu0 %v801, 56
        %v3510 = vpop.permute.xlu0 %3509
        %3511 = vrot.lane.b32.xlu0 %v802, 56
        %v3512 = vpop.permute.xlu0 %3511
        %3513 = vrot.lane.b32.xlu0 %v803, 56
        %v3514 = vpop.permute.xlu0 %3513
        %3515 = vrot.lane.b32.xlu0 %v804, 56
        %v3516 = vpop.permute.xlu0 %3515
        %3517 = vrot.lane.b32.xlu0 %v805, 56
        %v3518 = vpop.permute.xlu0 %3517
        %3519 = vrot.lane.b32.xlu0 %v806, 56
        %v3520 = vpop.permute.xlu0 %3519
        %3521 = vrot.lane.b32.xlu0 %v807, 56
        %v3522 = vpop.permute.xlu0 %3521
        %3523 = vrot.lane.b32.xlu0 %v808, 56
        %v3524 = vpop.permute.xlu0 %3523
        %3525 = vrot.lane.b32.xlu0 %v809, 56
        %v3526 = vpop.permute.xlu0 %3525
        %3527 = vrot.lane.b32.xlu0 %v810, 56
        %v3528 = vpop.permute.xlu0 %3527
        %3529 = vrot.lane.b32.xlu0 %v811, 56
        %v3530 = vpop.permute.xlu0 %3529
        %3531 = vrot.lane.b32.xlu0 %v812, 56
        %v3532 = vpop.permute.xlu0 %3531
        %3533 = vrot.lane.b32.xlu0 %v813, 56
        %v3534 = vpop.permute.xlu0 %3533
        %3535 = vrot.lane.b32.xlu0 %v814, 56
        %v3536 = vpop.permute.xlu0 %3535
        %3537 = vrot.lane.b32.xlu0 %v815, 56
        %v3538 = vpop.permute.xlu0 %3537
        %3539 = vrot.lane.b32.xlu0 %v816, 56
        %v3540 = vpop.permute.xlu0 %3539
        %3541 = vrot.lane.b32.xlu0 %v817, 56
        %v3542 = vpop.permute.xlu0 %3541
        %3543 = vrot.lane.b32.xlu0 %v818, 56
        %v3544 = vpop.permute.xlu0 %3543
        %3545 = vrot.lane.b32.xlu0 %v819, 56
        %v3546 = vpop.permute.xlu0 %3545
        %3547 = vrot.lane.b32.xlu0 %v820, 56
        %v3548 = vpop.permute.xlu0 %3547
        %3549 = vrot.lane.b32.xlu0 %v821, 56
        %v3550 = vpop.permute.xlu0 %3549
        %3551 = vrot.lane.b32.xlu0 %v822, 56
        %v3552 = vpop.permute.xlu0 %3551
        %3553 = vrot.lane.b32.xlu0 %v823, 56
        %v3554 = vpop.permute.xlu0 %3553
        %3555 = vrot.lane.b32.xlu0 %v824, 56
        %v3556 = vpop.permute.xlu0 %3555
        %3557 = vrot.lane.b32.xlu0 %v825, 56
        %v3558 = vpop.permute.xlu0 %3557
        %3559 = vrot.lane.b32.xlu0 %v826, 56
        %v3560 = vpop.permute.xlu0 %3559
        %3561 = vrot.lane.b32.xlu0 %v827, 56
        %v3562 = vpop.permute.xlu0 %3561
        %3563 = vrot.lane.b32.xlu0 %v828, 56
        %v3564 = vpop.permute.xlu0 %3563
        %3565 = vrot.lane.b32.xlu0 %v829, 56
        %v3566 = vpop.permute.xlu0 %3565
        %3567 = vrot.lane.b32.xlu0 %v830, 56
        %v3568 = vpop.permute.xlu0 %3567
        %3569 = vrot.lane.b32.xlu0 %v831, 56
        %v3570 = vpop.permute.xlu0 %3569
        %3571 = vrot.lane.b32.xlu0 %v832, 56
        %v3572 = vpop.permute.xlu0 %3571
        %3573 = vrot.lane.b32.xlu0 %v833, 56
        %v3574 = vpop.permute.xlu0 %3573
        %3575 = vrot.lane.b32.xlu0 %v834, 56
        %v3576 = vpop.permute.xlu0 %3575
        %3577 = vrot.lane.b32.xlu0 %v835, 56
        %v3578 = vpop.permute.xlu0 %3577
        %3579 = vrot.lane.b32.xlu0 %v836, 56
        %v3580 = vpop.permute.xlu0 %3579
        %3581 = vrot.lane.b32.xlu0 %v837, 56
        %v3582 = vpop.permute.xlu0 %3581
        %3583 = vrot.lane.b32.xlu0 %v838, 56
        %v3584 = vpop.permute.xlu0 %3583
        %3585 = vrot.lane.b32.xlu0 %v839, 56
        %v3586 = vpop.permute.xlu0 %3585
        %3587 = vrot.lane.b32.xlu0 %v840, 56
        %v3588 = vpop.permute.xlu0 %3587
        %3589 = vrot.lane.b32.xlu0 %v841, 56
        %v3590 = vpop.permute.xlu0 %3589
        %3591 = vrot.lane.b32.xlu0 %v842, 56
        %v3592 = vpop.permute.xlu0 %3591
        %3593 = vrot.lane.b32.xlu0 %v843, 56
        %v3594 = vpop.permute.xlu0 %3593
        %3595 = vrot.lane.b32.xlu0 %v844, 56
        %v3596 = vpop.permute.xlu0 %3595
        %3597 = vrot.lane.b32.xlu0 %v845, 56
        %v3598 = vpop.permute.xlu0 %3597
        %3599 = vrot.lane.b32.xlu0 %v846, 56
        %v3600 = vpop.permute.xlu0 %3599
        %3601 = vrot.lane.b32.xlu0 %v847, 56
        %v3602 = vpop.permute.xlu0 %3601
        %3603 = vrot.lane.b32.xlu0 %v848, 56
        %v3604 = vpop.permute.xlu0 %3603
        %3605 = vrot.lane.b32.xlu0 %v849, 56
        %v3606 = vpop.permute.xlu0 %3605
        %3607 = vrot.lane.b32.xlu0 %v850, 56
        %v3608 = vpop.permute.xlu0 %3607
        %3609 = vrot.lane.b32.xlu0 %v851, 56
        %v3610 = vpop.permute.xlu0 %3609
        %3611 = vrot.lane.b32.xlu0 %v852, 56
        %v3612 = vpop.permute.xlu0 %3611
        %3613 = vrot.lane.b32.xlu0 %v853, 56
        %v3614 = vpop.permute.xlu0 %3613
        %3615 = vrot.lane.b32.xlu0 %v854, 56
        %v3616 = vpop.permute.xlu0 %3615
        %3617 = vrot.lane.b32.xlu0 %v855, 56
        %v3618 = vpop.permute.xlu0 %3617
        %3619 = vrot.lane.b32.xlu0 %v856, 56
        %v3620 = vpop.permute.xlu0 %3619
        %3621 = vrot.lane.b32.xlu0 %v857, 56
        %v3622 = vpop.permute.xlu0 %3621
        %3623 = vrot.lane.b32.xlu0 %v858, 56
        %v3624 = vpop.permute.xlu0 %3623
        %3625 = vrot.lane.b32.xlu0 %v859, 56
        %v3626 = vpop.permute.xlu0 %3625
        %3627 = vrot.lane.b32.xlu0 %v860, 56
        %v3628 = vpop.permute.xlu0 %3627
        %3629 = vrot.lane.b32.xlu0 %v861, 56
        %v3630 = vpop.permute.xlu0 %3629
        %3631 = vrot.lane.b32.xlu0 %v862, 56
        %v3632 = vpop.permute.xlu0 %3631
        %3633 = vrot.lane.b32.xlu0 %v863, 56
        %v3634 = vpop.permute.xlu0 %3633
        %3635 = vrot.lane.b32.xlu0 %v864, 56
        %v3636 = vpop.permute.xlu0 %3635
        %3637 = vrot.lane.b32.xlu0 %v865, 56
        %v3638 = vpop.permute.xlu0 %3637
        %3639 = vrot.lane.b32.xlu0 %v866, 56
        %v3640 = vpop.permute.xlu0 %3639
        %3641 = vrot.lane.b32.xlu0 %v867, 56
        %v3642 = vpop.permute.xlu0 %3641
        %3643 = vrot.lane.b32.xlu0 %v868, 56
        %v3644 = vpop.permute.xlu0 %3643
        %3645 = vrot.lane.b32.xlu0 %v869, 56
        %v3646 = vpop.permute.xlu0 %3645
        %3647 = vrot.lane.b32.xlu0 %v870, 56
        %v3648 = vpop.permute.xlu0 %3647
        %3649 = vrot.lane.b32.xlu0 %v871, 56
        %v3650 = vpop.permute.xlu0 %3649
        %3651 = vrot.lane.b32.xlu0 %v872, 56
        %v3652 = vpop.permute.xlu0 %3651
        %3653 = vrot.lane.b32.xlu0 %v873, 56
        %v3654 = vpop.permute.xlu0 %3653
        %3655 = vrot.lane.b32.xlu0 %v874, 56
        %v3656 = vpop.permute.xlu0 %3655
        %3657 = vrot.lane.b32.xlu0 %v875, 56
        %v3658 = vpop.permute.xlu0 %3657
        %3659 = vrot.lane.b32.xlu0 %v876, 56
        %v3660 = vpop.permute.xlu0 %3659
        %3661 = vrot.lane.b32.xlu0 %v877, 56
        %v3662 = vpop.permute.xlu0 %3661
        %3663 = vrot.lane.b32.xlu0 %v878, 56
        %v3664 = vpop.permute.xlu0 %3663
        %3665 = vrot.lane.b32.xlu0 %v879, 56
        %v3666 = vpop.permute.xlu0 %3665
        %3667 = vrot.lane.b32.xlu0 %v880, 56
        %v3668 = vpop.permute.xlu0 %3667
        %3669 = vrot.lane.b32.xlu0 %v881, 56
        %v3670 = vpop.permute.xlu0 %3669
        %3671 = vrot.lane.b32.xlu0 %v882, 56
        %v3672 = vpop.permute.xlu0 %3671
        %3673 = vrot.lane.b32.xlu0 %v883, 56
        %v3674 = vpop.permute.xlu0 %3673
        %3675 = vrot.lane.b32.xlu0 %v884, 56
        %v3676 = vpop.permute.xlu0 %3675
        %3677 = vrot.lane.b32.xlu0 %v885, 56
        %v3678 = vpop.permute.xlu0 %3677
        %3679 = vrot.lane.b32.xlu0 %v886, 56
        %v3680 = vpop.permute.xlu0 %3679
        %3681 = vrot.lane.b32.xlu0 %v887, 56
        %v3682 = vpop.permute.xlu0 %3681
        %3683 = vrot.lane.b32.xlu0 %v888, 56
        %v3684 = vpop.permute.xlu0 %3683
        %3685 = vrot.lane.b32.xlu0 %v889, 56
        %v3686 = vpop.permute.xlu0 %3685
        %3687 = vrot.lane.b32.xlu0 %v890, 56
        %v3688 = vpop.permute.xlu0 %3687
        %3689 = vrot.lane.b32.xlu0 %v891, 56
        %v3690 = vpop.permute.xlu0 %3689
        %3691 = vrot.lane.b32.xlu0 %v892, 56
        %v3692 = vpop.permute.xlu0 %3691
        %3693 = vrot.lane.b32.xlu0 %v893, 56
        %v3694 = vpop.permute.xlu0 %3693
        %3695 = vrot.lane.b32.xlu0 %v894, 56
        %v3696 = vpop.permute.xlu0 %3695
        %3697 = vrot.lane.b32.xlu0 %v895, 56
        %v3698 = vpop.permute.xlu0 %3697
        %3699 = vrot.lane.b32.xlu0 %v896, 56
        %v3700 = vpop.permute.xlu0 %3699
        %3701 = vrot.lane.b32.xlu0 %v897, 56
        %v3702 = vpop.permute.xlu0 %3701
        %3703 = vrot.lane.b32.xlu0 %v898, 56
        %v3704 = vpop.permute.xlu0 %3703
        %3705 = vrot.lane.b32.xlu0 %v899, 56
        %v3706 = vpop.permute.xlu0 %3705
        %3707 = vrot.lane.b32.xlu0 %v900, 56
        %v3708 = vpop.permute.xlu0 %3707
        %3709 = vrot.lane.b32.xlu0 %v901, 56
        %v3710 = vpop.permute.xlu0 %3709
        %3711 = vrot.lane.b32.xlu0 %v902, 56
        %v3712 = vpop.permute.xlu0 %3711
        %3713 = vrot.lane.b32.xlu0 %v903, 56
        %v3714 = vpop.permute.xlu0 %3713
        %3715 = vrot.lane.b32.xlu0 %v904, 56
        %v3716 = vpop.permute.xlu0 %3715
        %3717 = vrot.lane.b32.xlu0 %v905, 56
        %v3718 = vpop.permute.xlu0 %3717
        %3719 = vrot.lane.b32.xlu0 %v906, 56
        %v3720 = vpop.permute.xlu0 %3719
        %3721 = vrot.lane.b32.xlu0 %v907, 56
        %v3722 = vpop.permute.xlu0 %3721
        %3723 = vrot.lane.b32.xlu0 %v908, 56
        %v3724 = vpop.permute.xlu0 %3723
        %3725 = vrot.lane.b32.xlu0 %v909, 56
        %v3726 = vpop.permute.xlu0 %3725
        %3727 = vrot.lane.b32.xlu0 %v910, 56
        %v3728 = vpop.permute.xlu0 %3727
        %3729 = vrot.lane.b32.xlu0 %v911, 56
        %v3730 = vpop.permute.xlu0 %3729
        %3731 = vrot.lane.b32.xlu0 %v912, 56
        %v3732 = vpop.permute.xlu0 %3731
        %3733 = vrot.lane.b32.xlu0 %v913, 56
        %v3734 = vpop.permute.xlu0 %3733
        %3735 = vrot.lane.b32.xlu0 %v914, 56
        %v3736 = vpop.permute.xlu0 %3735
        %3737 = vrot.lane.b32.xlu0 %v915, 56
        %v3738 = vpop.permute.xlu0 %3737
        %3739 = vrot.lane.b32.xlu0 %v916, 56
        %v3740 = vpop.permute.xlu0 %3739
        %3741 = vrot.lane.b32.xlu0 %v917, 56
        %v3742 = vpop.permute.xlu0 %3741
        %3743 = vrot.lane.b32.xlu0 %v918, 56
        %v3744 = vpop.permute.xlu0 %3743
        %3745 = vrot.lane.b32.xlu0 %v919, 56
        %v3746 = vpop.permute.xlu0 %3745
        %3747 = vrot.lane.b32.xlu0 %v920, 56
        %v3748 = vpop.permute.xlu0 %3747
        %3749 = vrot.lane.b32.xlu0 %v921, 56
        %v3750 = vpop.permute.xlu0 %3749
        %3751 = vrot.lane.b32.xlu0 %v922, 56
        %v3752 = vpop.permute.xlu0 %3751
        %3753 = vrot.lane.b32.xlu0 %v923, 56
        %v3754 = vpop.permute.xlu0 %3753
        %3755 = vrot.lane.b32.xlu0 %v924, 56
        %v3756 = vpop.permute.xlu0 %3755
        %3757 = vrot.lane.b32.xlu0 %v925, 56
        %v3758 = vpop.permute.xlu0 %3757
        %3759 = vrot.lane.b32.xlu0 %v926, 56
        %v3760 = vpop.permute.xlu0 %3759
        %3761 = vrot.lane.b32.xlu0 %v927, 56
        %v3762 = vpop.permute.xlu0 %3761
        %3763 = vrot.lane.b32.xlu0 %v928, 56
        %v3764 = vpop.permute.xlu0 %3763
        %3765 = vrot.lane.b32.xlu0 %v929, 56
        %v3766 = vpop.permute.xlu0 %3765
        %3767 = vrot.lane.b32.xlu0 %v930, 56
        %v3768 = vpop.permute.xlu0 %3767
        %3769 = vrot.lane.b32.xlu0 %v931, 56
        %v3770 = vpop.permute.xlu0 %3769
        %3771 = vrot.lane.b32.xlu0 %v932, 56
        %v3772 = vpop.permute.xlu0 %3771
        %3773 = vrot.lane.b32.xlu0 %v933, 56
        %v3774 = vpop.permute.xlu0 %3773
        %3775 = vrot.lane.b32.xlu0 %v934, 56
        %v3776 = vpop.permute.xlu0 %3775
        %3777 = vrot.lane.b32.xlu0 %v935, 56
        %v3778 = vpop.permute.xlu0 %3777
        %3779 = vrot.lane.b32.xlu0 %v936, 56
        %v3780 = vpop.permute.xlu0 %3779
        %3781 = vrot.lane.b32.xlu0 %v937, 56
        %v3782 = vpop.permute.xlu0 %3781
        %3783 = vrot.lane.b32.xlu0 %v938, 56
        %v3784 = vpop.permute.xlu0 %3783
        %3785 = vrot.lane.b32.xlu0 %v939, 56
        %v3786 = vpop.permute.xlu0 %3785
        %3787 = vrot.lane.b32.xlu0 %v940, 56
        %v3788 = vpop.permute.xlu0 %3787
        %3789 = vrot.lane.b32.xlu0 %v941, 56
        %v3790 = vpop.permute.xlu0 %3789
        %3791 = vrot.lane.b32.xlu0 %v942, 56
        %v3792 = vpop.permute.xlu0 %3791
        %3793 = vrot.lane.b32.xlu0 %v943, 56
        %v3794 = vpop.permute.xlu0 %3793
        %3795 = vrot.lane.b32.xlu0 %v944, 56
        %v3796 = vpop.permute.xlu0 %3795
        %3797 = vrot.lane.b32.xlu0 %v945, 56
        %v3798 = vpop.permute.xlu0 %3797
        %3799 = vrot.lane.b32.xlu0 %v946, 56
        %v3800 = vpop.permute.xlu0 %3799
        %3801 = vrot.lane.b32.xlu0 %v947, 56
        %v3802 = vpop.permute.xlu0 %3801
        %3803 = vrot.lane.b32.xlu0 %v948, 56
        %v3804 = vpop.permute.xlu0 %3803
        %3805 = vrot.lane.b32.xlu0 %v949, 56
        %v3806 = vpop.permute.xlu0 %3805
        %3807 = vrot.lane.b32.xlu0 %v950, 56
        %v3808 = vpop.permute.xlu0 %3807
        %3809 = vrot.lane.b32.xlu0 %v951, 56
        %v3810 = vpop.permute.xlu0 %3809
        %3811 = vrot.lane.b32.xlu0 %v952, 56
        %v3812 = vpop.permute.xlu0 %3811
        %3813 = vrot.lane.b32.xlu0 %v953, 56
        %v3814 = vpop.permute.xlu0 %3813
        %3815 = vrot.lane.b32.xlu0 %v954, 56
        %v3816 = vpop.permute.xlu0 %3815
        %3817 = vrot.lane.b32.xlu0 %v955, 56
        %v3818 = vpop.permute.xlu0 %3817
        %3819 = vrot.lane.b32.xlu0 %v956, 56
        %v3820 = vpop.permute.xlu0 %3819
        %3821 = vrot.lane.b32.xlu0 %v957, 56
        %v3822 = vpop.permute.xlu0 %3821
        %3823 = vrot.lane.b32.xlu0 %v958, 56
        %v3824 = vpop.permute.xlu0 %3823
        %3825 = vrot.lane.b32.xlu0 %v959, 56
        %v3826 = vpop.permute.xlu0 %3825
        %3827 = vrot.lane.b32.xlu0 %v960, 56
        %v3828 = vpop.permute.xlu0 %3827
        %3829 = vrot.lane.b32.xlu0 %v961, 56
        %v3830 = vpop.permute.xlu0 %3829
        %3831 = vrot.lane.b32.xlu0 %v962, 56
        %v3832 = vpop.permute.xlu0 %3831
        %3833 = vrot.lane.b32.xlu0 %v963, 56
        %v3834 = vpop.permute.xlu0 %3833
        %3835 = vrot.lane.b32.xlu0 %v964, 56
        %v3836 = vpop.permute.xlu0 %3835
        %3837 = vrot.lane.b32.xlu0 %v965, 56
        %v3838 = vpop.permute.xlu0 %3837
        %3839 = vrot.lane.b32.xlu0 %v966, 56
        %v3840 = vpop.permute.xlu0 %3839
        %3841 = vrot.lane.b32.xlu0 %v967, 56
        %v3842 = vpop.permute.xlu0 %3841
        %3843 = vrot.lane.b32.xlu0 %v968, 56
        %v3844 = vpop.permute.xlu0 %3843
        %3845 = vrot.lane.b32.xlu0 %v969, 56
        %v3846 = vpop.permute.xlu0 %3845
        %3847 = vrot.lane.b32.xlu0 %v970, 56
        %v3848 = vpop.permute.xlu0 %3847
        %3849 = vrot.lane.b32.xlu0 %v971, 56
        %v3850 = vpop.permute.xlu0 %3849
        %3851 = vrot.lane.b32.xlu0 %v972, 56
        %v3852 = vpop.permute.xlu0 %3851
        %3853 = vrot.lane.b32.xlu0 %v973, 56
        %v3854 = vpop.permute.xlu0 %3853
        %3855 = vrot.lane.b32.xlu0 %v974, 56
        %v3856 = vpop.permute.xlu0 %3855
        %3857 = vrot.lane.b32.xlu0 %v975, 56
        %v3858 = vpop.permute.xlu0 %3857
        %3859 = vrot.lane.b32.xlu0 %v976, 56
        %v3860 = vpop.permute.xlu0 %3859
        %3861 = vrot.lane.b32.xlu0 %v977, 56
        %v3862 = vpop.permute.xlu0 %3861
        %3863 = vrot.lane.b32.xlu0 %v978, 56
        %v3864 = vpop.permute.xlu0 %3863
        %3865 = vrot.lane.b32.xlu0 %v979, 56
        %v3866 = vpop.permute.xlu0 %3865
        %3867 = vrot.lane.b32.xlu0 %v980, 56
        %v3868 = vpop.permute.xlu0 %3867
        %3869 = vrot.lane.b32.xlu0 %v981, 56
        %v3870 = vpop.permute.xlu0 %3869
        %3871 = vrot.lane.b32.xlu0 %v982, 56
        %v3872 = vpop.permute.xlu0 %3871
        %3873 = vrot.lane.b32.xlu0 %v983, 56
        %v3874 = vpop.permute.xlu0 %3873
        %3875 = vrot.lane.b32.xlu0 %v984, 56
        %v3876 = vpop.permute.xlu0 %3875
        %3877 = vrot.lane.b32.xlu0 %v985, 56
        %v3878 = vpop.permute.xlu0 %3877
        %3879 = vrot.lane.b32.xlu0 %v986, 56
        %v3880 = vpop.permute.xlu0 %3879
        %3881 = vrot.lane.b32.xlu0 %v987, 56
        %v3882 = vpop.permute.xlu0 %3881
        %3883 = vrot.lane.b32.xlu0 %v988, 56
        %v3884 = vpop.permute.xlu0 %3883
        %3885 = vrot.lane.b32.xlu0 %v989, 56
        %v3886 = vpop.permute.xlu0 %3885
        %3887 = vrot.lane.b32.xlu0 %v990, 56
        %v3888 = vpop.permute.xlu0 %3887
        %3889 = vrot.lane.b32.xlu0 %v991, 56
        %v3890 = vpop.permute.xlu0 %3889
        %3891 = vrot.lane.b32.xlu0 %v992, 56
        %v3892 = vpop.permute.xlu0 %3891
        %3893 = vrot.lane.b32.xlu0 %v993, 56
        %v3894 = vpop.permute.xlu0 %3893
        %3895 = vrot.lane.b32.xlu0 %v994, 56
        %v3896 = vpop.permute.xlu0 %3895
        %3897 = vrot.lane.b32.xlu0 %v995, 56
        %v3898 = vpop.permute.xlu0 %3897
        %3899 = vrot.lane.b32.xlu0 %v996, 56
        %v3900 = vpop.permute.xlu0 %3899
        %3901 = vrot.lane.b32.xlu0 %v997, 56
        %v3902 = vpop.permute.xlu0 %3901
        %3903 = vrot.lane.b32.xlu0 %v998, 56
        %v3904 = vpop.permute.xlu0 %3903
        %3905 = vrot.lane.b32.xlu0 %v999, 56
        %v3906 = vpop.permute.xlu0 %3905
        %3907 = vrot.lane.b32.xlu0 %v1000, 56
        %v3908 = vpop.permute.xlu0 %3907
        %3909 = vrot.lane.b32.xlu0 %v1001, 56
        %v3910 = vpop.permute.xlu0 %3909
        %3911 = vrot.lane.b32.xlu0 %v1002, 56
        %v3912 = vpop.permute.xlu0 %3911
        %3913 = vrot.lane.b32.xlu0 %v1003, 56
        %v3914 = vpop.permute.xlu0 %3913
        %3915 = vrot.lane.b32.xlu0 %v1004, 56
        %v3916 = vpop.permute.xlu0 %3915
        %3917 = vrot.lane.b32.xlu0 %v1005, 56
        %v3918 = vpop.permute.xlu0 %3917
        %3919 = vrot.lane.b32.xlu0 %v1006, 56
        %v3920 = vpop.permute.xlu0 %3919
        %3921 = vrot.lane.b32.xlu0 %v1007, 56
        %v3922 = vpop.permute.xlu0 %3921
        %3923 = vrot.lane.b32.xlu0 %v1008, 56
        %v3924 = vpop.permute.xlu0 %3923
        %3925 = vrot.lane.b32.xlu0 %v1009, 56
        %v3926 = vpop.permute.xlu0 %3925
        %3927 = vrot.lane.b32.xlu0 %v1010, 56
        %v3928 = vpop.permute.xlu0 %3927
        %3929 = vrot.lane.b32.xlu0 %v1011, 56
        %v3930 = vpop.permute.xlu0 %3929
        %3931 = vrot.lane.b32.xlu0 %v1012, 56
        %v3932 = vpop.permute.xlu0 %3931
        %3933 = vrot.lane.b32.xlu0 %v1013, 56
        %v3934 = vpop.permute.xlu0 %3933
        %3935 = vrot.lane.b32.xlu0 %v1014, 56
        %v3936 = vpop.permute.xlu0 %3935
        %3937 = vrot.lane.b32.xlu0 %v1015, 56
        %v3938 = vpop.permute.xlu0 %3937
        %3939 = vrot.lane.b32.xlu0 %v1016, 56
        %v3940 = vpop.permute.xlu0 %3939
        %3941 = vrot.lane.b32.xlu0 %v1017, 56
        %v3942 = vpop.permute.xlu0 %3941
        %3943 = vrot.lane.b32.xlu0 %v1018, 56
        %v3944 = vpop.permute.xlu0 %3943
        %3945 = vrot.lane.b32.xlu0 %v1019, 56
        %v3946 = vpop.permute.xlu0 %3945
        %3947 = vrot.lane.b32.xlu0 %v1020, 56
        %v3948 = vpop.permute.xlu0 %3947
        %3949 = vrot.lane.b32.xlu0 %v1021, 56
        %v3950 = vpop.permute.xlu0 %3949
        %3951 = vrot.lane.b32.xlu0 %v1022, 56
        %v3952 = vpop.permute.xlu0 %3951
        %3953 = vrot.lane.b32.xlu0 %v1023, 56
        %v3954 = vpop.permute.xlu0 %3953
        %3955 = vrot.lane.b32.xlu0 %v1024, 56
        %v3956 = vpop.permute.xlu0 %3955
        %3957 = vrot.lane.b32.xlu0 %v1025, 56
        %v3958 = vpop.permute.xlu0 %3957
        %3959 = vrot.lane.b32.xlu0 %v1026, 56
        %v3960 = vpop.permute.xlu0 %3959
        %3961 = vrot.lane.b32.xlu0 %v1027, 56
        %v3962 = vpop.permute.xlu0 %3961
        %3963 = vrot.lane.b32.xlu0 %v1028, 56
        %v3964 = vpop.permute.xlu0 %3963
        %3965 = vrot.lane.b32.xlu0 %v1029, 56
        %v3966 = vpop.permute.xlu0 %3965
        %3967 = vrot.lane.b32.xlu0 %v1030, 56
        %v3968 = vpop.permute.xlu0 %3967
        %3969 = vrot.lane.b32.xlu0 %v1031, 56
        %v3970 = vpop.permute.xlu0 %3969
        %3971 = vrot.lane.b32.xlu0 %v1032, 56
        %v3972 = vpop.permute.xlu0 %3971
        %3973 = vrot.lane.b32.xlu0 %v1033, 56
        %v3974 = vpop.permute.xlu0 %3973
        %3975 = vrot.lane.b32.xlu0 %v1034, 56
        %v3976 = vpop.permute.xlu0 %3975
        %3977 = vrot.lane.b32.xlu0 %v1035, 56
        %v3978 = vpop.permute.xlu0 %3977
        %3979 = vrot.lane.b32.xlu0 %v1036, 56
        %v3980 = vpop.permute.xlu0 %3979
        %3981 = vrot.lane.b32.xlu0 %v1037, 56
        %v3982 = vpop.permute.xlu0 %3981
        %3983 = vrot.lane.b32.xlu0 %v1038, 56
        %v3984 = vpop.permute.xlu0 %3983
        %3985 = vrot.lane.b32.xlu0 %v1039, 56
        %v3986 = vpop.permute.xlu0 %3985
        %3987 = vrot.lane.b32.xlu0 %v1040, 56
        %v3988 = vpop.permute.xlu0 %3987
        %3989 = vrot.lane.b32.xlu0 %v1041, 56
        %v3990 = vpop.permute.xlu0 %3989
        %3991 = vrot.lane.b32.xlu0 %v1042, 56
        %v3992 = vpop.permute.xlu0 %3991
        %3993 = vrot.lane.b32.xlu0 %v1043, 56
        %v3994 = vpop.permute.xlu0 %3993
        %3995 = vrot.lane.b32.xlu0 %v1044, 56
        %v3996 = vpop.permute.xlu0 %3995
        %3997 = vrot.lane.b32.xlu0 %v1045, 56
        %v3998 = vpop.permute.xlu0 %3997
        %3999 = vrot.lane.b32.xlu0 %v1046, 56
        %v4000 = vpop.permute.xlu0 %3999
        %4001 = vrot.lane.b32.xlu0 %v1047, 56
        %v4002 = vpop.permute.xlu0 %4001
        %4003 = vrot.lane.b32.xlu0 %v1048, 56
        %v4004 = vpop.permute.xlu0 %4003
        %4005 = vrot.lane.b32.xlu0 %v1049, 56
        %v4006 = vpop.permute.xlu0 %4005
        %4007 = vrot.lane.b32.xlu0 %v1050, 56
        %v4008 = vpop.permute.xlu0 %4007
        %4009 = vrot.lane.b32.xlu0 %v1051, 56
        %v4010 = vpop.permute.xlu0 %4009
        %4011 = vrot.lane.b32.xlu0 %v1052, 56
        %v4012 = vpop.permute.xlu0 %4011
        %4013 = vrot.lane.b32.xlu0 %v1053, 56
        %v4014 = vpop.permute.xlu0 %4013
        %4015 = vrot.lane.b32.xlu0 %v1054, 56
        %v4016 = vpop.permute.xlu0 %4015
        %4017 = vrot.lane.b32.xlu0 %v1055, 56
        %v4018 = vpop.permute.xlu0 %4017
        %4019 = vrot.lane.b32.xlu0 %v1056, 56
        %v4020 = vpop.permute.xlu0 %4019
        %4021 = vrot.lane.b32.xlu0 %v1057, 56
        %v4022 = vpop.permute.xlu0 %4021
        %4023 = vrot.lane.b32.xlu0 %v1058, 56
        %v4024 = vpop.permute.xlu0 %4023
        %4025 = vrot.lane.b32.xlu0 %v1059, 56
        %v4026 = vpop.permute.xlu0 %4025
        %4027 = vrot.lane.b32.xlu0 %v1060, 56
        %v4028 = vpop.permute.xlu0 %4027
        %4029 = vrot.lane.b32.xlu0 %v1061, 56
        %v4030 = vpop.permute.xlu0 %4029
        %4031 = vrot.lane.b32.xlu0 %v1062, 56
        %v4032 = vpop.permute.xlu0 %4031
        %4033 = vrot.lane.b32.xlu0 %v1063, 56
        %v4034 = vpop.permute.xlu0 %4033
        %4035 = vrot.lane.b32.xlu0 %v1064, 56
        %v4036 = vpop.permute.xlu0 %4035
        %4037 = vrot.lane.b32.xlu0 %v1065, 56
        %v4038 = vpop.permute.xlu0 %4037
        %4039 = vrot.lane.b32.xlu0 %v1066, 56
        %v4040 = vpop.permute.xlu0 %4039
        %4041 = vrot.lane.b32.xlu0 %v1067, 56
        %v4042 = vpop.permute.xlu0 %4041
        %4043 = vrot.lane.b32.xlu0 %v1068, 56
        %v4044 = vpop.permute.xlu0 %4043
        %4045 = vrot.lane.b32.xlu0 %v1069, 56
        %v4046 = vpop.permute.xlu0 %4045
        %4047 = vrot.lane.b32.xlu0 %v1070, 56
        %v4048 = vpop.permute.xlu0 %4047
        %4049 = vrot.lane.b32.xlu0 %v1071, 56
        %v4050 = vpop.permute.xlu0 %4049
        %4051 = vrot.lane.b32.xlu0 %v1072, 56
        %v4052 = vpop.permute.xlu0 %4051
        %4053 = vrot.lane.b32.xlu0 %v1073, 56
        %v4054 = vpop.permute.xlu0 %4053
        %4055 = vrot.lane.b32.xlu0 %v1074, 56
        %v4056 = vpop.permute.xlu0 %4055
        %4057 = vrot.lane.b32.xlu0 %v1075, 56
        %v4058 = vpop.permute.xlu0 %4057
        %4059 = vrot.lane.b32.xlu0 %v1076, 56
        %v4060 = vpop.permute.xlu0 %4059
        %4061 = vrot.lane.b32.xlu0 %v1077, 56
        %v4062 = vpop.permute.xlu0 %4061
        %4063 = vrot.lane.b32.xlu0 %v1078, 56
        %v4064 = vpop.permute.xlu0 %4063
        %4065 = vrot.lane.b32.xlu0 %v1079, 56
        %v4066 = vpop.permute.xlu0 %4065
        %4067 = vrot.lane.b32.xlu0 %v1080, 56
        %v4068 = vpop.permute.xlu0 %4067
        %4069 = vrot.lane.b32.xlu0 %v1081, 56
        %v4070 = vpop.permute.xlu0 %4069
        %4071 = vrot.lane.b32.xlu0 %v1082, 56
        %v4072 = vpop.permute.xlu0 %4071
        %4073 = vrot.lane.b32.xlu0 %v1083, 56
        %v4074 = vpop.permute.xlu0 %4073
        %4075 = vrot.lane.b32.xlu0 %v1084, 56
        %v4076 = vpop.permute.xlu0 %4075
        %4077 = vrot.lane.b32.xlu0 %v1085, 56
        %v4078 = vpop.permute.xlu0 %4077
        %4079 = vrot.lane.b32.xlu0 %v1086, 56
        %v4080 = vpop.permute.xlu0 %4079
        %4081 = vrot.lane.b32.xlu0 %v1087, 56
        %v4082 = vpop.permute.xlu0 %4081
        %4083 = vrot.lane.b32.xlu0 %v1088, 56
        %v4084 = vpop.permute.xlu0 %4083
        %4085 = vrot.lane.b32.xlu0 %v1089, 56
        %v4086 = vpop.permute.xlu0 %4085
        %4087 = vrot.lane.b32.xlu0 %v1090, 56
        %v4088 = vpop.permute.xlu0 %4087
        %4089 = vrot.lane.b32.xlu0 %v1091, 56
        %v4090 = vpop.permute.xlu0 %4089
        %4091 = vrot.lane.b32.xlu0 %v1092, 56
        %v4092 = vpop.permute.xlu0 %4091
        %4093 = vrot.lane.b32.xlu0 %v1093, 56
        %v4094 = vpop.permute.xlu0 %4093
        %4095 = vrot.lane.b32.xlu0 %v1094, 56
        %v4096 = vpop.permute.xlu0 %4095
        %4097 = vrot.lane.b32.xlu0 %v1095, 56
        %v4098 = vpop.permute.xlu0 %4097
        %4099 = vrot.lane.b32.xlu0 %v1096, 56
        %v4100 = vpop.permute.xlu0 %4099
        %4101 = vrot.lane.b32.xlu0 %v1097, 56
        %v4102 = vpop.permute.xlu0 %4101
        %4103 = vrot.lane.b32.xlu0 %v1098, 56
        %v4104 = vpop.permute.xlu0 %4103
        %4105 = vrot.lane.b32.xlu0 %v1099, 56
        %v4106 = vpop.permute.xlu0 %4105
        %4107 = vrot.lane.b32.xlu0 %v1100, 56
        %v4108 = vpop.permute.xlu0 %4107
        %4109 = vrot.lane.b32.xlu0 %v1101, 56
        %v4110 = vpop.permute.xlu0 %4109
        %4111 = vrot.lane.b32.xlu0 %v1102, 56
        %v4112 = vpop.permute.xlu0 %4111
        %4113 = vrot.lane.b32.xlu0 %v1103, 56
        %v4114 = vpop.permute.xlu0 %4113
        %4115 = vrot.lane.b32.xlu0 %v1104, 56
        %v4116 = vpop.permute.xlu0 %4115
        %4117 = vrot.lane.b32.xlu0 %v1105, 56
        %v4118 = vpop.permute.xlu0 %4117
        %4119 = vrot.lane.b32.xlu0 %v1106, 56
        %v4120 = vpop.permute.xlu0 %4119
        %4121 = vrot.lane.b32.xlu0 %v1107, 56
        %v4122 = vpop.permute.xlu0 %4121
        %4123 = vrot.lane.b32.xlu0 %v1108, 56
        %v4124 = vpop.permute.xlu0 %4123
        %4125 = vrot.lane.b32.xlu0 %v1109, 56
        %v4126 = vpop.permute.xlu0 %4125
        %4127 = vrot.lane.b32.xlu0 %v1110, 56
        %v4128 = vpop.permute.xlu0 %4127
        %4129 = vrot.lane.b32.xlu0 %v1111, 56
        %v4130 = vpop.permute.xlu0 %4129
        %4131 = vrot.lane.b32.xlu0 %v1112, 56
        %v4132 = vpop.permute.xlu0 %4131
        %4133 = vrot.lane.b32.xlu0 %v1113, 56
        %v4134 = vpop.permute.xlu0 %4133
        %4135 = vrot.lane.b32.xlu0 %v1114, 56
        %v4136 = vpop.permute.xlu0 %4135
        %4137 = vrot.lane.b32.xlu0 %v1115, 56
        %v4138 = vpop.permute.xlu0 %4137
        %4139 = vrot.lane.b32.xlu0 %v1116, 56
        %v4140 = vpop.permute.xlu0 %4139
        %4141 = vrot.lane.b32.xlu0 %v1117, 56
        %v4142 = vpop.permute.xlu0 %4141
        %4143 = vrot.lane.b32.xlu0 %v1118, 56
        %v4144 = vpop.permute.xlu0 %4143
        %4145 = vrot.lane.b32.xlu0 %v1119, 56
        %v4146 = vpop.permute.xlu0 %4145
        %4147 = vrot.lane.b32.xlu0 %v1120, 56
        %v4148 = vpop.permute.xlu0 %4147
        %4149 = vrot.lane.b32.xlu0 %v1121, 56
        %v4150 = vpop.permute.xlu0 %4149
        %4151 = vrot.lane.b32.xlu0 %v1122, 56
        %v4152 = vpop.permute.xlu0 %4151
        %4153 = vrot.lane.b32.xlu0 %v1123, 56
        %v4154 = vpop.permute.xlu0 %4153
        %4155 = vrot.lane.b32.xlu0 %v1124, 56
        %v4156 = vpop.permute.xlu0 %4155
        %4157 = vrot.lane.b32.xlu0 %v1125, 56
        %v4158 = vpop.permute.xlu0 %4157
        %4159 = vrot.lane.b32.xlu0 %v1126, 56
        %v4160 = vpop.permute.xlu0 %4159
        %4161 = vrot.lane.b32.xlu0 %v1127, 56
        %v4162 = vpop.permute.xlu0 %4161
        %4163 = vrot.lane.b32.xlu0 %v1128, 56
        %v4164 = vpop.permute.xlu0 %4163
        %4165 = vrot.lane.b32.xlu0 %v1129, 56
        %v4166 = vpop.permute.xlu0 %4165
        %4167 = vrot.lane.b32.xlu0 %v1130, 56
        %v4168 = vpop.permute.xlu0 %4167
        %4169 = vrot.lane.b32.xlu0 %v1131, 56
        %v4170 = vpop.permute.xlu0 %4169
        %4171 = vrot.lane.b32.xlu0 %v1132, 56
        %v4172 = vpop.permute.xlu0 %4171
        %4173 = vrot.lane.b32.xlu0 %v1133, 56
        %v4174 = vpop.permute.xlu0 %4173
        %4175 = vrot.lane.b32.xlu0 %v1134, 56
        %v4176 = vpop.permute.xlu0 %4175
        %4177 = vrot.lane.b32.xlu0 %v1135, 56
        %v4178 = vpop.permute.xlu0 %4177
        %4179 = vrot.lane.b32.xlu0 %v1136, 56
        %v4180 = vpop.permute.xlu0 %4179
        %4181 = vrot.lane.b32.xlu0 %v1137, 56
        %v4182 = vpop.permute.xlu0 %4181
        %4183 = vrot.lane.b32.xlu0 %v1138, 56
        %v4184 = vpop.permute.xlu0 %4183
        %4185 = vrot.lane.b32.xlu0 %v1139, 56
        %v4186 = vpop.permute.xlu0 %4185
        %4187 = vrot.lane.b32.xlu0 %v1140, 56
        %v4188 = vpop.permute.xlu0 %4187
        %4189 = vrot.lane.b32.xlu0 %v1141, 56
        %v4190 = vpop.permute.xlu0 %4189
        %4191 = vrot.lane.b32.xlu0 %v1142, 56
        %v4192 = vpop.permute.xlu0 %4191
        %4193 = vrot.lane.b32.xlu0 %v1143, 56
        %v4194 = vpop.permute.xlu0 %4193
        %4195 = vrot.lane.b32.xlu0 %v1144, 56
        %v4196 = vpop.permute.xlu0 %4195
        %4197 = vrot.lane.b32.xlu0 %v1145, 56
        %v4198 = vpop.permute.xlu0 %4197
        %4199 = vrot.lane.b32.xlu0 %v1146, 56
        %v4200 = vpop.permute.xlu0 %4199
        %4201 = vrot.lane.b32.xlu0 %v1147, 56
        %v4202 = vpop.permute.xlu0 %4201
        %4203 = vrot.lane.b32.xlu0 %v1148, 56
        %v4204 = vpop.permute.xlu0 %4203
        %4205 = vrot.lane.b32.xlu0 %v1149, 56
        %v4206 = vpop.permute.xlu0 %4205
        %4207 = vrot.lane.b32.xlu0 %v1150, 56
        %v4208 = vpop.permute.xlu0 %4207
        %4209 = vrot.lane.b32.xlu0 %v1151, 56
        %v4210 = vpop.permute.xlu0 %4209
        %4211 = vrot.lane.b32.xlu0 %v1152, 56
        %v4212 = vpop.permute.xlu0 %4211
        %4213 = vrot.lane.b32.xlu0 %v1153, 56
        %v4214 = vpop.permute.xlu0 %4213
        %4215 = vrot.lane.b32.xlu0 %v1154, 56
        %v4216 = vpop.permute.xlu0 %4215
        %4217 = vrot.lane.b32.xlu0 %v1155, 56
        %v4218 = vpop.permute.xlu0 %4217
        %4219 = vrot.lane.b32.xlu0 %v1156, 56
        %v4220 = vpop.permute.xlu0 %4219
        %4221 = vrot.lane.b32.xlu0 %v1157, 56
        %v4222 = vpop.permute.xlu0 %4221
        %4223 = vrot.lane.b32.xlu0 %v1158, 56
        %v4224 = vpop.permute.xlu0 %4223
        %4225 = vrot.lane.b32.xlu0 %v1159, 56
        %v4226 = vpop.permute.xlu0 %4225
        %4227 = vrot.lane.b32.xlu0 %v1160, 56
        %v4228 = vpop.permute.xlu0 %4227
        %4229 = vrot.lane.b32.xlu0 %v1161, 56
        %v4230 = vpop.permute.xlu0 %4229
        %4231 = vrot.lane.b32.xlu0 %v1162, 56
        %v4232 = vpop.permute.xlu0 %4231
        %4233 = vrot.lane.b32.xlu0 %v1163, 56
        %v4234 = vpop.permute.xlu0 %4233
        %4235 = vrot.lane.b32.xlu0 %v1164, 56
        %v4236 = vpop.permute.xlu0 %4235
        %vm5261 = vcmask 7168
        %5262 = vst.msk [vmem:[%s139] sm:$0xff] %vm5261, %v2190
        %5263 = vst.msk [vmem:[%s139 + $0x8] sm:$0xff] %vm5261, %v2192
        %5264 = vst.msk [vmem:[%s139 + $0x10] sm:$0xff] %vm5261, %v2194
        %5265 = vst.msk [vmem:[%s139 + $0x18] sm:$0xff] %vm5261, %v2196
        %5266 = vst.msk [vmem:[%s139 + $0x20] sm:$0xff] %vm5261, %v2198
        %5267 = vst.msk [vmem:[%s139 + $0x28] sm:$0xff] %vm5261, %v2200
        %5268 = vst.msk [vmem:[%s139 + $0x30] sm:$0xff] %vm5261, %v2202
        %5269 = vst.msk [vmem:[%s139 + $0x38] sm:$0xff] %vm5261, %v2204
        %5270 = vst.msk [vmem:[%s139 + $0x40] sm:$0xff] %vm5261, %v2206
        %5271 = vst.msk [vmem:[%s139 + $0x48] sm:$0xff] %vm5261, %v2208
        %5272 = vst.msk [vmem:[%s139 + $0x50] sm:$0xff] %vm5261, %v2210
        %5273 = vst.msk [vmem:[%s139 + $0x58] sm:$0xff] %vm5261, %v2212
        %5274 = vst.msk [vmem:[%s139 + $0x60] sm:$0xff] %vm5261, %v2214
        %5275 = vst.msk [vmem:[%s139 + $0x68] sm:$0xff] %vm5261, %v2216
        %5276 = vst.msk [vmem:[%s139 + $0x70] sm:$0xff] %vm5261, %v2218
        %5277 = vst.msk [vmem:[%s139 + $0x78] sm:$0xff] %vm5261, %v2220
        %5278 = vst.msk [vmem:[%s139 + $0x80] sm:$0xff] %vm5261, %v2222
        %5279 = vst.msk [vmem:[%s139 + $0x88] sm:$0xff] %vm5261, %v2224
        %5280 = vst.msk [vmem:[%s139 + $0x90] sm:$0xff] %vm5261, %v2226
        %5281 = vst.msk [vmem:[%s139 + $0x98] sm:$0xff] %vm5261, %v2228
        %5282 = vst.msk [vmem:[%s139 + $0xa0] sm:$0xff] %vm5261, %v2230
        %5283 = vst.msk [vmem:[%s139 + $0xa8] sm:$0xff] %vm5261, %v2232
        %5284 = vst.msk [vmem:[%s139 + $0xb0] sm:$0xff] %vm5261, %v2234
        %5285 = vst.msk [vmem:[%s139 + $0xb8] sm:$0xff] %vm5261, %v2236
        %5286 = vst.msk [vmem:[%s139 + $0xc0] sm:$0xff] %vm5261, %v2238
        %5287 = vst.msk [vmem:[%s139 + $0xc8] sm:$0xff] %vm5261, %v2240
        %5288 = vst.msk [vmem:[%s139 + $0xd0] sm:$0xff] %vm5261, %v2242
        %5289 = vst.msk [vmem:[%s139 + $0xd8] sm:$0xff] %vm5261, %v2244
        %5290 = vst.msk [vmem:[%s139 + $0xe0] sm:$0xff] %vm5261, %v2246
        %5291 = vst.msk [vmem:[%s139 + $0xe8] sm:$0xff] %vm5261, %v2248
        %5292 = vst.msk [vmem:[%s139 + $0xf0] sm:$0xff] %vm5261, %v2250
        %5293 = vst.msk [vmem:[%s139 + $0xf8] sm:$0xff] %vm5261, %v2252
        %5294 = vst.msk [vmem:[%s139 + $0x100] sm:$0xff] %vm5261, %v2254
        %5295 = vst.msk [vmem:[%s139 + $0x108] sm:$0xff] %vm5261, %v2256
        %5296 = vst.msk [vmem:[%s139 + $0x110] sm:$0xff] %vm5261, %v2258
        %5297 = vst.msk [vmem:[%s139 + $0x118] sm:$0xff] %vm5261, %v2260
        %5298 = vst.msk [vmem:[%s139 + $0x120] sm:$0xff] %vm5261, %v2262
        %5299 = vst.msk [vmem:[%s139 + $0x128] sm:$0xff] %vm5261, %v2264
        %5300 = vst.msk [vmem:[%s139 + $0x130] sm:$0xff] %vm5261, %v2266
        %5301 = vst.msk [vmem:[%s139 + $0x138] sm:$0xff] %vm5261, %v2268
        %5302 = vst.msk [vmem:[%s139 + $0x140] sm:$0xff] %vm5261, %v2270
        %5303 = vst.msk [vmem:[%s139 + $0x148] sm:$0xff] %vm5261, %v2272
        %5304 = vst.msk [vmem:[%s139 + $0x150] sm:$0xff] %vm5261, %v2274
        %5305 = vst.msk [vmem:[%s139 + $0x158] sm:$0xff] %vm5261, %v2276
        %5306 = vst.msk [vmem:[%s139 + $0x160] sm:$0xff] %vm5261, %v2278
        %5307 = vst.msk [vmem:[%s139 + $0x168] sm:$0xff] %vm5261, %v2280
        %5308 = vst.msk [vmem:[%s139 + $0x170] sm:$0xff] %vm5261, %v2282
        %5309 = vst.msk [vmem:[%s139 + $0x178] sm:$0xff] %vm5261, %v2284
        %5310 = vst.msk [vmem:[%s139 + $0x180] sm:$0xff] %vm5261, %v2286
        %5311 = vst.msk [vmem:[%s139 + $0x188] sm:$0xff] %vm5261, %v2288
        %5312 = vst.msk [vmem:[%s139 + $0x190] sm:$0xff] %vm5261, %v2290
        %5313 = vst.msk [vmem:[%s139 + $0x198] sm:$0xff] %vm5261, %v2292
        %5314 = vst.msk [vmem:[%s139 + $0x1a0] sm:$0xff] %vm5261, %v2294
        %5315 = vst.msk [vmem:[%s139 + $0x1a8] sm:$0xff] %vm5261, %v2296
        %5316 = vst.msk [vmem:[%s139 + $0x1b0] sm:$0xff] %vm5261, %v2298
        %5317 = vst.msk [vmem:[%s139 + $0x1b8] sm:$0xff] %vm5261, %v2300
        %5318 = vst.msk [vmem:[%s139 + $0x1c0] sm:$0xff] %vm5261, %v2302
        %5319 = vst.msk [vmem:[%s139 + $0x1c8] sm:$0xff] %vm5261, %v2304
        %5320 = vst.msk [vmem:[%s139 + $0x1d0] sm:$0xff] %vm5261, %v2306
        %5321 = vst.msk [vmem:[%s139 + $0x1d8] sm:$0xff] %vm5261, %v2308
        %5322 = vst.msk [vmem:[%s139 + $0x1e0] sm:$0xff] %vm5261, %v2310
        %5323 = vst.msk [vmem:[%s139 + $0x1e8] sm:$0xff] %vm5261, %v2312
        %5324 = vst.msk [vmem:[%s139 + $0x1f0] sm:$0xff] %vm5261, %v2314
        %5325 = vst.msk [vmem:[%s139 + $0x1f8] sm:$0xff] %vm5261, %v2316
        %5326 = vst.msk [vmem:[%s139 + $0x200] sm:$0xff] %vm5261, %v2318
        %5327 = vst.msk [vmem:[%s139 + $0x208] sm:$0xff] %vm5261, %v2320
        %5328 = vst.msk [vmem:[%s139 + $0x210] sm:$0xff] %vm5261, %v2322
        %5329 = vst.msk [vmem:[%s139 + $0x218] sm:$0xff] %vm5261, %v2324
        %5330 = vst.msk [vmem:[%s139 + $0x220] sm:$0xff] %vm5261, %v2326
        %5331 = vst.msk [vmem:[%s139 + $0x228] sm:$0xff] %vm5261, %v2328
        %5332 = vst.msk [vmem:[%s139 + $0x230] sm:$0xff] %vm5261, %v2330
        %5333 = vst.msk [vmem:[%s139 + $0x238] sm:$0xff] %vm5261, %v2332
        %5334 = vst.msk [vmem:[%s139 + $0x240] sm:$0xff] %vm5261, %v2334
        %5335 = vst.msk [vmem:[%s139 + $0x248] sm:$0xff] %vm5261, %v2336
        %5336 = vst.msk [vmem:[%s139 + $0x250] sm:$0xff] %vm5261, %v2338
        %5337 = vst.msk [vmem:[%s139 + $0x258] sm:$0xff] %vm5261, %v2340
        %5338 = vst.msk [vmem:[%s139 + $0x260] sm:$0xff] %vm5261, %v2342
        %5339 = vst.msk [vmem:[%s139 + $0x268] sm:$0xff] %vm5261, %v2344
        %5340 = vst.msk [vmem:[%s139 + $0x270] sm:$0xff] %vm5261, %v2346
        %5341 = vst.msk [vmem:[%s139 + $0x278] sm:$0xff] %vm5261, %v2348
        %5342 = vst.msk [vmem:[%s139 + $0x280] sm:$0xff] %vm5261, %v2350
        %5343 = vst.msk [vmem:[%s139 + $0x288] sm:$0xff] %vm5261, %v2352
        %5344 = vst.msk [vmem:[%s139 + $0x290] sm:$0xff] %vm5261, %v2354
        %5345 = vst.msk [vmem:[%s139 + $0x298] sm:$0xff] %vm5261, %v2356
        %5346 = vst.msk [vmem:[%s139 + $0x2a0] sm:$0xff] %vm5261, %v2358
        %5347 = vst.msk [vmem:[%s139 + $0x2a8] sm:$0xff] %vm5261, %v2360
        %5348 = vst.msk [vmem:[%s139 + $0x2b0] sm:$0xff] %vm5261, %v2362
        %5349 = vst.msk [vmem:[%s139 + $0x2b8] sm:$0xff] %vm5261, %v2364
        %5350 = vst.msk [vmem:[%s139 + $0x2c0] sm:$0xff] %vm5261, %v2366
        %5351 = vst.msk [vmem:[%s139 + $0x2c8] sm:$0xff] %vm5261, %v2368
        %5352 = vst.msk [vmem:[%s139 + $0x2d0] sm:$0xff] %vm5261, %v2370
        %5353 = vst.msk [vmem:[%s139 + $0x2d8] sm:$0xff] %vm5261, %v2372
        %5354 = vst.msk [vmem:[%s139 + $0x2e0] sm:$0xff] %vm5261, %v2374
        %5355 = vst.msk [vmem:[%s139 + $0x2e8] sm:$0xff] %vm5261, %v2376
        %5356 = vst.msk [vmem:[%s139 + $0x2f0] sm:$0xff] %vm5261, %v2378
        %5357 = vst.msk [vmem:[%s139 + $0x2f8] sm:$0xff] %vm5261, %v2380
        %5358 = vst.msk [vmem:[%s139 + $0x300] sm:$0xff] %vm5261, %v2382
        %5359 = vst.msk [vmem:[%s139 + $0x308] sm:$0xff] %vm5261, %v2384
        %5360 = vst.msk [vmem:[%s139 + $0x310] sm:$0xff] %vm5261, %v2386
        %5361 = vst.msk [vmem:[%s139 + $0x318] sm:$0xff] %vm5261, %v2388
        %5362 = vst.msk [vmem:[%s139 + $0x320] sm:$0xff] %vm5261, %v2390
        %5363 = vst.msk [vmem:[%s139 + $0x328] sm:$0xff] %vm5261, %v2392
        %5364 = vst.msk [vmem:[%s139 + $0x330] sm:$0xff] %vm5261, %v2394
        %5365 = vst.msk [vmem:[%s139 + $0x338] sm:$0xff] %vm5261, %v2396
        %5366 = vst.msk [vmem:[%s139 + $0x340] sm:$0xff] %vm5261, %v2398
        %5367 = vst.msk [vmem:[%s139 + $0x348] sm:$0xff] %vm5261, %v2400
        %5368 = vst.msk [vmem:[%s139 + $0x350] sm:$0xff] %vm5261, %v2402
        %5369 = vst.msk [vmem:[%s139 + $0x358] sm:$0xff] %vm5261, %v2404
        %5370 = vst.msk [vmem:[%s139 + $0x360] sm:$0xff] %vm5261, %v2406
        %5371 = vst.msk [vmem:[%s139 + $0x368] sm:$0xff] %vm5261, %v2408
        %5372 = vst.msk [vmem:[%s139 + $0x370] sm:$0xff] %vm5261, %v2410
        %5373 = vst.msk [vmem:[%s139 + $0x378] sm:$0xff] %vm5261, %v2412
        %5374 = vst.msk [vmem:[%s139 + $0x380] sm:$0xff] %vm5261, %v2414
        %5375 = vst.msk [vmem:[%s139 + $0x388] sm:$0xff] %vm5261, %v2416
        %5376 = vst.msk [vmem:[%s139 + $0x390] sm:$0xff] %vm5261, %v2418
        %5377 = vst.msk [vmem:[%s139 + $0x398] sm:$0xff] %vm5261, %v2420
        %5378 = vst.msk [vmem:[%s139 + $0x3a0] sm:$0xff] %vm5261, %v2422
        %5379 = vst.msk [vmem:[%s139 + $0x3a8] sm:$0xff] %vm5261, %v2424
        %5380 = vst.msk [vmem:[%s139 + $0x3b0] sm:$0xff] %vm5261, %v2426
        %5381 = vst.msk [vmem:[%s139 + $0x3b8] sm:$0xff] %vm5261, %v2428
        %5382 = vst.msk [vmem:[%s139 + $0x3c0] sm:$0xff] %vm5261, %v2430
        %5383 = vst.msk [vmem:[%s139 + $0x3c8] sm:$0xff] %vm5261, %v2432
        %5384 = vst.msk [vmem:[%s139 + $0x3d0] sm:$0xff] %vm5261, %v2434
        %5385 = vst.msk [vmem:[%s139 + $0x3d8] sm:$0xff] %vm5261, %v2436
        %5386 = vst.msk [vmem:[%s139 + $0x3e0] sm:$0xff] %vm5261, %v2438
        %5387 = vst.msk [vmem:[%s139 + $0x3e8] sm:$0xff] %vm5261, %v2440
        %5388 = vst.msk [vmem:[%s139 + $0x3f0] sm:$0xff] %vm5261, %v2442
        %5389 = vst.msk [vmem:[%s139 + $0x3f8] sm:$0xff] %vm5261, %v2444
        %5390 = vst.msk [vmem:[%s139 + $0x400] sm:$0xff] %vm5261, %v2446
        %5391 = vst.msk [vmem:[%s139 + $0x408] sm:$0xff] %vm5261, %v2448
        %5392 = vst.msk [vmem:[%s139 + $0x410] sm:$0xff] %vm5261, %v2450
        %5393 = vst.msk [vmem:[%s139 + $0x418] sm:$0xff] %vm5261, %v2452
        %5394 = vst.msk [vmem:[%s139 + $0x420] sm:$0xff] %vm5261, %v2454
        %5395 = vst.msk [vmem:[%s139 + $0x428] sm:$0xff] %vm5261, %v2456
        %5396 = vst.msk [vmem:[%s139 + $0x430] sm:$0xff] %vm5261, %v2458
        %5397 = vst.msk [vmem:[%s139 + $0x438] sm:$0xff] %vm5261, %v2460
        %5398 = vst.msk [vmem:[%s139 + $0x440] sm:$0xff] %vm5261, %v2462
        %5399 = vst.msk [vmem:[%s139 + $0x448] sm:$0xff] %vm5261, %v2464
        %5400 = vst.msk [vmem:[%s139 + $0x450] sm:$0xff] %vm5261, %v2466
        %5401 = vst.msk [vmem:[%s139 + $0x458] sm:$0xff] %vm5261, %v2468
        %5402 = vst.msk [vmem:[%s139 + $0x460] sm:$0xff] %vm5261, %v2470
        %5403 = vst.msk [vmem:[%s139 + $0x468] sm:$0xff] %vm5261, %v2472
        %5404 = vst.msk [vmem:[%s139 + $0x470] sm:$0xff] %vm5261, %v2474
        %5405 = vst.msk [vmem:[%s139 + $0x478] sm:$0xff] %vm5261, %v2476
        %5406 = vst.msk [vmem:[%s139 + $0x480] sm:$0xff] %vm5261, %v2478
        %5407 = vst.msk [vmem:[%s139 + $0x488] sm:$0xff] %vm5261, %v2480
        %5408 = vst.msk [vmem:[%s139 + $0x490] sm:$0xff] %vm5261, %v2482
        %5409 = vst.msk [vmem:[%s139 + $0x498] sm:$0xff] %vm5261, %v2484
        %5410 = vst.msk [vmem:[%s139 + $0x4a0] sm:$0xff] %vm5261, %v2486
        %5411 = vst.msk [vmem:[%s139 + $0x4a8] sm:$0xff] %vm5261, %v2488
        %5412 = vst.msk [vmem:[%s139 + $0x4b0] sm:$0xff] %vm5261, %v2490
        %5413 = vst.msk [vmem:[%s139 + $0x4b8] sm:$0xff] %vm5261, %v2492
        %5414 = vst.msk [vmem:[%s139 + $0x4c0] sm:$0xff] %vm5261, %v2494
        %5415 = vst.msk [vmem:[%s139 + $0x4c8] sm:$0xff] %vm5261, %v2496
        %5416 = vst.msk [vmem:[%s139 + $0x4d0] sm:$0xff] %vm5261, %v2498
        %5417 = vst.msk [vmem:[%s139 + $0x4d8] sm:$0xff] %vm5261, %v2500
        %5418 = vst.msk [vmem:[%s139 + $0x4e0] sm:$0xff] %vm5261, %v2502
        %5419 = vst.msk [vmem:[%s139 + $0x4e8] sm:$0xff] %vm5261, %v2504
        %5420 = vst.msk [vmem:[%s139 + $0x4f0] sm:$0xff] %vm5261, %v2506
        %5421 = vst.msk [vmem:[%s139 + $0x4f8] sm:$0xff] %vm5261, %v2508
        %5422 = vst.msk [vmem:[%s139 + $0x500] sm:$0xff] %vm5261, %v2510
        %5423 = vst.msk [vmem:[%s139 + $0x508] sm:$0xff] %vm5261, %v2512
        %5424 = vst.msk [vmem:[%s139 + $0x510] sm:$0xff] %vm5261, %v2514
        %5425 = vst.msk [vmem:[%s139 + $0x518] sm:$0xff] %vm5261, %v2516
        %5426 = vst.msk [vmem:[%s139 + $0x520] sm:$0xff] %vm5261, %v2518
        %5427 = vst.msk [vmem:[%s139 + $0x528] sm:$0xff] %vm5261, %v2520
        %5428 = vst.msk [vmem:[%s139 + $0x530] sm:$0xff] %vm5261, %v2522
        %5429 = vst.msk [vmem:[%s139 + $0x538] sm:$0xff] %vm5261, %v2524
        %5430 = vst.msk [vmem:[%s139 + $0x540] sm:$0xff] %vm5261, %v2526
        %5431 = vst.msk [vmem:[%s139 + $0x548] sm:$0xff] %vm5261, %v2528
        %5432 = vst.msk [vmem:[%s139 + $0x550] sm:$0xff] %vm5261, %v2530
        %5433 = vst.msk [vmem:[%s139 + $0x558] sm:$0xff] %vm5261, %v2532
        %5434 = vst.msk [vmem:[%s139 + $0x560] sm:$0xff] %vm5261, %v2534
        %5435 = vst.msk [vmem:[%s139 + $0x568] sm:$0xff] %vm5261, %v2536
        %5436 = vst.msk [vmem:[%s139 + $0x570] sm:$0xff] %vm5261, %v2538
        %5437 = vst.msk [vmem:[%s139 + $0x578] sm:$0xff] %vm5261, %v2540
        %5438 = vst.msk [vmem:[%s139 + $0x580] sm:$0xff] %vm5261, %v2542
        %5439 = vst.msk [vmem:[%s139 + $0x588] sm:$0xff] %vm5261, %v2544
        %5440 = vst.msk [vmem:[%s139 + $0x590] sm:$0xff] %vm5261, %v2546
        %5441 = vst.msk [vmem:[%s139 + $0x598] sm:$0xff] %vm5261, %v2548
        %5442 = vst.msk [vmem:[%s139 + $0x5a0] sm:$0xff] %vm5261, %v2550
        %5443 = vst.msk [vmem:[%s139 + $0x5a8] sm:$0xff] %vm5261, %v2552
        %5444 = vst.msk [vmem:[%s139 + $0x5b0] sm:$0xff] %vm5261, %v2554
        %5445 = vst.msk [vmem:[%s139 + $0x5b8] sm:$0xff] %vm5261, %v2556
        %5446 = vst.msk [vmem:[%s139 + $0x5c0] sm:$0xff] %vm5261, %v2558
        %5447 = vst.msk [vmem:[%s139 + $0x5c8] sm:$0xff] %vm5261, %v2560
        %5448 = vst.msk [vmem:[%s139 + $0x5d0] sm:$0xff] %vm5261, %v2562
        %5449 = vst.msk [vmem:[%s139 + $0x5d8] sm:$0xff] %vm5261, %v2564
        %5450 = vst.msk [vmem:[%s139 + $0x5e0] sm:$0xff] %vm5261, %v2566
        %5451 = vst.msk [vmem:[%s139 + $0x5e8] sm:$0xff] %vm5261, %v2568
        %5452 = vst.msk [vmem:[%s139 + $0x5f0] sm:$0xff] %vm5261, %v2570
        %5453 = vst.msk [vmem:[%s139 + $0x5f8] sm:$0xff] %vm5261, %v2572
        %5454 = vst.msk [vmem:[%s139 + $0x600] sm:$0xff] %vm5261, %v2574
        %5455 = vst.msk [vmem:[%s139 + $0x608] sm:$0xff] %vm5261, %v2576
        %5456 = vst.msk [vmem:[%s139 + $0x610] sm:$0xff] %vm5261, %v2578
        %5457 = vst.msk [vmem:[%s139 + $0x618] sm:$0xff] %vm5261, %v2580
        %5458 = vst.msk [vmem:[%s139 + $0x620] sm:$0xff] %vm5261, %v2582
        %5459 = vst.msk [vmem:[%s139 + $0x628] sm:$0xff] %vm5261, %v2584
        %5460 = vst.msk [vmem:[%s139 + $0x630] sm:$0xff] %vm5261, %v2586
        %5461 = vst.msk [vmem:[%s139 + $0x638] sm:$0xff] %vm5261, %v2588
        %5462 = vst.msk [vmem:[%s139 + $0x640] sm:$0xff] %vm5261, %v2590
        %5463 = vst.msk [vmem:[%s139 + $0x648] sm:$0xff] %vm5261, %v2592
        %5464 = vst.msk [vmem:[%s139 + $0x650] sm:$0xff] %vm5261, %v2594
        %5465 = vst.msk [vmem:[%s139 + $0x658] sm:$0xff] %vm5261, %v2596
        %5466 = vst.msk [vmem:[%s139 + $0x660] sm:$0xff] %vm5261, %v2598
        %5467 = vst.msk [vmem:[%s139 + $0x668] sm:$0xff] %vm5261, %v2600
        %5468 = vst.msk [vmem:[%s139 + $0x670] sm:$0xff] %vm5261, %v2602
        %5469 = vst.msk [vmem:[%s139 + $0x678] sm:$0xff] %vm5261, %v2604
        %5470 = vst.msk [vmem:[%s139 + $0x680] sm:$0xff] %vm5261, %v2606
        %5471 = vst.msk [vmem:[%s139 + $0x688] sm:$0xff] %vm5261, %v2608
        %5472 = vst.msk [vmem:[%s139 + $0x690] sm:$0xff] %vm5261, %v2610
        %5473 = vst.msk [vmem:[%s139 + $0x698] sm:$0xff] %vm5261, %v2612
        %5474 = vst.msk [vmem:[%s139 + $0x6a0] sm:$0xff] %vm5261, %v2614
        %5475 = vst.msk [vmem:[%s139 + $0x6a8] sm:$0xff] %vm5261, %v2616
        %5476 = vst.msk [vmem:[%s139 + $0x6b0] sm:$0xff] %vm5261, %v2618
        %5477 = vst.msk [vmem:[%s139 + $0x6b8] sm:$0xff] %vm5261, %v2620
        %5478 = vst.msk [vmem:[%s139 + $0x6c0] sm:$0xff] %vm5261, %v2622
        %5479 = vst.msk [vmem:[%s139 + $0x6c8] sm:$0xff] %vm5261, %v2624
        %5480 = vst.msk [vmem:[%s139 + $0x6d0] sm:$0xff] %vm5261, %v2626
        %5481 = vst.msk [vmem:[%s139 + $0x6d8] sm:$0xff] %vm5261, %v2628
        %5482 = vst.msk [vmem:[%s139 + $0x6e0] sm:$0xff] %vm5261, %v2630
        %5483 = vst.msk [vmem:[%s139 + $0x6e8] sm:$0xff] %vm5261, %v2632
        %5484 = vst.msk [vmem:[%s139 + $0x6f0] sm:$0xff] %vm5261, %v2634
        %5485 = vst.msk [vmem:[%s139 + $0x6f8] sm:$0xff] %vm5261, %v2636
        %5486 = vst.msk [vmem:[%s139 + $0x700] sm:$0xff] %vm5261, %v2638
        %5487 = vst.msk [vmem:[%s139 + $0x708] sm:$0xff] %vm5261, %v2640
        %5488 = vst.msk [vmem:[%s139 + $0x710] sm:$0xff] %vm5261, %v2642
        %5489 = vst.msk [vmem:[%s139 + $0x718] sm:$0xff] %vm5261, %v2644
        %5490 = vst.msk [vmem:[%s139 + $0x720] sm:$0xff] %vm5261, %v2646
        %5491 = vst.msk [vmem:[%s139 + $0x728] sm:$0xff] %vm5261, %v2648
        %5492 = vst.msk [vmem:[%s139 + $0x730] sm:$0xff] %vm5261, %v2650
        %5493 = vst.msk [vmem:[%s139 + $0x738] sm:$0xff] %vm5261, %v2652
        %5494 = vst.msk [vmem:[%s139 + $0x740] sm:$0xff] %vm5261, %v2654
        %5495 = vst.msk [vmem:[%s139 + $0x748] sm:$0xff] %vm5261, %v2656
        %5496 = vst.msk [vmem:[%s139 + $0x750] sm:$0xff] %vm5261, %v2658
        %5497 = vst.msk [vmem:[%s139 + $0x758] sm:$0xff] %vm5261, %v2660
        %5498 = vst.msk [vmem:[%s139 + $0x760] sm:$0xff] %vm5261, %v2662
        %5499 = vst.msk [vmem:[%s139 + $0x768] sm:$0xff] %vm5261, %v2664
        %5500 = vst.msk [vmem:[%s139 + $0x770] sm:$0xff] %vm5261, %v2666
        %5501 = vst.msk [vmem:[%s139 + $0x778] sm:$0xff] %vm5261, %v2668
        %5502 = vst.msk [vmem:[%s139 + $0x780] sm:$0xff] %vm5261, %v2670
        %5503 = vst.msk [vmem:[%s139 + $0x788] sm:$0xff] %vm5261, %v2672
        %5504 = vst.msk [vmem:[%s139 + $0x790] sm:$0xff] %vm5261, %v2674
        %5505 = vst.msk [vmem:[%s139 + $0x798] sm:$0xff] %vm5261, %v2676
        %5506 = vst.msk [vmem:[%s139 + $0x7a0] sm:$0xff] %vm5261, %v2678
        %5507 = vst.msk [vmem:[%s139 + $0x7a8] sm:$0xff] %vm5261, %v2680
        %5508 = vst.msk [vmem:[%s139 + $0x7b0] sm:$0xff] %vm5261, %v2682
        %5509 = vst.msk [vmem:[%s139 + $0x7b8] sm:$0xff] %vm5261, %v2684
        %5510 = vst.msk [vmem:[%s139 + $0x7c0] sm:$0xff] %vm5261, %v2686
        %5511 = vst.msk [vmem:[%s139 + $0x7c8] sm:$0xff] %vm5261, %v2688
        %5512 = vst.msk [vmem:[%s139 + $0x7d0] sm:$0xff] %vm5261, %v2690
        %5513 = vst.msk [vmem:[%s139 + $0x7d8] sm:$0xff] %vm5261, %v2692
        %5514 = vst.msk [vmem:[%s139 + $0x7e0] sm:$0xff] %vm5261, %v2694
        %5515 = vst.msk [vmem:[%s139 + $0x7e8] sm:$0xff] %vm5261, %v2696
        %5516 = vst.msk [vmem:[%s139 + $0x7f0] sm:$0xff] %vm5261, %v2698
        %5517 = vst.msk [vmem:[%s139 + $0x7f8] sm:$0xff] %vm5261, %v2700
        %5518 = vst.msk [vmem:[%s139 + $0x800] sm:$0xff] %vm5261, %v2702
        %5519 = vst.msk [vmem:[%s139 + $0x808] sm:$0xff] %vm5261, %v2704
        %5520 = vst.msk [vmem:[%s139 + $0x810] sm:$0xff] %vm5261, %v2706
        %5521 = vst.msk [vmem:[%s139 + $0x818] sm:$0xff] %vm5261, %v2708
        %5522 = vst.msk [vmem:[%s139 + $0x820] sm:$0xff] %vm5261, %v2710
        %5523 = vst.msk [vmem:[%s139 + $0x828] sm:$0xff] %vm5261, %v2712
        %5524 = vst.msk [vmem:[%s139 + $0x830] sm:$0xff] %vm5261, %v2714
        %5525 = vst.msk [vmem:[%s139 + $0x838] sm:$0xff] %vm5261, %v2716
        %5526 = vst.msk [vmem:[%s139 + $0x840] sm:$0xff] %vm5261, %v2718
        %5527 = vst.msk [vmem:[%s139 + $0x848] sm:$0xff] %vm5261, %v2720
        %5528 = vst.msk [vmem:[%s139 + $0x850] sm:$0xff] %vm5261, %v2722
        %5529 = vst.msk [vmem:[%s139 + $0x858] sm:$0xff] %vm5261, %v2724
        %5530 = vst.msk [vmem:[%s139 + $0x860] sm:$0xff] %vm5261, %v2726
        %5531 = vst.msk [vmem:[%s139 + $0x868] sm:$0xff] %vm5261, %v2728
        %5532 = vst.msk [vmem:[%s139 + $0x870] sm:$0xff] %vm5261, %v2730
        %5533 = vst.msk [vmem:[%s139 + $0x878] sm:$0xff] %vm5261, %v2732
        %5534 = vst.msk [vmem:[%s139 + $0x880] sm:$0xff] %vm5261, %v2734
        %5535 = vst.msk [vmem:[%s139 + $0x888] sm:$0xff] %vm5261, %v2736
        %5536 = vst.msk [vmem:[%s139 + $0x890] sm:$0xff] %vm5261, %v2738
        %5537 = vst.msk [vmem:[%s139 + $0x898] sm:$0xff] %vm5261, %v2740
        %5538 = vst.msk [vmem:[%s139 + $0x8a0] sm:$0xff] %vm5261, %v2742
        %5539 = vst.msk [vmem:[%s139 + $0x8a8] sm:$0xff] %vm5261, %v2744
        %5540 = vst.msk [vmem:[%s139 + $0x8b0] sm:$0xff] %vm5261, %v2746
        %5541 = vst.msk [vmem:[%s139 + $0x8b8] sm:$0xff] %vm5261, %v2748
        %5542 = vst.msk [vmem:[%s139 + $0x8c0] sm:$0xff] %vm5261, %v2750
        %5543 = vst.msk [vmem:[%s139 + $0x8c8] sm:$0xff] %vm5261, %v2752
        %5544 = vst.msk [vmem:[%s139 + $0x8d0] sm:$0xff] %vm5261, %v2754
        %5545 = vst.msk [vmem:[%s139 + $0x8d8] sm:$0xff] %vm5261, %v2756
        %5546 = vst.msk [vmem:[%s139 + $0x8e0] sm:$0xff] %vm5261, %v2758
        %5547 = vst.msk [vmem:[%s139 + $0x8e8] sm:$0xff] %vm5261, %v2760
        %5548 = vst.msk [vmem:[%s139 + $0x8f0] sm:$0xff] %vm5261, %v2762
        %5549 = vst.msk [vmem:[%s139 + $0x8f8] sm:$0xff] %vm5261, %v2764
        %5550 = vst.msk [vmem:[%s139 + $0x900] sm:$0xff] %vm5261, %v2766
        %5551 = vst.msk [vmem:[%s139 + $0x908] sm:$0xff] %vm5261, %v2768
        %5552 = vst.msk [vmem:[%s139 + $0x910] sm:$0xff] %vm5261, %v2770
        %5553 = vst.msk [vmem:[%s139 + $0x918] sm:$0xff] %vm5261, %v2772
        %5554 = vst.msk [vmem:[%s139 + $0x920] sm:$0xff] %vm5261, %v2774
        %5555 = vst.msk [vmem:[%s139 + $0x928] sm:$0xff] %vm5261, %v2776
        %5556 = vst.msk [vmem:[%s139 + $0x930] sm:$0xff] %vm5261, %v2778
        %5557 = vst.msk [vmem:[%s139 + $0x938] sm:$0xff] %vm5261, %v2780
        %5558 = vst.msk [vmem:[%s139 + $0x940] sm:$0xff] %vm5261, %v2782
        %5559 = vst.msk [vmem:[%s139 + $0x948] sm:$0xff] %vm5261, %v2784
        %5560 = vst.msk [vmem:[%s139 + $0x950] sm:$0xff] %vm5261, %v2786
        %5561 = vst.msk [vmem:[%s139 + $0x958] sm:$0xff] %vm5261, %v2788
        %5562 = vst.msk [vmem:[%s139 + $0x960] sm:$0xff] %vm5261, %v2790
        %5563 = vst.msk [vmem:[%s139 + $0x968] sm:$0xff] %vm5261, %v2792
        %5564 = vst.msk [vmem:[%s139 + $0x970] sm:$0xff] %vm5261, %v2794
        %5565 = vst.msk [vmem:[%s139 + $0x978] sm:$0xff] %vm5261, %v2796
        %5566 = vst.msk [vmem:[%s139 + $0x980] sm:$0xff] %vm5261, %v2798
        %5567 = vst.msk [vmem:[%s139 + $0x988] sm:$0xff] %vm5261, %v2800
        %5568 = vst.msk [vmem:[%s139 + $0x990] sm:$0xff] %vm5261, %v2802
        %5569 = vst.msk [vmem:[%s139 + $0x998] sm:$0xff] %vm5261, %v2804
        %5570 = vst.msk [vmem:[%s139 + $0x9a0] sm:$0xff] %vm5261, %v2806
        %5571 = vst.msk [vmem:[%s139 + $0x9a8] sm:$0xff] %vm5261, %v2808
        %5572 = vst.msk [vmem:[%s139 + $0x9b0] sm:$0xff] %vm5261, %v2810
        %5573 = vst.msk [vmem:[%s139 + $0x9b8] sm:$0xff] %vm5261, %v2812
        %5574 = vst.msk [vmem:[%s139 + $0x9c0] sm:$0xff] %vm5261, %v2814
        %5575 = vst.msk [vmem:[%s139 + $0x9c8] sm:$0xff] %vm5261, %v2816
        %5576 = vst.msk [vmem:[%s139 + $0x9d0] sm:$0xff] %vm5261, %v2818
        %5577 = vst.msk [vmem:[%s139 + $0x9d8] sm:$0xff] %vm5261, %v2820
        %5578 = vst.msk [vmem:[%s139 + $0x9e0] sm:$0xff] %vm5261, %v2822
        %5579 = vst.msk [vmem:[%s139 + $0x9e8] sm:$0xff] %vm5261, %v2824
        %5580 = vst.msk [vmem:[%s139 + $0x9f0] sm:$0xff] %vm5261, %v2826
        %5581 = vst.msk [vmem:[%s139 + $0x9f8] sm:$0xff] %vm5261, %v2828
        %5582 = vst.msk [vmem:[%s139 + $0xa00] sm:$0xff] %vm5261, %v2830
        %5583 = vst.msk [vmem:[%s139 + $0xa08] sm:$0xff] %vm5261, %v2832
        %5584 = vst.msk [vmem:[%s139 + $0xa10] sm:$0xff] %vm5261, %v2834
        %5585 = vst.msk [vmem:[%s139 + $0xa18] sm:$0xff] %vm5261, %v2836
        %5586 = vst.msk [vmem:[%s139 + $0xa20] sm:$0xff] %vm5261, %v2838
        %5587 = vst.msk [vmem:[%s139 + $0xa28] sm:$0xff] %vm5261, %v2840
        %5588 = vst.msk [vmem:[%s139 + $0xa30] sm:$0xff] %vm5261, %v2842
        %5589 = vst.msk [vmem:[%s139 + $0xa38] sm:$0xff] %vm5261, %v2844
        %5590 = vst.msk [vmem:[%s139 + $0xa40] sm:$0xff] %vm5261, %v2846
        %5591 = vst.msk [vmem:[%s139 + $0xa48] sm:$0xff] %vm5261, %v2848
        %5592 = vst.msk [vmem:[%s139 + $0xa50] sm:$0xff] %vm5261, %v2850
        %5593 = vst.msk [vmem:[%s139 + $0xa58] sm:$0xff] %vm5261, %v2852
        %5594 = vst.msk [vmem:[%s139 + $0xa60] sm:$0xff] %vm5261, %v2854
        %5595 = vst.msk [vmem:[%s139 + $0xa68] sm:$0xff] %vm5261, %v2856
        %5596 = vst.msk [vmem:[%s139 + $0xa70] sm:$0xff] %vm5261, %v2858
        %5597 = vst.msk [vmem:[%s139 + $0xa78] sm:$0xff] %vm5261, %v2860
        %5598 = vst.msk [vmem:[%s139 + $0xa80] sm:$0xff] %vm5261, %v2862
        %5599 = vst.msk [vmem:[%s139 + $0xa88] sm:$0xff] %vm5261, %v2864
        %5600 = vst.msk [vmem:[%s139 + $0xa90] sm:$0xff] %vm5261, %v2866
        %5601 = vst.msk [vmem:[%s139 + $0xa98] sm:$0xff] %vm5261, %v2868
        %5602 = vst.msk [vmem:[%s139 + $0xaa0] sm:$0xff] %vm5261, %v2870
        %5603 = vst.msk [vmem:[%s139 + $0xaa8] sm:$0xff] %vm5261, %v2872
        %5604 = vst.msk [vmem:[%s139 + $0xab0] sm:$0xff] %vm5261, %v2874
        %5605 = vst.msk [vmem:[%s139 + $0xab8] sm:$0xff] %vm5261, %v2876
        %5606 = vst.msk [vmem:[%s139 + $0xac0] sm:$0xff] %vm5261, %v2878
        %5607 = vst.msk [vmem:[%s139 + $0xac8] sm:$0xff] %vm5261, %v2880
        %5608 = vst.msk [vmem:[%s139 + $0xad0] sm:$0xff] %vm5261, %v2882
        %5609 = vst.msk [vmem:[%s139 + $0xad8] sm:$0xff] %vm5261, %v2884
        %5610 = vst.msk [vmem:[%s139 + $0xae0] sm:$0xff] %vm5261, %v2886
        %5611 = vst.msk [vmem:[%s139 + $0xae8] sm:$0xff] %vm5261, %v2888
        %5612 = vst.msk [vmem:[%s139 + $0xaf0] sm:$0xff] %vm5261, %v2890
        %5613 = vst.msk [vmem:[%s139 + $0xaf8] sm:$0xff] %vm5261, %v2892
        %5614 = vst.msk [vmem:[%s139 + $0xb00] sm:$0xff] %vm5261, %v2894
        %5615 = vst.msk [vmem:[%s139 + $0xb08] sm:$0xff] %vm5261, %v2896
        %5616 = vst.msk [vmem:[%s139 + $0xb10] sm:$0xff] %vm5261, %v2898
        %5617 = vst.msk [vmem:[%s139 + $0xb18] sm:$0xff] %vm5261, %v2900
        %5618 = vst.msk [vmem:[%s139 + $0xb20] sm:$0xff] %vm5261, %v2902
        %5619 = vst.msk [vmem:[%s139 + $0xb28] sm:$0xff] %vm5261, %v2904
        %5620 = vst.msk [vmem:[%s139 + $0xb30] sm:$0xff] %vm5261, %v2906
        %5621 = vst.msk [vmem:[%s139 + $0xb38] sm:$0xff] %vm5261, %v2908
        %5622 = vst.msk [vmem:[%s139 + $0xb40] sm:$0xff] %vm5261, %v2910
        %5623 = vst.msk [vmem:[%s139 + $0xb48] sm:$0xff] %vm5261, %v2912
        %5624 = vst.msk [vmem:[%s139 + $0xb50] sm:$0xff] %vm5261, %v2914
        %5625 = vst.msk [vmem:[%s139 + $0xb58] sm:$0xff] %vm5261, %v2916
        %5626 = vst.msk [vmem:[%s139 + $0xb60] sm:$0xff] %vm5261, %v2918
        %5627 = vst.msk [vmem:[%s139 + $0xb68] sm:$0xff] %vm5261, %v2920
        %5628 = vst.msk [vmem:[%s139 + $0xb70] sm:$0xff] %vm5261, %v2922
        %5629 = vst.msk [vmem:[%s139 + $0xb78] sm:$0xff] %vm5261, %v2924
        %5630 = vst.msk [vmem:[%s139 + $0xb80] sm:$0xff] %vm5261, %v2926
        %5631 = vst.msk [vmem:[%s139 + $0xb88] sm:$0xff] %vm5261, %v2928
        %5632 = vst.msk [vmem:[%s139 + $0xb90] sm:$0xff] %vm5261, %v2930
        %5633 = vst.msk [vmem:[%s139 + $0xb98] sm:$0xff] %vm5261, %v2932
        %5634 = vst.msk [vmem:[%s139 + $0xba0] sm:$0xff] %vm5261, %v2934
        %5635 = vst.msk [vmem:[%s139 + $0xba8] sm:$0xff] %vm5261, %v2936
        %5636 = vst.msk [vmem:[%s139 + $0xbb0] sm:$0xff] %vm5261, %v2938
        %5637 = vst.msk [vmem:[%s139 + $0xbb8] sm:$0xff] %vm5261, %v2940
        %5638 = vst.msk [vmem:[%s139 + $0xbc0] sm:$0xff] %vm5261, %v2942
        %5639 = vst.msk [vmem:[%s139 + $0xbc8] sm:$0xff] %vm5261, %v2944
        %5640 = vst.msk [vmem:[%s139 + $0xbd0] sm:$0xff] %vm5261, %v2946
        %5641 = vst.msk [vmem:[%s139 + $0xbd8] sm:$0xff] %vm5261, %v2948
        %5642 = vst.msk [vmem:[%s139 + $0xbe0] sm:$0xff] %vm5261, %v2950
        %5643 = vst.msk [vmem:[%s139 + $0xbe8] sm:$0xff] %vm5261, %v2952
        %5644 = vst.msk [vmem:[%s139 + $0xbf0] sm:$0xff] %vm5261, %v2954
        %5645 = vst.msk [vmem:[%s139 + $0xbf8] sm:$0xff] %vm5261, %v2956
        %5646 = vst.msk [vmem:[%s139 + $0xc00] sm:$0xff] %vm5261, %v2958
        %5647 = vst.msk [vmem:[%s139 + $0xc08] sm:$0xff] %vm5261, %v2960
        %5648 = vst.msk [vmem:[%s139 + $0xc10] sm:$0xff] %vm5261, %v2962
        %5649 = vst.msk [vmem:[%s139 + $0xc18] sm:$0xff] %vm5261, %v2964
        %5650 = vst.msk [vmem:[%s139 + $0xc20] sm:$0xff] %vm5261, %v2966
        %5651 = vst.msk [vmem:[%s139 + $0xc28] sm:$0xff] %vm5261, %v2968
        %5652 = vst.msk [vmem:[%s139 + $0xc30] sm:$0xff] %vm5261, %v2970
        %5653 = vst.msk [vmem:[%s139 + $0xc38] sm:$0xff] %vm5261, %v2972
        %5654 = vst.msk [vmem:[%s139 + $0xc40] sm:$0xff] %vm5261, %v2974
        %5655 = vst.msk [vmem:[%s139 + $0xc48] sm:$0xff] %vm5261, %v2976
        %5656 = vst.msk [vmem:[%s139 + $0xc50] sm:$0xff] %vm5261, %v2978
        %5657 = vst.msk [vmem:[%s139 + $0xc58] sm:$0xff] %vm5261, %v2980
        %5658 = vst.msk [vmem:[%s139 + $0xc60] sm:$0xff] %vm5261, %v2982
        %5659 = vst.msk [vmem:[%s139 + $0xc68] sm:$0xff] %vm5261, %v2984
        %5660 = vst.msk [vmem:[%s139 + $0xc70] sm:$0xff] %vm5261, %v2986
        %5661 = vst.msk [vmem:[%s139 + $0xc78] sm:$0xff] %vm5261, %v2988
        %5662 = vst.msk [vmem:[%s139 + $0xc80] sm:$0xff] %vm5261, %v2990
        %5663 = vst.msk [vmem:[%s139 + $0xc88] sm:$0xff] %vm5261, %v2992
        %5664 = vst.msk [vmem:[%s139 + $0xc90] sm:$0xff] %vm5261, %v2994
        %5665 = vst.msk [vmem:[%s139 + $0xc98] sm:$0xff] %vm5261, %v2996
        %5666 = vst.msk [vmem:[%s139 + $0xca0] sm:$0xff] %vm5261, %v2998
        %5667 = vst.msk [vmem:[%s139 + $0xca8] sm:$0xff] %vm5261, %v3000
        %5668 = vst.msk [vmem:[%s139 + $0xcb0] sm:$0xff] %vm5261, %v3002
        %5669 = vst.msk [vmem:[%s139 + $0xcb8] sm:$0xff] %vm5261, %v3004
        %5670 = vst.msk [vmem:[%s139 + $0xcc0] sm:$0xff] %vm5261, %v3006
        %5671 = vst.msk [vmem:[%s139 + $0xcc8] sm:$0xff] %vm5261, %v3008
        %5672 = vst.msk [vmem:[%s139 + $0xcd0] sm:$0xff] %vm5261, %v3010
        %5673 = vst.msk [vmem:[%s139 + $0xcd8] sm:$0xff] %vm5261, %v3012
        %5674 = vst.msk [vmem:[%s139 + $0xce0] sm:$0xff] %vm5261, %v3014
        %5675 = vst.msk [vmem:[%s139 + $0xce8] sm:$0xff] %vm5261, %v3016
        %5676 = vst.msk [vmem:[%s139 + $0xcf0] sm:$0xff] %vm5261, %v3018
        %5677 = vst.msk [vmem:[%s139 + $0xcf8] sm:$0xff] %vm5261, %v3020
        %5678 = vst.msk [vmem:[%s139 + $0xd00] sm:$0xff] %vm5261, %v3022
        %5679 = vst.msk [vmem:[%s139 + $0xd08] sm:$0xff] %vm5261, %v3024
        %5680 = vst.msk [vmem:[%s139 + $0xd10] sm:$0xff] %vm5261, %v3026
        %5681 = vst.msk [vmem:[%s139 + $0xd18] sm:$0xff] %vm5261, %v3028
        %5682 = vst.msk [vmem:[%s139 + $0xd20] sm:$0xff] %vm5261, %v3030
        %5683 = vst.msk [vmem:[%s139 + $0xd28] sm:$0xff] %vm5261, %v3032
        %5684 = vst.msk [vmem:[%s139 + $0xd30] sm:$0xff] %vm5261, %v3034
        %5685 = vst.msk [vmem:[%s139 + $0xd38] sm:$0xff] %vm5261, %v3036
        %5686 = vst.msk [vmem:[%s139 + $0xd40] sm:$0xff] %vm5261, %v3038
        %5687 = vst.msk [vmem:[%s139 + $0xd48] sm:$0xff] %vm5261, %v3040
        %5688 = vst.msk [vmem:[%s139 + $0xd50] sm:$0xff] %vm5261, %v3042
        %5689 = vst.msk [vmem:[%s139 + $0xd58] sm:$0xff] %vm5261, %v3044
        %5690 = vst.msk [vmem:[%s139 + $0xd60] sm:$0xff] %vm5261, %v3046
        %5691 = vst.msk [vmem:[%s139 + $0xd68] sm:$0xff] %vm5261, %v3048
        %5692 = vst.msk [vmem:[%s139 + $0xd70] sm:$0xff] %vm5261, %v3050
        %5693 = vst.msk [vmem:[%s139 + $0xd78] sm:$0xff] %vm5261, %v3052
        %5694 = vst.msk [vmem:[%s139 + $0xd80] sm:$0xff] %vm5261, %v3054
        %5695 = vst.msk [vmem:[%s139 + $0xd88] sm:$0xff] %vm5261, %v3056
        %5696 = vst.msk [vmem:[%s139 + $0xd90] sm:$0xff] %vm5261, %v3058
        %5697 = vst.msk [vmem:[%s139 + $0xd98] sm:$0xff] %vm5261, %v3060
        %5698 = vst.msk [vmem:[%s139 + $0xda0] sm:$0xff] %vm5261, %v3062
        %5699 = vst.msk [vmem:[%s139 + $0xda8] sm:$0xff] %vm5261, %v3064
        %5700 = vst.msk [vmem:[%s139 + $0xdb0] sm:$0xff] %vm5261, %v3066
        %5701 = vst.msk [vmem:[%s139 + $0xdb8] sm:$0xff] %vm5261, %v3068
        %5702 = vst.msk [vmem:[%s139 + $0xdc0] sm:$0xff] %vm5261, %v3070
        %5703 = vst.msk [vmem:[%s139 + $0xdc8] sm:$0xff] %vm5261, %v3072
        %5704 = vst.msk [vmem:[%s139 + $0xdd0] sm:$0xff] %vm5261, %v3074
        %5705 = vst.msk [vmem:[%s139 + $0xdd8] sm:$0xff] %vm5261, %v3076
        %5706 = vst.msk [vmem:[%s139 + $0xde0] sm:$0xff] %vm5261, %v3078
        %5707 = vst.msk [vmem:[%s139 + $0xde8] sm:$0xff] %vm5261, %v3080
        %5708 = vst.msk [vmem:[%s139 + $0xdf0] sm:$0xff] %vm5261, %v3082
        %5709 = vst.msk [vmem:[%s139 + $0xdf8] sm:$0xff] %vm5261, %v3084
        %5710 = vst.msk [vmem:[%s139 + $0xe00] sm:$0xff] %vm5261, %v3086
        %5711 = vst.msk [vmem:[%s139 + $0xe08] sm:$0xff] %vm5261, %v3088
        %5712 = vst.msk [vmem:[%s139 + $0xe10] sm:$0xff] %vm5261, %v3090
        %5713 = vst.msk [vmem:[%s139 + $0xe18] sm:$0xff] %vm5261, %v3092
        %5714 = vst.msk [vmem:[%s139 + $0xe20] sm:$0xff] %vm5261, %v3094
        %5715 = vst.msk [vmem:[%s139 + $0xe28] sm:$0xff] %vm5261, %v3096
        %5716 = vst.msk [vmem:[%s139 + $0xe30] sm:$0xff] %vm5261, %v3098
        %5717 = vst.msk [vmem:[%s139 + $0xe38] sm:$0xff] %vm5261, %v3100
        %5718 = vst.msk [vmem:[%s139 + $0xe40] sm:$0xff] %vm5261, %v3102
        %5719 = vst.msk [vmem:[%s139 + $0xe48] sm:$0xff] %vm5261, %v3104
        %5720 = vst.msk [vmem:[%s139 + $0xe50] sm:$0xff] %vm5261, %v3106
        %5721 = vst.msk [vmem:[%s139 + $0xe58] sm:$0xff] %vm5261, %v3108
        %5722 = vst.msk [vmem:[%s139 + $0xe60] sm:$0xff] %vm5261, %v3110
        %5723 = vst.msk [vmem:[%s139 + $0xe68] sm:$0xff] %vm5261, %v3112
        %5724 = vst.msk [vmem:[%s139 + $0xe70] sm:$0xff] %vm5261, %v3114
        %5725 = vst.msk [vmem:[%s139 + $0xe78] sm:$0xff] %vm5261, %v3116
        %5726 = vst.msk [vmem:[%s139 + $0xe80] sm:$0xff] %vm5261, %v3118
        %5727 = vst.msk [vmem:[%s139 + $0xe88] sm:$0xff] %vm5261, %v3120
        %5728 = vst.msk [vmem:[%s139 + $0xe90] sm:$0xff] %vm5261, %v3122
        %5729 = vst.msk [vmem:[%s139 + $0xe98] sm:$0xff] %vm5261, %v3124
        %5730 = vst.msk [vmem:[%s139 + $0xea0] sm:$0xff] %vm5261, %v3126
        %5731 = vst.msk [vmem:[%s139 + $0xea8] sm:$0xff] %vm5261, %v3128
        %5732 = vst.msk [vmem:[%s139 + $0xeb0] sm:$0xff] %vm5261, %v3130
        %5733 = vst.msk [vmem:[%s139 + $0xeb8] sm:$0xff] %vm5261, %v3132
        %5734 = vst.msk [vmem:[%s139 + $0xec0] sm:$0xff] %vm5261, %v3134
        %5735 = vst.msk [vmem:[%s139 + $0xec8] sm:$0xff] %vm5261, %v3136
        %5736 = vst.msk [vmem:[%s139 + $0xed0] sm:$0xff] %vm5261, %v3138
        %5737 = vst.msk [vmem:[%s139 + $0xed8] sm:$0xff] %vm5261, %v3140
        %5738 = vst.msk [vmem:[%s139 + $0xee0] sm:$0xff] %vm5261, %v3142
        %5739 = vst.msk [vmem:[%s139 + $0xee8] sm:$0xff] %vm5261, %v3144
        %5740 = vst.msk [vmem:[%s139 + $0xef0] sm:$0xff] %vm5261, %v3146
        %5741 = vst.msk [vmem:[%s139 + $0xef8] sm:$0xff] %vm5261, %v3148
        %5742 = vst.msk [vmem:[%s139 + $0xf00] sm:$0xff] %vm5261, %v3150
        %5743 = vst.msk [vmem:[%s139 + $0xf08] sm:$0xff] %vm5261, %v3152
        %5744 = vst.msk [vmem:[%s139 + $0xf10] sm:$0xff] %vm5261, %v3154
        %5745 = vst.msk [vmem:[%s139 + $0xf18] sm:$0xff] %vm5261, %v3156
        %5746 = vst.msk [vmem:[%s139 + $0xf20] sm:$0xff] %vm5261, %v3158
        %5747 = vst.msk [vmem:[%s139 + $0xf28] sm:$0xff] %vm5261, %v3160
        %5748 = vst.msk [vmem:[%s139 + $0xf30] sm:$0xff] %vm5261, %v3162
        %5749 = vst.msk [vmem:[%s139 + $0xf38] sm:$0xff] %vm5261, %v3164
        %5750 = vst.msk [vmem:[%s139 + $0xf40] sm:$0xff] %vm5261, %v3166
        %5751 = vst.msk [vmem:[%s139 + $0xf48] sm:$0xff] %vm5261, %v3168
        %5752 = vst.msk [vmem:[%s139 + $0xf50] sm:$0xff] %vm5261, %v3170
        %5753 = vst.msk [vmem:[%s139 + $0xf58] sm:$0xff] %vm5261, %v3172
        %5754 = vst.msk [vmem:[%s139 + $0xf60] sm:$0xff] %vm5261, %v3174
        %5755 = vst.msk [vmem:[%s139 + $0xf68] sm:$0xff] %vm5261, %v3176
        %5756 = vst.msk [vmem:[%s139 + $0xf70] sm:$0xff] %vm5261, %v3178
        %5757 = vst.msk [vmem:[%s139 + $0xf78] sm:$0xff] %vm5261, %v3180
        %5758 = vst.msk [vmem:[%s139 + $0xf80] sm:$0xff] %vm5261, %v3182
        %5759 = vst.msk [vmem:[%s139 + $0xf88] sm:$0xff] %vm5261, %v3184
        %5760 = vst.msk [vmem:[%s139 + $0xf90] sm:$0xff] %vm5261, %v3186
        %5761 = vst.msk [vmem:[%s139 + $0xf98] sm:$0xff] %vm5261, %v3188
        %5762 = vst.msk [vmem:[%s139 + $0xfa0] sm:$0xff] %vm5261, %v3190
        %5763 = vst.msk [vmem:[%s139 + $0xfa8] sm:$0xff] %vm5261, %v3192
        %5764 = vst.msk [vmem:[%s139 + $0xfb0] sm:$0xff] %vm5261, %v3194
        %5765 = vst.msk [vmem:[%s139 + $0xfb8] sm:$0xff] %vm5261, %v3196
        %5766 = vst.msk [vmem:[%s139 + $0xfc0] sm:$0xff] %vm5261, %v3198
        %5767 = vst.msk [vmem:[%s139 + $0xfc8] sm:$0xff] %vm5261, %v3200
        %5768 = vst.msk [vmem:[%s139 + $0xfd0] sm:$0xff] %vm5261, %v3202
        %5769 = vst.msk [vmem:[%s139 + $0xfd8] sm:$0xff] %vm5261, %v3204
        %5770 = vst.msk [vmem:[%s139 + $0xfe0] sm:$0xff] %vm5261, %v3206
        %5771 = vst.msk [vmem:[%s139 + $0xfe8] sm:$0xff] %vm5261, %v3208
        %5772 = vst.msk [vmem:[%s139 + $0xff0] sm:$0xff] %vm5261, %v3210
        %5773 = vst.msk [vmem:[%s139 + $0xff8] sm:$0xff] %vm5261, %v3212
        %5774 = vst.msk [vmem:[%s139 + $0x1000] sm:$0xff] %vm5261, %v3214
        %5775 = vst.msk [vmem:[%s139 + $0x1008] sm:$0xff] %vm5261, %v3216
        %5776 = vst.msk [vmem:[%s139 + $0x1010] sm:$0xff] %vm5261, %v3218
        %5777 = vst.msk [vmem:[%s139 + $0x1018] sm:$0xff] %vm5261, %v3220
        %5778 = vst.msk [vmem:[%s139 + $0x1020] sm:$0xff] %vm5261, %v3222
        %5779 = vst.msk [vmem:[%s139 + $0x1028] sm:$0xff] %vm5261, %v3224
        %5780 = vst.msk [vmem:[%s139 + $0x1030] sm:$0xff] %vm5261, %v3226
        %5781 = vst.msk [vmem:[%s139 + $0x1038] sm:$0xff] %vm5261, %v3228
        %5782 = vst.msk [vmem:[%s139 + $0x1040] sm:$0xff] %vm5261, %v3230
        %5783 = vst.msk [vmem:[%s139 + $0x1048] sm:$0xff] %vm5261, %v3232
        %5784 = vst.msk [vmem:[%s139 + $0x1050] sm:$0xff] %vm5261, %v3234
        %5785 = vst.msk [vmem:[%s139 + $0x1058] sm:$0xff] %vm5261, %v3236
        %5786 = vst.msk [vmem:[%s139 + $0x1060] sm:$0xff] %vm5261, %v3238
        %5787 = vst.msk [vmem:[%s139 + $0x1068] sm:$0xff] %vm5261, %v3240
        %5788 = vst.msk [vmem:[%s139 + $0x1070] sm:$0xff] %vm5261, %v3242
        %5789 = vst.msk [vmem:[%s139 + $0x1078] sm:$0xff] %vm5261, %v3244
        %5790 = vst.msk [vmem:[%s139 + $0x1080] sm:$0xff] %vm5261, %v3246
        %5791 = vst.msk [vmem:[%s139 + $0x1088] sm:$0xff] %vm5261, %v3248
        %5792 = vst.msk [vmem:[%s139 + $0x1090] sm:$0xff] %vm5261, %v3250
        %5793 = vst.msk [vmem:[%s139 + $0x1098] sm:$0xff] %vm5261, %v3252
        %5794 = vst.msk [vmem:[%s139 + $0x10a0] sm:$0xff] %vm5261, %v3254
        %5795 = vst.msk [vmem:[%s139 + $0x10a8] sm:$0xff] %vm5261, %v3256
        %5796 = vst.msk [vmem:[%s139 + $0x10b0] sm:$0xff] %vm5261, %v3258
        %5797 = vst.msk [vmem:[%s139 + $0x10b8] sm:$0xff] %vm5261, %v3260
        %5798 = vst.msk [vmem:[%s139 + $0x10c0] sm:$0xff] %vm5261, %v3262
        %5799 = vst.msk [vmem:[%s139 + $0x10c8] sm:$0xff] %vm5261, %v3264
        %5800 = vst.msk [vmem:[%s139 + $0x10d0] sm:$0xff] %vm5261, %v3266
        %5801 = vst.msk [vmem:[%s139 + $0x10d8] sm:$0xff] %vm5261, %v3268
        %5802 = vst.msk [vmem:[%s139 + $0x10e0] sm:$0xff] %vm5261, %v3270
        %5803 = vst.msk [vmem:[%s139 + $0x10e8] sm:$0xff] %vm5261, %v3272
        %5804 = vst.msk [vmem:[%s139 + $0x10f0] sm:$0xff] %vm5261, %v3274
        %5805 = vst.msk [vmem:[%s139 + $0x10f8] sm:$0xff] %vm5261, %v3276
        %5806 = vst.msk [vmem:[%s139 + $0x1100] sm:$0xff] %vm5261, %v3278
        %5807 = vst.msk [vmem:[%s139 + $0x1108] sm:$0xff] %vm5261, %v3280
        %5808 = vst.msk [vmem:[%s139 + $0x1110] sm:$0xff] %vm5261, %v3282
        %5809 = vst.msk [vmem:[%s139 + $0x1118] sm:$0xff] %vm5261, %v3284
        %5810 = vst.msk [vmem:[%s139 + $0x1120] sm:$0xff] %vm5261, %v3286
        %5811 = vst.msk [vmem:[%s139 + $0x1128] sm:$0xff] %vm5261, %v3288
        %5812 = vst.msk [vmem:[%s139 + $0x1130] sm:$0xff] %vm5261, %v3290
        %5813 = vst.msk [vmem:[%s139 + $0x1138] sm:$0xff] %vm5261, %v3292
        %5814 = vst.msk [vmem:[%s139 + $0x1140] sm:$0xff] %vm5261, %v3294
        %5815 = vst.msk [vmem:[%s139 + $0x1148] sm:$0xff] %vm5261, %v3296
        %5816 = vst.msk [vmem:[%s139 + $0x1150] sm:$0xff] %vm5261, %v3298
        %5817 = vst.msk [vmem:[%s139 + $0x1158] sm:$0xff] %vm5261, %v3300
        %5818 = vst.msk [vmem:[%s139 + $0x1160] sm:$0xff] %vm5261, %v3302
        %5819 = vst.msk [vmem:[%s139 + $0x1168] sm:$0xff] %vm5261, %v3304
        %5820 = vst.msk [vmem:[%s139 + $0x1170] sm:$0xff] %vm5261, %v3306
        %5821 = vst.msk [vmem:[%s139 + $0x1178] sm:$0xff] %vm5261, %v3308
        %5822 = vst.msk [vmem:[%s139 + $0x1180] sm:$0xff] %vm5261, %v3310
        %5823 = vst.msk [vmem:[%s139 + $0x1188] sm:$0xff] %vm5261, %v3312
        %5824 = vst.msk [vmem:[%s139 + $0x1190] sm:$0xff] %vm5261, %v3314
        %5825 = vst.msk [vmem:[%s139 + $0x1198] sm:$0xff] %vm5261, %v3316
        %5826 = vst.msk [vmem:[%s139 + $0x11a0] sm:$0xff] %vm5261, %v3318
        %5827 = vst.msk [vmem:[%s139 + $0x11a8] sm:$0xff] %vm5261, %v3320
        %5828 = vst.msk [vmem:[%s139 + $0x11b0] sm:$0xff] %vm5261, %v3322
        %5829 = vst.msk [vmem:[%s139 + $0x11b8] sm:$0xff] %vm5261, %v3324
        %5830 = vst.msk [vmem:[%s139 + $0x11c0] sm:$0xff] %vm5261, %v3326
        %5831 = vst.msk [vmem:[%s139 + $0x11c8] sm:$0xff] %vm5261, %v3328
        %5832 = vst.msk [vmem:[%s139 + $0x11d0] sm:$0xff] %vm5261, %v3330
        %5833 = vst.msk [vmem:[%s139 + $0x11d8] sm:$0xff] %vm5261, %v3332
        %5834 = vst.msk [vmem:[%s139 + $0x11e0] sm:$0xff] %vm5261, %v3334
        %5835 = vst.msk [vmem:[%s139 + $0x11e8] sm:$0xff] %vm5261, %v3336
        %5836 = vst.msk [vmem:[%s139 + $0x11f0] sm:$0xff] %vm5261, %v3338
        %5837 = vst.msk [vmem:[%s139 + $0x11f8] sm:$0xff] %vm5261, %v3340
        %5838 = vst.msk [vmem:[%s139 + $0x1200] sm:$0xff] %vm5261, %v3342
        %5839 = vst.msk [vmem:[%s139 + $0x1208] sm:$0xff] %vm5261, %v3344
        %5840 = vst.msk [vmem:[%s139 + $0x1210] sm:$0xff] %vm5261, %v3346
        %5841 = vst.msk [vmem:[%s139 + $0x1218] sm:$0xff] %vm5261, %v3348
        %5842 = vst.msk [vmem:[%s139 + $0x1220] sm:$0xff] %vm5261, %v3350
        %5843 = vst.msk [vmem:[%s139 + $0x1228] sm:$0xff] %vm5261, %v3352
        %5844 = vst.msk [vmem:[%s139 + $0x1230] sm:$0xff] %vm5261, %v3354
        %5845 = vst.msk [vmem:[%s139 + $0x1238] sm:$0xff] %vm5261, %v3356
        %5846 = vst.msk [vmem:[%s139 + $0x1240] sm:$0xff] %vm5261, %v3358
        %5847 = vst.msk [vmem:[%s139 + $0x1248] sm:$0xff] %vm5261, %v3360
        %5848 = vst.msk [vmem:[%s139 + $0x1250] sm:$0xff] %vm5261, %v3362
        %5849 = vst.msk [vmem:[%s139 + $0x1258] sm:$0xff] %vm5261, %v3364
        %5850 = vst.msk [vmem:[%s139 + $0x1260] sm:$0xff] %vm5261, %v3366
        %5851 = vst.msk [vmem:[%s139 + $0x1268] sm:$0xff] %vm5261, %v3368
        %5852 = vst.msk [vmem:[%s139 + $0x1270] sm:$0xff] %vm5261, %v3370
        %5853 = vst.msk [vmem:[%s139 + $0x1278] sm:$0xff] %vm5261, %v3372
        %5854 = vst.msk [vmem:[%s139 + $0x1280] sm:$0xff] %vm5261, %v3374
        %5855 = vst.msk [vmem:[%s139 + $0x1288] sm:$0xff] %vm5261, %v3376
        %5856 = vst.msk [vmem:[%s139 + $0x1290] sm:$0xff] %vm5261, %v3378
        %5857 = vst.msk [vmem:[%s139 + $0x1298] sm:$0xff] %vm5261, %v3380
        %5858 = vst.msk [vmem:[%s139 + $0x12a0] sm:$0xff] %vm5261, %v3382
        %5859 = vst.msk [vmem:[%s139 + $0x12a8] sm:$0xff] %vm5261, %v3384
        %5860 = vst.msk [vmem:[%s139 + $0x12b0] sm:$0xff] %vm5261, %v3386
        %5861 = vst.msk [vmem:[%s139 + $0x12b8] sm:$0xff] %vm5261, %v3388
        %5862 = vst.msk [vmem:[%s139 + $0x12c0] sm:$0xff] %vm5261, %v3390
        %5863 = vst.msk [vmem:[%s139 + $0x12c8] sm:$0xff] %vm5261, %v3392
        %5864 = vst.msk [vmem:[%s139 + $0x12d0] sm:$0xff] %vm5261, %v3394
        %5865 = vst.msk [vmem:[%s139 + $0x12d8] sm:$0xff] %vm5261, %v3396
        %5866 = vst.msk [vmem:[%s139 + $0x12e0] sm:$0xff] %vm5261, %v3398
        %5867 = vst.msk [vmem:[%s139 + $0x12e8] sm:$0xff] %vm5261, %v3400
        %5868 = vst.msk [vmem:[%s139 + $0x12f0] sm:$0xff] %vm5261, %v3402
        %5869 = vst.msk [vmem:[%s139 + $0x12f8] sm:$0xff] %vm5261, %v3404
        %5870 = vst.msk [vmem:[%s139 + $0x1300] sm:$0xff] %vm5261, %v3406
        %5871 = vst.msk [vmem:[%s139 + $0x1308] sm:$0xff] %vm5261, %v3408
        %5872 = vst.msk [vmem:[%s139 + $0x1310] sm:$0xff] %vm5261, %v3410
        %5873 = vst.msk [vmem:[%s139 + $0x1318] sm:$0xff] %vm5261, %v3412
        %5874 = vst.msk [vmem:[%s139 + $0x1320] sm:$0xff] %vm5261, %v3414
        %5875 = vst.msk [vmem:[%s139 + $0x1328] sm:$0xff] %vm5261, %v3416
        %5876 = vst.msk [vmem:[%s139 + $0x1330] sm:$0xff] %vm5261, %v3418
        %5877 = vst.msk [vmem:[%s139 + $0x1338] sm:$0xff] %vm5261, %v3420
        %5878 = vst.msk [vmem:[%s139 + $0x1340] sm:$0xff] %vm5261, %v3422
        %5879 = vst.msk [vmem:[%s139 + $0x1348] sm:$0xff] %vm5261, %v3424
        %5880 = vst.msk [vmem:[%s139 + $0x1350] sm:$0xff] %vm5261, %v3426
        %5881 = vst.msk [vmem:[%s139 + $0x1358] sm:$0xff] %vm5261, %v3428
        %5882 = vst.msk [vmem:[%s139 + $0x1360] sm:$0xff] %vm5261, %v3430
        %5883 = vst.msk [vmem:[%s139 + $0x1368] sm:$0xff] %vm5261, %v3432
        %5884 = vst.msk [vmem:[%s139 + $0x1370] sm:$0xff] %vm5261, %v3434
        %5885 = vst.msk [vmem:[%s139 + $0x1378] sm:$0xff] %vm5261, %v3436
        %5886 = vst.msk [vmem:[%s139 + $0x1380] sm:$0xff] %vm5261, %v3438
        %5887 = vst.msk [vmem:[%s139 + $0x1388] sm:$0xff] %vm5261, %v3440
        %5888 = vst.msk [vmem:[%s139 + $0x1390] sm:$0xff] %vm5261, %v3442
        %5889 = vst.msk [vmem:[%s139 + $0x1398] sm:$0xff] %vm5261, %v3444
        %5890 = vst.msk [vmem:[%s139 + $0x13a0] sm:$0xff] %vm5261, %v3446
        %5891 = vst.msk [vmem:[%s139 + $0x13a8] sm:$0xff] %vm5261, %v3448
        %5892 = vst.msk [vmem:[%s139 + $0x13b0] sm:$0xff] %vm5261, %v3450
        %5893 = vst.msk [vmem:[%s139 + $0x13b8] sm:$0xff] %vm5261, %v3452
        %5894 = vst.msk [vmem:[%s139 + $0x13c0] sm:$0xff] %vm5261, %v3454
        %5895 = vst.msk [vmem:[%s139 + $0x13c8] sm:$0xff] %vm5261, %v3456
        %5896 = vst.msk [vmem:[%s139 + $0x13d0] sm:$0xff] %vm5261, %v3458
        %5897 = vst.msk [vmem:[%s139 + $0x13d8] sm:$0xff] %vm5261, %v3460
        %5898 = vst.msk [vmem:[%s139 + $0x13e0] sm:$0xff] %vm5261, %v3462
        %5899 = vst.msk [vmem:[%s139 + $0x13e8] sm:$0xff] %vm5261, %v3464
        %5900 = vst.msk [vmem:[%s139 + $0x13f0] sm:$0xff] %vm5261, %v3466
        %5901 = vst.msk [vmem:[%s139 + $0x13f8] sm:$0xff] %vm5261, %v3468
        %5902 = vst.msk [vmem:[%s139 + $0x1400] sm:$0xff] %vm5261, %v3470
        %5903 = vst.msk [vmem:[%s139 + $0x1408] sm:$0xff] %vm5261, %v3472
        %5904 = vst.msk [vmem:[%s139 + $0x1410] sm:$0xff] %vm5261, %v3474
        %5905 = vst.msk [vmem:[%s139 + $0x1418] sm:$0xff] %vm5261, %v3476
        %5906 = vst.msk [vmem:[%s139 + $0x1420] sm:$0xff] %vm5261, %v3478
        %5907 = vst.msk [vmem:[%s139 + $0x1428] sm:$0xff] %vm5261, %v3480
        %5908 = vst.msk [vmem:[%s139 + $0x1430] sm:$0xff] %vm5261, %v3482
        %5909 = vst.msk [vmem:[%s139 + $0x1438] sm:$0xff] %vm5261, %v3484
        %5910 = vst.msk [vmem:[%s139 + $0x1440] sm:$0xff] %vm5261, %v3486
        %5911 = vst.msk [vmem:[%s139 + $0x1448] sm:$0xff] %vm5261, %v3488
        %5912 = vst.msk [vmem:[%s139 + $0x1450] sm:$0xff] %vm5261, %v3490
        %5913 = vst.msk [vmem:[%s139 + $0x1458] sm:$0xff] %vm5261, %v3492
        %5914 = vst.msk [vmem:[%s139 + $0x1460] sm:$0xff] %vm5261, %v3494
        %5915 = vst.msk [vmem:[%s139 + $0x1468] sm:$0xff] %vm5261, %v3496
        %5916 = vst.msk [vmem:[%s139 + $0x1470] sm:$0xff] %vm5261, %v3498
        %5917 = vst.msk [vmem:[%s139 + $0x1478] sm:$0xff] %vm5261, %v3500
        %5918 = vst.msk [vmem:[%s139 + $0x1480] sm:$0xff] %vm5261, %v3502
        %5919 = vst.msk [vmem:[%s139 + $0x1488] sm:$0xff] %vm5261, %v3504
        %5920 = vst.msk [vmem:[%s139 + $0x1490] sm:$0xff] %vm5261, %v3506
        %5921 = vst.msk [vmem:[%s139 + $0x1498] sm:$0xff] %vm5261, %v3508
        %5922 = vst.msk [vmem:[%s139 + $0x14a0] sm:$0xff] %vm5261, %v3510
        %5923 = vst.msk [vmem:[%s139 + $0x14a8] sm:$0xff] %vm5261, %v3512
        %5924 = vst.msk [vmem:[%s139 + $0x14b0] sm:$0xff] %vm5261, %v3514
        %5925 = vst.msk [vmem:[%s139 + $0x14b8] sm:$0xff] %vm5261, %v3516
        %5926 = vst.msk [vmem:[%s139 + $0x14c0] sm:$0xff] %vm5261, %v3518
        %5927 = vst.msk [vmem:[%s139 + $0x14c8] sm:$0xff] %vm5261, %v3520
        %5928 = vst.msk [vmem:[%s139 + $0x14d0] sm:$0xff] %vm5261, %v3522
        %5929 = vst.msk [vmem:[%s139 + $0x14d8] sm:$0xff] %vm5261, %v3524
        %5930 = vst.msk [vmem:[%s139 + $0x14e0] sm:$0xff] %vm5261, %v3526
        %5931 = vst.msk [vmem:[%s139 + $0x14e8] sm:$0xff] %vm5261, %v3528
        %5932 = vst.msk [vmem:[%s139 + $0x14f0] sm:$0xff] %vm5261, %v3530
        %5933 = vst.msk [vmem:[%s139 + $0x14f8] sm:$0xff] %vm5261, %v3532
        %5934 = vst.msk [vmem:[%s139 + $0x1500] sm:$0xff] %vm5261, %v3534
        %5935 = vst.msk [vmem:[%s139 + $0x1508] sm:$0xff] %vm5261, %v3536
        %5936 = vst.msk [vmem:[%s139 + $0x1510] sm:$0xff] %vm5261, %v3538
        %5937 = vst.msk [vmem:[%s139 + $0x1518] sm:$0xff] %vm5261, %v3540
        %5938 = vst.msk [vmem:[%s139 + $0x1520] sm:$0xff] %vm5261, %v3542
        %5939 = vst.msk [vmem:[%s139 + $0x1528] sm:$0xff] %vm5261, %v3544
        %5940 = vst.msk [vmem:[%s139 + $0x1530] sm:$0xff] %vm5261, %v3546
        %5941 = vst.msk [vmem:[%s139 + $0x1538] sm:$0xff] %vm5261, %v3548
        %5942 = vst.msk [vmem:[%s139 + $0x1540] sm:$0xff] %vm5261, %v3550
        %5943 = vst.msk [vmem:[%s139 + $0x1548] sm:$0xff] %vm5261, %v3552
        %5944 = vst.msk [vmem:[%s139 + $0x1550] sm:$0xff] %vm5261, %v3554
        %5945 = vst.msk [vmem:[%s139 + $0x1558] sm:$0xff] %vm5261, %v3556
        %5946 = vst.msk [vmem:[%s139 + $0x1560] sm:$0xff] %vm5261, %v3558
        %5947 = vst.msk [vmem:[%s139 + $0x1568] sm:$0xff] %vm5261, %v3560
        %5948 = vst.msk [vmem:[%s139 + $0x1570] sm:$0xff] %vm5261, %v3562
        %5949 = vst.msk [vmem:[%s139 + $0x1578] sm:$0xff] %vm5261, %v3564
        %5950 = vst.msk [vmem:[%s139 + $0x1580] sm:$0xff] %vm5261, %v3566
        %5951 = vst.msk [vmem:[%s139 + $0x1588] sm:$0xff] %vm5261, %v3568
        %5952 = vst.msk [vmem:[%s139 + $0x1590] sm:$0xff] %vm5261, %v3570
        %5953 = vst.msk [vmem:[%s139 + $0x1598] sm:$0xff] %vm5261, %v3572
        %5954 = vst.msk [vmem:[%s139 + $0x15a0] sm:$0xff] %vm5261, %v3574
        %5955 = vst.msk [vmem:[%s139 + $0x15a8] sm:$0xff] %vm5261, %v3576
        %5956 = vst.msk [vmem:[%s139 + $0x15b0] sm:$0xff] %vm5261, %v3578
        %5957 = vst.msk [vmem:[%s139 + $0x15b8] sm:$0xff] %vm5261, %v3580
        %5958 = vst.msk [vmem:[%s139 + $0x15c0] sm:$0xff] %vm5261, %v3582
        %5959 = vst.msk [vmem:[%s139 + $0x15c8] sm:$0xff] %vm5261, %v3584
        %5960 = vst.msk [vmem:[%s139 + $0x15d0] sm:$0xff] %vm5261, %v3586
        %5961 = vst.msk [vmem:[%s139 + $0x15d8] sm:$0xff] %vm5261, %v3588
        %5962 = vst.msk [vmem:[%s139 + $0x15e0] sm:$0xff] %vm5261, %v3590
        %5963 = vst.msk [vmem:[%s139 + $0x15e8] sm:$0xff] %vm5261, %v3592
        %5964 = vst.msk [vmem:[%s139 + $0x15f0] sm:$0xff] %vm5261, %v3594
        %5965 = vst.msk [vmem:[%s139 + $0x15f8] sm:$0xff] %vm5261, %v3596
        %5966 = vst.msk [vmem:[%s139 + $0x1600] sm:$0xff] %vm5261, %v3598
        %5967 = vst.msk [vmem:[%s139 + $0x1608] sm:$0xff] %vm5261, %v3600
        %5968 = vst.msk [vmem:[%s139 + $0x1610] sm:$0xff] %vm5261, %v3602
        %5969 = vst.msk [vmem:[%s139 + $0x1618] sm:$0xff] %vm5261, %v3604
        %5970 = vst.msk [vmem:[%s139 + $0x1620] sm:$0xff] %vm5261, %v3606
        %5971 = vst.msk [vmem:[%s139 + $0x1628] sm:$0xff] %vm5261, %v3608
        %5972 = vst.msk [vmem:[%s139 + $0x1630] sm:$0xff] %vm5261, %v3610
        %5973 = vst.msk [vmem:[%s139 + $0x1638] sm:$0xff] %vm5261, %v3612
        %5974 = vst.msk [vmem:[%s139 + $0x1640] sm:$0xff] %vm5261, %v3614
        %5975 = vst.msk [vmem:[%s139 + $0x1648] sm:$0xff] %vm5261, %v3616
        %5976 = vst.msk [vmem:[%s139 + $0x1650] sm:$0xff] %vm5261, %v3618
        %5977 = vst.msk [vmem:[%s139 + $0x1658] sm:$0xff] %vm5261, %v3620
        %5978 = vst.msk [vmem:[%s139 + $0x1660] sm:$0xff] %vm5261, %v3622
        %5979 = vst.msk [vmem:[%s139 + $0x1668] sm:$0xff] %vm5261, %v3624
        %5980 = vst.msk [vmem:[%s139 + $0x1670] sm:$0xff] %vm5261, %v3626
        %5981 = vst.msk [vmem:[%s139 + $0x1678] sm:$0xff] %vm5261, %v3628
        %5982 = vst.msk [vmem:[%s139 + $0x1680] sm:$0xff] %vm5261, %v3630
        %5983 = vst.msk [vmem:[%s139 + $0x1688] sm:$0xff] %vm5261, %v3632
        %5984 = vst.msk [vmem:[%s139 + $0x1690] sm:$0xff] %vm5261, %v3634
        %5985 = vst.msk [vmem:[%s139 + $0x1698] sm:$0xff] %vm5261, %v3636
        %5986 = vst.msk [vmem:[%s139 + $0x16a0] sm:$0xff] %vm5261, %v3638
        %5987 = vst.msk [vmem:[%s139 + $0x16a8] sm:$0xff] %vm5261, %v3640
        %5988 = vst.msk [vmem:[%s139 + $0x16b0] sm:$0xff] %vm5261, %v3642
        %5989 = vst.msk [vmem:[%s139 + $0x16b8] sm:$0xff] %vm5261, %v3644
        %5990 = vst.msk [vmem:[%s139 + $0x16c0] sm:$0xff] %vm5261, %v3646
        %5991 = vst.msk [vmem:[%s139 + $0x16c8] sm:$0xff] %vm5261, %v3648
        %5992 = vst.msk [vmem:[%s139 + $0x16d0] sm:$0xff] %vm5261, %v3650
        %5993 = vst.msk [vmem:[%s139 + $0x16d8] sm:$0xff] %vm5261, %v3652
        %5994 = vst.msk [vmem:[%s139 + $0x16e0] sm:$0xff] %vm5261, %v3654
        %5995 = vst.msk [vmem:[%s139 + $0x16e8] sm:$0xff] %vm5261, %v3656
        %5996 = vst.msk [vmem:[%s139 + $0x16f0] sm:$0xff] %vm5261, %v3658
        %5997 = vst.msk [vmem:[%s139 + $0x16f8] sm:$0xff] %vm5261, %v3660
        %5998 = vst.msk [vmem:[%s139 + $0x1700] sm:$0xff] %vm5261, %v3662
        %5999 = vst.msk [vmem:[%s139 + $0x1708] sm:$0xff] %vm5261, %v3664
        %6000 = vst.msk [vmem:[%s139 + $0x1710] sm:$0xff] %vm5261, %v3666
        %6001 = vst.msk [vmem:[%s139 + $0x1718] sm:$0xff] %vm5261, %v3668
        %6002 = vst.msk [vmem:[%s139 + $0x1720] sm:$0xff] %vm5261, %v3670
        %6003 = vst.msk [vmem:[%s139 + $0x1728] sm:$0xff] %vm5261, %v3672
        %6004 = vst.msk [vmem:[%s139 + $0x1730] sm:$0xff] %vm5261, %v3674
        %6005 = vst.msk [vmem:[%s139 + $0x1738] sm:$0xff] %vm5261, %v3676
        %6006 = vst.msk [vmem:[%s139 + $0x1740] sm:$0xff] %vm5261, %v3678
        %6007 = vst.msk [vmem:[%s139 + $0x1748] sm:$0xff] %vm5261, %v3680
        %6008 = vst.msk [vmem:[%s139 + $0x1750] sm:$0xff] %vm5261, %v3682
        %6009 = vst.msk [vmem:[%s139 + $0x1758] sm:$0xff] %vm5261, %v3684
        %6010 = vst.msk [vmem:[%s139 + $0x1760] sm:$0xff] %vm5261, %v3686
        %6011 = vst.msk [vmem:[%s139 + $0x1768] sm:$0xff] %vm5261, %v3688
        %6012 = vst.msk [vmem:[%s139 + $0x1770] sm:$0xff] %vm5261, %v3690
        %6013 = vst.msk [vmem:[%s139 + $0x1778] sm:$0xff] %vm5261, %v3692
        %6014 = vst.msk [vmem:[%s139 + $0x1780] sm:$0xff] %vm5261, %v3694
        %6015 = vst.msk [vmem:[%s139 + $0x1788] sm:$0xff] %vm5261, %v3696
        %6016 = vst.msk [vmem:[%s139 + $0x1790] sm:$0xff] %vm5261, %v3698
        %6017 = vst.msk [vmem:[%s139 + $0x1798] sm:$0xff] %vm5261, %v3700
        %6018 = vst.msk [vmem:[%s139 + $0x17a0] sm:$0xff] %vm5261, %v3702
        %6019 = vst.msk [vmem:[%s139 + $0x17a8] sm:$0xff] %vm5261, %v3704
        %6020 = vst.msk [vmem:[%s139 + $0x17b0] sm:$0xff] %vm5261, %v3706
        %6021 = vst.msk [vmem:[%s139 + $0x17b8] sm:$0xff] %vm5261, %v3708
        %6022 = vst.msk [vmem:[%s139 + $0x17c0] sm:$0xff] %vm5261, %v3710
        %6023 = vst.msk [vmem:[%s139 + $0x17c8] sm:$0xff] %vm5261, %v3712
        %6024 = vst.msk [vmem:[%s139 + $0x17d0] sm:$0xff] %vm5261, %v3714
        %6025 = vst.msk [vmem:[%s139 + $0x17d8] sm:$0xff] %vm5261, %v3716
        %6026 = vst.msk [vmem:[%s139 + $0x17e0] sm:$0xff] %vm5261, %v3718
        %6027 = vst.msk [vmem:[%s139 + $0x17e8] sm:$0xff] %vm5261, %v3720
        %6028 = vst.msk [vmem:[%s139 + $0x17f0] sm:$0xff] %vm5261, %v3722
        %6029 = vst.msk [vmem:[%s139 + $0x17f8] sm:$0xff] %vm5261, %v3724
        %6030 = vst.msk [vmem:[%s139 + $0x1800] sm:$0xff] %vm5261, %v3726
        %6031 = vst.msk [vmem:[%s139 + $0x1808] sm:$0xff] %vm5261, %v3728
        %6032 = vst.msk [vmem:[%s139 + $0x1810] sm:$0xff] %vm5261, %v3730
        %6033 = vst.msk [vmem:[%s139 + $0x1818] sm:$0xff] %vm5261, %v3732
        %6034 = vst.msk [vmem:[%s139 + $0x1820] sm:$0xff] %vm5261, %v3734
        %6035 = vst.msk [vmem:[%s139 + $0x1828] sm:$0xff] %vm5261, %v3736
        %6036 = vst.msk [vmem:[%s139 + $0x1830] sm:$0xff] %vm5261, %v3738
        %6037 = vst.msk [vmem:[%s139 + $0x1838] sm:$0xff] %vm5261, %v3740
        %6038 = vst.msk [vmem:[%s139 + $0x1840] sm:$0xff] %vm5261, %v3742
        %6039 = vst.msk [vmem:[%s139 + $0x1848] sm:$0xff] %vm5261, %v3744
        %6040 = vst.msk [vmem:[%s139 + $0x1850] sm:$0xff] %vm5261, %v3746
        %6041 = vst.msk [vmem:[%s139 + $0x1858] sm:$0xff] %vm5261, %v3748
        %6042 = vst.msk [vmem:[%s139 + $0x1860] sm:$0xff] %vm5261, %v3750
        %6043 = vst.msk [vmem:[%s139 + $0x1868] sm:$0xff] %vm5261, %v3752
        %6044 = vst.msk [vmem:[%s139 + $0x1870] sm:$0xff] %vm5261, %v3754
        %6045 = vst.msk [vmem:[%s139 + $0x1878] sm:$0xff] %vm5261, %v3756
        %6046 = vst.msk [vmem:[%s139 + $0x1880] sm:$0xff] %vm5261, %v3758
        %6047 = vst.msk [vmem:[%s139 + $0x1888] sm:$0xff] %vm5261, %v3760
        %6048 = vst.msk [vmem:[%s139 + $0x1890] sm:$0xff] %vm5261, %v3762
        %6049 = vst.msk [vmem:[%s139 + $0x1898] sm:$0xff] %vm5261, %v3764
        %6050 = vst.msk [vmem:[%s139 + $0x18a0] sm:$0xff] %vm5261, %v3766
        %6051 = vst.msk [vmem:[%s139 + $0x18a8] sm:$0xff] %vm5261, %v3768
        %6052 = vst.msk [vmem:[%s139 + $0x18b0] sm:$0xff] %vm5261, %v3770
        %6053 = vst.msk [vmem:[%s139 + $0x18b8] sm:$0xff] %vm5261, %v3772
        %6054 = vst.msk [vmem:[%s139 + $0x18c0] sm:$0xff] %vm5261, %v3774
        %6055 = vst.msk [vmem:[%s139 + $0x18c8] sm:$0xff] %vm5261, %v3776
        %6056 = vst.msk [vmem:[%s139 + $0x18d0] sm:$0xff] %vm5261, %v3778
        %6057 = vst.msk [vmem:[%s139 + $0x18d8] sm:$0xff] %vm5261, %v3780
        %6058 = vst.msk [vmem:[%s139 + $0x18e0] sm:$0xff] %vm5261, %v3782
        %6059 = vst.msk [vmem:[%s139 + $0x18e8] sm:$0xff] %vm5261, %v3784
        %6060 = vst.msk [vmem:[%s139 + $0x18f0] sm:$0xff] %vm5261, %v3786
        %6061 = vst.msk [vmem:[%s139 + $0x18f8] sm:$0xff] %vm5261, %v3788
        %6062 = vst.msk [vmem:[%s139 + $0x1900] sm:$0xff] %vm5261, %v3790
        %6063 = vst.msk [vmem:[%s139 + $0x1908] sm:$0xff] %vm5261, %v3792
        %6064 = vst.msk [vmem:[%s139 + $0x1910] sm:$0xff] %vm5261, %v3794
        %6065 = vst.msk [vmem:[%s139 + $0x1918] sm:$0xff] %vm5261, %v3796
        %6066 = vst.msk [vmem:[%s139 + $0x1920] sm:$0xff] %vm5261, %v3798
        %6067 = vst.msk [vmem:[%s139 + $0x1928] sm:$0xff] %vm5261, %v3800
        %6068 = vst.msk [vmem:[%s139 + $0x1930] sm:$0xff] %vm5261, %v3802
        %6069 = vst.msk [vmem:[%s139 + $0x1938] sm:$0xff] %vm5261, %v3804
        %6070 = vst.msk [vmem:[%s139 + $0x1940] sm:$0xff] %vm5261, %v3806
        %6071 = vst.msk [vmem:[%s139 + $0x1948] sm:$0xff] %vm5261, %v3808
        %6072 = vst.msk [vmem:[%s139 + $0x1950] sm:$0xff] %vm5261, %v3810
        %6073 = vst.msk [vmem:[%s139 + $0x1958] sm:$0xff] %vm5261, %v3812
        %6074 = vst.msk [vmem:[%s139 + $0x1960] sm:$0xff] %vm5261, %v3814
        %6075 = vst.msk [vmem:[%s139 + $0x1968] sm:$0xff] %vm5261, %v3816
        %6076 = vst.msk [vmem:[%s139 + $0x1970] sm:$0xff] %vm5261, %v3818
        %6077 = vst.msk [vmem:[%s139 + $0x1978] sm:$0xff] %vm5261, %v3820
        %6078 = vst.msk [vmem:[%s139 + $0x1980] sm:$0xff] %vm5261, %v3822
        %6079 = vst.msk [vmem:[%s139 + $0x1988] sm:$0xff] %vm5261, %v3824
        %6080 = vst.msk [vmem:[%s139 + $0x1990] sm:$0xff] %vm5261, %v3826
        %6081 = vst.msk [vmem:[%s139 + $0x1998] sm:$0xff] %vm5261, %v3828
        %6082 = vst.msk [vmem:[%s139 + $0x19a0] sm:$0xff] %vm5261, %v3830
        %6083 = vst.msk [vmem:[%s139 + $0x19a8] sm:$0xff] %vm5261, %v3832
        %6084 = vst.msk [vmem:[%s139 + $0x19b0] sm:$0xff] %vm5261, %v3834
        %6085 = vst.msk [vmem:[%s139 + $0x19b8] sm:$0xff] %vm5261, %v3836
        %6086 = vst.msk [vmem:[%s139 + $0x19c0] sm:$0xff] %vm5261, %v3838
        %6087 = vst.msk [vmem:[%s139 + $0x19c8] sm:$0xff] %vm5261, %v3840
        %6088 = vst.msk [vmem:[%s139 + $0x19d0] sm:$0xff] %vm5261, %v3842
        %6089 = vst.msk [vmem:[%s139 + $0x19d8] sm:$0xff] %vm5261, %v3844
        %6090 = vst.msk [vmem:[%s139 + $0x19e0] sm:$0xff] %vm5261, %v3846
        %6091 = vst.msk [vmem:[%s139 + $0x19e8] sm:$0xff] %vm5261, %v3848
        %6092 = vst.msk [vmem:[%s139 + $0x19f0] sm:$0xff] %vm5261, %v3850
        %6093 = vst.msk [vmem:[%s139 + $0x19f8] sm:$0xff] %vm5261, %v3852
        %6094 = vst.msk [vmem:[%s139 + $0x1a00] sm:$0xff] %vm5261, %v3854
        %6095 = vst.msk [vmem:[%s139 + $0x1a08] sm:$0xff] %vm5261, %v3856
        %6096 = vst.msk [vmem:[%s139 + $0x1a10] sm:$0xff] %vm5261, %v3858
        %6097 = vst.msk [vmem:[%s139 + $0x1a18] sm:$0xff] %vm5261, %v3860
        %6098 = vst.msk [vmem:[%s139 + $0x1a20] sm:$0xff] %vm5261, %v3862
        %6099 = vst.msk [vmem:[%s139 + $0x1a28] sm:$0xff] %vm5261, %v3864
        %6100 = vst.msk [vmem:[%s139 + $0x1a30] sm:$0xff] %vm5261, %v3866
        %6101 = vst.msk [vmem:[%s139 + $0x1a38] sm:$0xff] %vm5261, %v3868
        %6102 = vst.msk [vmem:[%s139 + $0x1a40] sm:$0xff] %vm5261, %v3870
        %6103 = vst.msk [vmem:[%s139 + $0x1a48] sm:$0xff] %vm5261, %v3872
        %6104 = vst.msk [vmem:[%s139 + $0x1a50] sm:$0xff] %vm5261, %v3874
        %6105 = vst.msk [vmem:[%s139 + $0x1a58] sm:$0xff] %vm5261, %v3876
        %6106 = vst.msk [vmem:[%s139 + $0x1a60] sm:$0xff] %vm5261, %v3878
        %6107 = vst.msk [vmem:[%s139 + $0x1a68] sm:$0xff] %vm5261, %v3880
        %6108 = vst.msk [vmem:[%s139 + $0x1a70] sm:$0xff] %vm5261, %v3882
        %6109 = vst.msk [vmem:[%s139 + $0x1a78] sm:$0xff] %vm5261, %v3884
        %6110 = vst.msk [vmem:[%s139 + $0x1a80] sm:$0xff] %vm5261, %v3886
        %6111 = vst.msk [vmem:[%s139 + $0x1a88] sm:$0xff] %vm5261, %v3888
        %6112 = vst.msk [vmem:[%s139 + $0x1a90] sm:$0xff] %vm5261, %v3890
        %6113 = vst.msk [vmem:[%s139 + $0x1a98] sm:$0xff] %vm5261, %v3892
        %6114 = vst.msk [vmem:[%s139 + $0x1aa0] sm:$0xff] %vm5261, %v3894
        %6115 = vst.msk [vmem:[%s139 + $0x1aa8] sm:$0xff] %vm5261, %v3896
        %6116 = vst.msk [vmem:[%s139 + $0x1ab0] sm:$0xff] %vm5261, %v3898
        %6117 = vst.msk [vmem:[%s139 + $0x1ab8] sm:$0xff] %vm5261, %v3900
        %6118 = vst.msk [vmem:[%s139 + $0x1ac0] sm:$0xff] %vm5261, %v3902
        %6119 = vst.msk [vmem:[%s139 + $0x1ac8] sm:$0xff] %vm5261, %v3904
        %6120 = vst.msk [vmem:[%s139 + $0x1ad0] sm:$0xff] %vm5261, %v3906
        %6121 = vst.msk [vmem:[%s139 + $0x1ad8] sm:$0xff] %vm5261, %v3908
        %6122 = vst.msk [vmem:[%s139 + $0x1ae0] sm:$0xff] %vm5261, %v3910
        %6123 = vst.msk [vmem:[%s139 + $0x1ae8] sm:$0xff] %vm5261, %v3912
        %6124 = vst.msk [vmem:[%s139 + $0x1af0] sm:$0xff] %vm5261, %v3914
        %6125 = vst.msk [vmem:[%s139 + $0x1af8] sm:$0xff] %vm5261, %v3916
        %6126 = vst.msk [vmem:[%s139 + $0x1b00] sm:$0xff] %vm5261, %v3918
        %6127 = vst.msk [vmem:[%s139 + $0x1b08] sm:$0xff] %vm5261, %v3920
        %6128 = vst.msk [vmem:[%s139 + $0x1b10] sm:$0xff] %vm5261, %v3922
        %6129 = vst.msk [vmem:[%s139 + $0x1b18] sm:$0xff] %vm5261, %v3924
        %6130 = vst.msk [vmem:[%s139 + $0x1b20] sm:$0xff] %vm5261, %v3926
        %6131 = vst.msk [vmem:[%s139 + $0x1b28] sm:$0xff] %vm5261, %v3928
        %6132 = vst.msk [vmem:[%s139 + $0x1b30] sm:$0xff] %vm5261, %v3930
        %6133 = vst.msk [vmem:[%s139 + $0x1b38] sm:$0xff] %vm5261, %v3932
        %6134 = vst.msk [vmem:[%s139 + $0x1b40] sm:$0xff] %vm5261, %v3934
        %6135 = vst.msk [vmem:[%s139 + $0x1b48] sm:$0xff] %vm5261, %v3936
        %6136 = vst.msk [vmem:[%s139 + $0x1b50] sm:$0xff] %vm5261, %v3938
        %6137 = vst.msk [vmem:[%s139 + $0x1b58] sm:$0xff] %vm5261, %v3940
        %6138 = vst.msk [vmem:[%s139 + $0x1b60] sm:$0xff] %vm5261, %v3942
        %6139 = vst.msk [vmem:[%s139 + $0x1b68] sm:$0xff] %vm5261, %v3944
        %6140 = vst.msk [vmem:[%s139 + $0x1b70] sm:$0xff] %vm5261, %v3946
        %6141 = vst.msk [vmem:[%s139 + $0x1b78] sm:$0xff] %vm5261, %v3948
        %6142 = vst.msk [vmem:[%s139 + $0x1b80] sm:$0xff] %vm5261, %v3950
        %6143 = vst.msk [vmem:[%s139 + $0x1b88] sm:$0xff] %vm5261, %v3952
        %6144 = vst.msk [vmem:[%s139 + $0x1b90] sm:$0xff] %vm5261, %v3954
        %6145 = vst.msk [vmem:[%s139 + $0x1b98] sm:$0xff] %vm5261, %v3956
        %6146 = vst.msk [vmem:[%s139 + $0x1ba0] sm:$0xff] %vm5261, %v3958
        %6147 = vst.msk [vmem:[%s139 + $0x1ba8] sm:$0xff] %vm5261, %v3960
        %6148 = vst.msk [vmem:[%s139 + $0x1bb0] sm:$0xff] %vm5261, %v3962
        %6149 = vst.msk [vmem:[%s139 + $0x1bb8] sm:$0xff] %vm5261, %v3964
        %6150 = vst.msk [vmem:[%s139 + $0x1bc0] sm:$0xff] %vm5261, %v3966
        %6151 = vst.msk [vmem:[%s139 + $0x1bc8] sm:$0xff] %vm5261, %v3968
        %6152 = vst.msk [vmem:[%s139 + $0x1bd0] sm:$0xff] %vm5261, %v3970
        %6153 = vst.msk [vmem:[%s139 + $0x1bd8] sm:$0xff] %vm5261, %v3972
        %6154 = vst.msk [vmem:[%s139 + $0x1be0] sm:$0xff] %vm5261, %v3974
        %6155 = vst.msk [vmem:[%s139 + $0x1be8] sm:$0xff] %vm5261, %v3976
        %6156 = vst.msk [vmem:[%s139 + $0x1bf0] sm:$0xff] %vm5261, %v3978
        %6157 = vst.msk [vmem:[%s139 + $0x1bf8] sm:$0xff] %vm5261, %v3980
        %6158 = vst.msk [vmem:[%s139 + $0x1c00] sm:$0xff] %vm5261, %v3982
        %6159 = vst.msk [vmem:[%s139 + $0x1c08] sm:$0xff] %vm5261, %v3984
        %6160 = vst.msk [vmem:[%s139 + $0x1c10] sm:$0xff] %vm5261, %v3986
        %6161 = vst.msk [vmem:[%s139 + $0x1c18] sm:$0xff] %vm5261, %v3988
        %6162 = vst.msk [vmem:[%s139 + $0x1c20] sm:$0xff] %vm5261, %v3990
        %6163 = vst.msk [vmem:[%s139 + $0x1c28] sm:$0xff] %vm5261, %v3992
        %6164 = vst.msk [vmem:[%s139 + $0x1c30] sm:$0xff] %vm5261, %v3994
        %6165 = vst.msk [vmem:[%s139 + $0x1c38] sm:$0xff] %vm5261, %v3996
        %6166 = vst.msk [vmem:[%s139 + $0x1c40] sm:$0xff] %vm5261, %v3998
        %6167 = vst.msk [vmem:[%s139 + $0x1c48] sm:$0xff] %vm5261, %v4000
        %6168 = vst.msk [vmem:[%s139 + $0x1c50] sm:$0xff] %vm5261, %v4002
        %6169 = vst.msk [vmem:[%s139 + $0x1c58] sm:$0xff] %vm5261, %v4004
        %6170 = vst.msk [vmem:[%s139 + $0x1c60] sm:$0xff] %vm5261, %v4006
        %6171 = vst.msk [vmem:[%s139 + $0x1c68] sm:$0xff] %vm5261, %v4008
        %6172 = vst.msk [vmem:[%s139 + $0x1c70] sm:$0xff] %vm5261, %v4010
        %6173 = vst.msk [vmem:[%s139 + $0x1c78] sm:$0xff] %vm5261, %v4012
        %6174 = vst.msk [vmem:[%s139 + $0x1c80] sm:$0xff] %vm5261, %v4014
        %6175 = vst.msk [vmem:[%s139 + $0x1c88] sm:$0xff] %vm5261, %v4016
        %6176 = vst.msk [vmem:[%s139 + $0x1c90] sm:$0xff] %vm5261, %v4018
        %6177 = vst.msk [vmem:[%s139 + $0x1c98] sm:$0xff] %vm5261, %v4020
        %6178 = vst.msk [vmem:[%s139 + $0x1ca0] sm:$0xff] %vm5261, %v4022
        %6179 = vst.msk [vmem:[%s139 + $0x1ca8] sm:$0xff] %vm5261, %v4024
        %6180 = vst.msk [vmem:[%s139 + $0x1cb0] sm:$0xff] %vm5261, %v4026
        %6181 = vst.msk [vmem:[%s139 + $0x1cb8] sm:$0xff] %vm5261, %v4028
        %6182 = vst.msk [vmem:[%s139 + $0x1cc0] sm:$0xff] %vm5261, %v4030
        %6183 = vst.msk [vmem:[%s139 + $0x1cc8] sm:$0xff] %vm5261, %v4032
        %6184 = vst.msk [vmem:[%s139 + $0x1cd0] sm:$0xff] %vm5261, %v4034
        %6185 = vst.msk [vmem:[%s139 + $0x1cd8] sm:$0xff] %vm5261, %v4036
        %6186 = vst.msk [vmem:[%s139 + $0x1ce0] sm:$0xff] %vm5261, %v4038
        %6187 = vst.msk [vmem:[%s139 + $0x1ce8] sm:$0xff] %vm5261, %v4040
        %6188 = vst.msk [vmem:[%s139 + $0x1cf0] sm:$0xff] %vm5261, %v4042
        %6189 = vst.msk [vmem:[%s139 + $0x1cf8] sm:$0xff] %vm5261, %v4044
        %6190 = vst.msk [vmem:[%s139 + $0x1d00] sm:$0xff] %vm5261, %v4046
        %6191 = vst.msk [vmem:[%s139 + $0x1d08] sm:$0xff] %vm5261, %v4048
        %6192 = vst.msk [vmem:[%s139 + $0x1d10] sm:$0xff] %vm5261, %v4050
        %6193 = vst.msk [vmem:[%s139 + $0x1d18] sm:$0xff] %vm5261, %v4052
        %6194 = vst.msk [vmem:[%s139 + $0x1d20] sm:$0xff] %vm5261, %v4054
        %6195 = vst.msk [vmem:[%s139 + $0x1d28] sm:$0xff] %vm5261, %v4056
        %6196 = vst.msk [vmem:[%s139 + $0x1d30] sm:$0xff] %vm5261, %v4058
        %6197 = vst.msk [vmem:[%s139 + $0x1d38] sm:$0xff] %vm5261, %v4060
        %6198 = vst.msk [vmem:[%s139 + $0x1d40] sm:$0xff] %vm5261, %v4062
        %6199 = vst.msk [vmem:[%s139 + $0x1d48] sm:$0xff] %vm5261, %v4064
        %6200 = vst.msk [vmem:[%s139 + $0x1d50] sm:$0xff] %vm5261, %v4066
        %6201 = vst.msk [vmem:[%s139 + $0x1d58] sm:$0xff] %vm5261, %v4068
        %6202 = vst.msk [vmem:[%s139 + $0x1d60] sm:$0xff] %vm5261, %v4070
        %6203 = vst.msk [vmem:[%s139 + $0x1d68] sm:$0xff] %vm5261, %v4072
        %6204 = vst.msk [vmem:[%s139 + $0x1d70] sm:$0xff] %vm5261, %v4074
        %6205 = vst.msk [vmem:[%s139 + $0x1d78] sm:$0xff] %vm5261, %v4076
        %6206 = vst.msk [vmem:[%s139 + $0x1d80] sm:$0xff] %vm5261, %v4078
        %6207 = vst.msk [vmem:[%s139 + $0x1d88] sm:$0xff] %vm5261, %v4080
        %6208 = vst.msk [vmem:[%s139 + $0x1d90] sm:$0xff] %vm5261, %v4082
        %6209 = vst.msk [vmem:[%s139 + $0x1d98] sm:$0xff] %vm5261, %v4084
        %6210 = vst.msk [vmem:[%s139 + $0x1da0] sm:$0xff] %vm5261, %v4086
        %6211 = vst.msk [vmem:[%s139 + $0x1da8] sm:$0xff] %vm5261, %v4088
        %6212 = vst.msk [vmem:[%s139 + $0x1db0] sm:$0xff] %vm5261, %v4090
        %6213 = vst.msk [vmem:[%s139 + $0x1db8] sm:$0xff] %vm5261, %v4092
        %6214 = vst.msk [vmem:[%s139 + $0x1dc0] sm:$0xff] %vm5261, %v4094
        %6215 = vst.msk [vmem:[%s139 + $0x1dc8] sm:$0xff] %vm5261, %v4096
        %6216 = vst.msk [vmem:[%s139 + $0x1dd0] sm:$0xff] %vm5261, %v4098
        %6217 = vst.msk [vmem:[%s139 + $0x1dd8] sm:$0xff] %vm5261, %v4100
        %6218 = vst.msk [vmem:[%s139 + $0x1de0] sm:$0xff] %vm5261, %v4102
        %6219 = vst.msk [vmem:[%s139 + $0x1de8] sm:$0xff] %vm5261, %v4104
        %6220 = vst.msk [vmem:[%s139 + $0x1df0] sm:$0xff] %vm5261, %v4106
        %6221 = vst.msk [vmem:[%s139 + $0x1df8] sm:$0xff] %vm5261, %v4108
        %6222 = vst.msk [vmem:[%s139 + $0x1e00] sm:$0xff] %vm5261, %v4110
        %6223 = vst.msk [vmem:[%s139 + $0x1e08] sm:$0xff] %vm5261, %v4112
        %6224 = vst.msk [vmem:[%s139 + $0x1e10] sm:$0xff] %vm5261, %v4114
        %6225 = vst.msk [vmem:[%s139 + $0x1e18] sm:$0xff] %vm5261, %v4116
        %6226 = vst.msk [vmem:[%s139 + $0x1e20] sm:$0xff] %vm5261, %v4118
        %6227 = vst.msk [vmem:[%s139 + $0x1e28] sm:$0xff] %vm5261, %v4120
        %6228 = vst.msk [vmem:[%s139 + $0x1e30] sm:$0xff] %vm5261, %v4122
        %6229 = vst.msk [vmem:[%s139 + $0x1e38] sm:$0xff] %vm5261, %v4124
        %6230 = vst.msk [vmem:[%s139 + $0x1e40] sm:$0xff] %vm5261, %v4126
        %6231 = vst.msk [vmem:[%s139 + $0x1e48] sm:$0xff] %vm5261, %v4128
        %6232 = vst.msk [vmem:[%s139 + $0x1e50] sm:$0xff] %vm5261, %v4130
        %6233 = vst.msk [vmem:[%s139 + $0x1e58] sm:$0xff] %vm5261, %v4132
        %6234 = vst.msk [vmem:[%s139 + $0x1e60] sm:$0xff] %vm5261, %v4134
        %6235 = vst.msk [vmem:[%s139 + $0x1e68] sm:$0xff] %vm5261, %v4136
        %6236 = vst.msk [vmem:[%s139 + $0x1e70] sm:$0xff] %vm5261, %v4138
        %6237 = vst.msk [vmem:[%s139 + $0x1e78] sm:$0xff] %vm5261, %v4140
        %6238 = vst.msk [vmem:[%s139 + $0x1e80] sm:$0xff] %vm5261, %v4142
        %6239 = vst.msk [vmem:[%s139 + $0x1e88] sm:$0xff] %vm5261, %v4144
        %6240 = vst.msk [vmem:[%s139 + $0x1e90] sm:$0xff] %vm5261, %v4146
        %6241 = vst.msk [vmem:[%s139 + $0x1e98] sm:$0xff] %vm5261, %v4148
        %6242 = vst.msk [vmem:[%s139 + $0x1ea0] sm:$0xff] %vm5261, %v4150
        %6243 = vst.msk [vmem:[%s139 + $0x1ea8] sm:$0xff] %vm5261, %v4152
        %6244 = vst.msk [vmem:[%s139 + $0x1eb0] sm:$0xff] %vm5261, %v4154
        %6245 = vst.msk [vmem:[%s139 + $0x1eb8] sm:$0xff] %vm5261, %v4156
        %6246 = vst.msk [vmem:[%s139 + $0x1ec0] sm:$0xff] %vm5261, %v4158
        %6247 = vst.msk [vmem:[%s139 + $0x1ec8] sm:$0xff] %vm5261, %v4160
        %6248 = vst.msk [vmem:[%s139 + $0x1ed0] sm:$0xff] %vm5261, %v4162
        %6249 = vst.msk [vmem:[%s139 + $0x1ed8] sm:$0xff] %vm5261, %v4164
        %6250 = vst.msk [vmem:[%s139 + $0x1ee0] sm:$0xff] %vm5261, %v4166
        %6251 = vst.msk [vmem:[%s139 + $0x1ee8] sm:$0xff] %vm5261, %v4168
        %6252 = vst.msk [vmem:[%s139 + $0x1ef0] sm:$0xff] %vm5261, %v4170
        %6253 = vst.msk [vmem:[%s139 + $0x1ef8] sm:$0xff] %vm5261, %v4172
        %6254 = vst.msk [vmem:[%s139 + $0x1f00] sm:$0xff] %vm5261, %v4174
        %6255 = vst.msk [vmem:[%s139 + $0x1f08] sm:$0xff] %vm5261, %v4176
        %6256 = vst.msk [vmem:[%s139 + $0x1f10] sm:$0xff] %vm5261, %v4178
        %6257 = vst.msk [vmem:[%s139 + $0x1f18] sm:$0xff] %vm5261, %v4180
        %6258 = vst.msk [vmem:[%s139 + $0x1f20] sm:$0xff] %vm5261, %v4182
        %6259 = vst.msk [vmem:[%s139 + $0x1f28] sm:$0xff] %vm5261, %v4184
        %6260 = vst.msk [vmem:[%s139 + $0x1f30] sm:$0xff] %vm5261, %v4186
        %6261 = vst.msk [vmem:[%s139 + $0x1f38] sm:$0xff] %vm5261, %v4188
        %6262 = vst.msk [vmem:[%s139 + $0x1f40] sm:$0xff] %vm5261, %v4190
        %6263 = vst.msk [vmem:[%s139 + $0x1f48] sm:$0xff] %vm5261, %v4192
        %6264 = vst.msk [vmem:[%s139 + $0x1f50] sm:$0xff] %vm5261, %v4194
        %6265 = vst.msk [vmem:[%s139 + $0x1f58] sm:$0xff] %vm5261, %v4196
        %6266 = vst.msk [vmem:[%s139 + $0x1f60] sm:$0xff] %vm5261, %v4198
        %6267 = vst.msk [vmem:[%s139 + $0x1f68] sm:$0xff] %vm5261, %v4200
        %6268 = vst.msk [vmem:[%s139 + $0x1f70] sm:$0xff] %vm5261, %v4202
        %6269 = vst.msk [vmem:[%s139 + $0x1f78] sm:$0xff] %vm5261, %v4204
        %6270 = vst.msk [vmem:[%s139 + $0x1f80] sm:$0xff] %vm5261, %v4206
        %6271 = vst.msk [vmem:[%s139 + $0x1f88] sm:$0xff] %vm5261, %v4208
        %6272 = vst.msk [vmem:[%s139 + $0x1f90] sm:$0xff] %vm5261, %v4210
        %6273 = vst.msk [vmem:[%s139 + $0x1f98] sm:$0xff] %vm5261, %v4212
        %6274 = vst.msk [vmem:[%s139 + $0x1fa0] sm:$0xff] %vm5261, %v4214
        %6275 = vst.msk [vmem:[%s139 + $0x1fa8] sm:$0xff] %vm5261, %v4216
        %6276 = vst.msk [vmem:[%s139 + $0x1fb0] sm:$0xff] %vm5261, %v4218
        %6277 = vst.msk [vmem:[%s139 + $0x1fb8] sm:$0xff] %vm5261, %v4220
        %6278 = vst.msk [vmem:[%s139 + $0x1fc0] sm:$0xff] %vm5261, %v4222
        %6279 = vst.msk [vmem:[%s139 + $0x1fc8] sm:$0xff] %vm5261, %v4224
        %6280 = vst.msk [vmem:[%s139 + $0x1fd0] sm:$0xff] %vm5261, %v4226
        %6281 = vst.msk [vmem:[%s139 + $0x1fd8] sm:$0xff] %vm5261, %v4228
        %6282 = vst.msk [vmem:[%s139 + $0x1fe0] sm:$0xff] %vm5261, %v4230
        %6283 = vst.msk [vmem:[%s139 + $0x1fe8] sm:$0xff] %vm5261, %v4232
        %6284 = vst.msk [vmem:[%s139 + $0x1ff0] sm:$0xff] %vm5261, %v4234
        %6285 = vst.msk [vmem:[%s139 + $0x1ff8] sm:$0xff] %vm5261, %v4236
        %s6286 = smul.u32 1024, %s15
        %p6287 = scmp.lt.s32.totalorder %s6286, 4095
        %s6288 = scalar_select %p6287, %s6286, 4095
        %s6289 = smul.addr %s6288, 8
        %s6290 = scalar_lea.vmem %s1, %s6289
        // Predicated region
        $region29: #{tpu_custom_call.1} parent=23 // pred_check
          %p6291 = pneg %p59
        $region30: #{tpu_custom_call.1} parent=23 // pred_check_branch
          %6293 = sbr.rel (%p6291) target = $region32
        $region31: #{tpu_custom_call.1} parent=23 // pred_region
          %s6294 = smul.u32 1024, %s15
        $region32: #{tpu_custom_call.1} parent=23 // pred_fallthru
          _
      $region24: #{tpu_custom_call.1} parent=5 // pred_fallthru
        _
      %p6295 = scmp.le.s32.totalorder 2, %s10
      // Predicated region
      $region33: #{tpu_custom_call.1} parent=5 // pred_check
        %p6296 = pneg %p6295
      $region34: #{tpu_custom_call.1} parent=5 // pred_check_branch
        %6298 = sbr.rel (%p6296) target = $region36
      $region35: #{tpu_custom_call.1} parent=5 // pred_region
        %s6299 = ssub.s32 %s10, 2
        // Predicated region
        $region37: #{tpu_custom_call.1} parent=35 // pred_check
          %p6300 = pneg %p65
        $region38: #{tpu_custom_call.1} parent=35 // pred_check_branch
          %6302 = sbr.rel (%p6300) target = $region40
        $region39: #{tpu_custom_call.1} parent=35 // pred_region
          %s6303 = smul.u32 1024, %s16
          %p6304 = scmp.lt.s32.totalorder %s6303, 4095
          %s6305 = scalar_select %p6304, %s6303, 4095
          %s6306 = smul.addr %s6305, 8
          %s6307 = scalar_lea.vmem %s1, %s6306
        $region40: #{tpu_custom_call.1} parent=35 // pred_fallthru
          _
      $region36: #{tpu_custom_call.1} parent=5 // pred_fallthru
        _
    $region6: #{tpu_custom_call.1} parent=1 // loop_footer
      %s14 = sadd.s32 1, %s10
    $region7: #{tpu_custom_call.1} parent=1 // loop_footer_branch
      %9 = sbr.rel target = $region3
    $region8: #{tpu_custom_call.1} parent=1 // loop_exit
      _
    %6308 = vsyncpa [#allocation3], 1
    %s6309 = scalar_lea.sflag [#allocation3], 1
    %6310 = vsyncpa %s6309, 1

</llo_original>
